<compile_context>
chip_gen: v6e
topology: v6e:2x2x1
jax: 0.10.0
libtpu: 0.0.40
codegen_flags: <defaults>
</compile_context>

<pallas_src>
import functools
from math import sqrt

import jax
import jax.numpy as jnp
from jax.experimental import pallas as pl
from jax.experimental.pallas import tpu as pltpu

_SQRT2 = sqrt(2.0)
_INV_SQRT2 = 1.0 / sqrt(2.0)

# Abramowitz & Stegun 7.1.26 coefficients, pre-multiplied by the CDF's 0.5.
_P = 0.3275911
_A1H = 0.5 * 0.254829592
_A2H = 0.5 * -0.284496736
_A3H = 0.5 * 1.421413741
_A4H = 0.5 * -1.453152027
_A5H = 0.5 * 1.061405429


def _phi_from_scaled(v):
    """Standard-normal CDF Phi(z) given v = z / sqrt(2).

    A&S 7.1.26 erf approximation (|abs err| <= 1.5e-7).  The 0.5 CDF factor is
    folded into the polynomial coefficients and the odd-symmetry handling is a
    single select:  Phi = 1 - w  for v >= 0,  Phi = w  otherwise.
    """
    av = jnp.abs(v)
    y = 1.0 + _P * av
    # EUP reciprocal seed + one cheap VALU Newton step -> f32-accurate 1/y while
    # keeping the heavy work off the saturated VALU slots.
    t0 = pl.reciprocal(y, approx=True)
    t = t0 * (2.0 - y * t0)
    poly = ((((_A5H * t + _A4H) * t + _A3H) * t + _A2H) * t + _A1H) * t
    w = poly * jnp.exp(-(v * v))          # 0.5 * poly_AS * exp(-v^2), in [0, 0.5]
    return jnp.where(v >= 0.0, 1.0 - w, w)


def _quantnorm_kernel(x_ref, d_ref, bw_ref, o_ref, *, inv_num_data,
                      sample_tile, num_grid_k, rows_valid_in_last):
    # grid = (feature_blocks, cdf_sample_blocks); reduction axis is last.
    k = pl.program_id(1)

    @pl.when(k == 0)
    def _():
        o_ref[...] = jnp.zeros_like(o_ref)

    # 1/(sigmoid(bw)*sqrt(2)) == (1 + exp(-bw)) / sqrt(2):  one (1, TF) vector,
    # no divides, recomputed only once per grid step (negligible vs. hot loop).
    inv = (1.0 + jnp.exp(-bw_ref[...])) * _INV_SQRT2     # (1, TF)
    xs = x_ref[...] * inv                                # (B, TF)
    ds = d_ref[...] * inv                                # (TS, TF)

    acc = jnp.zeros_like(xs)
    not_last = k != (num_grid_k - 1)
    for j in range(sample_tile):
        if j >= rows_valid_in_last and num_grid_k == 1:
            # Statically-known padding row (single-step reduction): skip it.
            continue
        v = xs - ds[j:j + 1, :]                          # (B, TF) temporaries only
        phi = _phi_from_scaled(v)
        if j >= rows_valid_in_last:
            # This row is padding only in the last grid step; mask it there.
            phi = jnp.where(not_last, phi, 0.0)
        acc = acc + phi
    o_ref[...] += acc                                    # output block is resident

    @pl.when(k == num_grid_k - 1)
    def _():
        o_ref[...] = o_ref[...] * inv_num_data


def _round_up(n, m):
    return ((n + m - 1) // m) * m


def quantnorm1d_forward(x, cdf_data, bw, size, *, normal_backtransform=True,
                        sample_tile=128, feature_tile=256):
    """Forward pass of QuantNorm1D_new given the (already filled) buffer state."""
    B, F = x.shape
    assert size > 0, "Cannot compute forward pass without samples."

    x = x.astype(jnp.float32)
    bw = bw.astype(jnp.float32)
    d = cdf_data[:size].astype(jnp.float32)   # only valid rows (never the NaN tail)

    # Feature tiling: lane-dense blocks; >=2 blocks lets v7x use both TensorCores.
    TF = F if F <= feature_tile else feature_tile
    # TODO(synk): production num_features=1000 is not a multiple of 128; pad the
    # feature axis (and slice the output) to use lane-dense tiles in that case.
    assert F % TF == 0, "feature count must split into lane-dense tiles"

    # Sample tiling: big tiles amortize per-grid-step overhead; pad the last tile
    # with zeros and mask its fake rows inside the kernel.
    TS = min(_round_up(sample_tile, 8), _round_up(size, 8))
    padded = _round_up(size, TS)
    if padded != size:
        d = jnp.pad(d, ((0, padded - size), (0, 0)))
    nsteps = padded // TS
    rows_valid_in_last = size - (nsteps - 1) * TS

    kernel = functools.partial(
        _quantnorm_kernel,
        inv_num_data=1.0 / float(size),
        sample_tile=TS,
        num_grid_k=nsteps,
        rows_valid_in_last=rows_valid_in_last,
    )

    u = pl.pallas_call(
        kernel,
        out_shape=jax.ShapeDtypeStruct((B, F), jnp.float32),
        grid_spec=pltpu.PrefetchScalarGridSpec(
            num_scalar_prefetch=0,
            grid=(F // TF, nsteps),
            in_specs=[
                pl.BlockSpec((B, TF), lambda f, k: (0, f)),    # x (resident)
                pl.BlockSpec((TS, TF), lambda f, k: (k, f)),   # cdf_data tile
                pl.BlockSpec((1, TF), lambda f, k: (0, f)),    # bandwidths
            ],
            out_specs=pl.BlockSpec((B, TF), lambda f, k: (0, f)),
        ),
        compiler_params=pltpu.CompilerParams(
            dimension_semantics=("parallel", "arbitrary")),
    )(x, d, bw)

    if normal_backtransform:
        # standard_normal_ppf — elementwise glue over (B, F), not the hot path.
        _min = 9e-8
        _max = 1.0 - _min
        u = jnp.clip(u, _min, _max)
        return _SQRT2 * jax.scipy.special.erfinv(2.0 * u - 1.0)
    return u - 0.5


def _reference_forward(x, cdf_data, bw, size, normal_backtransform=True):
    # Pure-JAX reference mirroring the PyTorch forward (sanity check).
    d = cdf_data[:size]
    bw_s = jax.nn.sigmoid(bw)
    z = (x[:, None, :] - d[None, :, :]) / bw_s[None, :, :]
    u = jnp.mean(0.5 * (1.0 + jax.scipy.special.erf(z / _SQRT2)), axis=1)
    if normal_backtransform:
        _min = 9e-8
        u = jnp.clip(u, _min, 1.0 - _min)
        return _SQRT2 * jax.scipy.special.erfinv(2.0 * u - 1.0)
    return u - 0.5


if __name__ == "__main__":
    # Small shapes consistent with QuantNorm1D_new(input_shape=(B, F), ...)
    B = 8      # batch_size (num_samples)
    F = 128    # num_features
    P = 64     # num_pit_samples (capacity of the cdf_data buffer)

    key = jax.random.PRNGKey(0)
    k_bw, k_warm, k_x = jax.random.split(key, 3)

    # Deterministic parameter init: self.bw = torch.rand(1, num_features).
    bw = jax.random.uniform(k_bw, (1, F), dtype=jnp.float32)

    # cdf_data buffer starts as NaN; simulate fill() from prior training steps.
    # TODO(synk): fill()'s randperm-based replacement when the buffer is full is
    # stateful host logic (torch.randperm + in-place buffer writes), kept as glue.
    cdf_data = jnp.full((P, F), jnp.nan, dtype=jnp.float32)
    warm = jax.random.normal(k_warm, (P - B, F), dtype=jnp.float32)
    cdf_data = cdf_data.at[: P - B].set(warm)
    size = P - B

    # Current batch; forward() in training mode fills it into the buffer first.
    x = jax.random.normal(k_x, (B, F), dtype=jnp.float32)
    cdf_data = cdf_data.at[size: size + B].set(x)
    size += B                       # buffer now full: size == P == 64

    ref = _reference_forward(x, cdf_data, bw, size)

    # 1) Default tiling: the whole reduction fits in a single grid step.
    out = jax.block_until_ready(quantnorm1d_forward(x, cdf_data, bw, size))
    assert out.shape == (B, F) and out.dtype == jnp.float32
    assert bool(jnp.all(jnp.isfinite(out)))
    assert bool(jnp.allclose(out, ref, atol=2e-3, rtol=0.0))

    # 2) Forced multi-step reduction with a tile that does NOT divide `size`
    #    (exercises the padded-tile row mask).
    out2 = jax.block_until_ready(
        quantnorm1d_forward(x, cdf_data, bw, size, sample_tile=24))
    assert bool(jnp.all(jnp.isfinite(out2)))
    assert bool(jnp.allclose(out2, ref, atol=2e-3, rtol=0.0))

    print("KERNEL_OK")
</pallas_src>

<mosaic_0001>
module attributes {stable_mosaic.version = 11 : i64} {
  func.func @_quantnorm_kernel(%arg0: i32, %arg1: i32, %arg2: memref<8x128xf32, #tpu.memory_space<vmem>>, %arg3: memref<64x128xf32, #tpu.memory_space<vmem>>, %arg4: memref<1x128xf32, #tpu.memory_space<vmem>>, %arg5: memref<8x128xf32, #tpu.memory_space<vmem>>) attributes {dimension_semantics = [#tpu.dimension_semantics<parallel>, #tpu.dimension_semantics<arbitrary>], iteration_bounds = array<i64: 1, 1>, scalar_prefetch = 0 : i64, scratch_operands = 0 : i64, tpu.core_type = #tpu.core_type<tc>, window_params = [{transform_indices = @transform_0, window_bounds = array<i64: 8, 128>}, {transform_indices = @transform_1, window_bounds = array<i64: 64, 128>}, {transform_indices = @transform_2, window_bounds = array<i64: 1, 128>}, {transform_indices = @transform_3, window_bounds = array<i64: 8, 128>}]} {
    %c0_i32 = arith.constant 0 : i32
    %0 = arith.cmpi eq, %arg1, %c0_i32 : i32
    %1 = arith.extui %0 : i1 to i32
    %c0_i32_0 = arith.constant 0 : i32
    %2 = arith.cmpi ne, %1, %c0_i32_0 : i32
    scf.if %2 {
      %cst_719 = arith.constant 0.000000e+00 : f32
      %2456 = vector.broadcast %cst_719 : f32 to vector<8x128xf32>
      %c0_720 = arith.constant 0 : index
      %c0_721 = arith.constant 0 : index
      %2457 = vector.load %arg5[%c0_720, %c0_721] : memref<8x128xf32, #tpu.memory_space<vmem>>, vector<8x128xf32>
      tpu.vector_store %arg5[%c0_720, %c0_721], %2456 {strides = array<i32>} : memref<8x128xf32, #tpu.memory_space<vmem>>, vector<8x128xf32>,
    } else {
    }
    %c0 = arith.constant 0 : index
    %c0_1 = arith.constant 0 : index
    %3 = vector.load %arg4[%c0, %c0_1] : memref<1x128xf32, #tpu.memory_space<vmem>>, vector<1x128xf32>
    %cst = arith.constant 0.000000e+00 : f32
    %4 = vector.broadcast %cst : f32 to vector<1x128xf32>
    %5 = arith.subf %4, %3 : vector<1x128xf32>
    %6 = math.exp %5 : vector<1x128xf32>
    %cst_2 = arith.constant 1.000000e+00 : f32
    %7 = vector.broadcast %cst_2 : f32 to vector<1x128xf32>
    %8 = arith.addf %7, %6 : vector<1x128xf32>
    %cst_3 = arith.constant 0.707106769 : f32
    %9 = vector.broadcast %cst_3 : f32 to vector<1x128xf32>
    %10 = arith.mulf %8, %9 : vector<1x128xf32>
    %c0_4 = arith.constant 0 : index
    %c0_5 = arith.constant 0 : index
    %11 = vector.load %arg2[%c0_4, %c0_5] : memref<8x128xf32, #tpu.memory_space<vmem>>, vector<8x128xf32>
    %12 = vector.broadcast %10 : vector<1x128xf32> to vector<8x128xf32>
    %13 = arith.mulf %11, %12 : vector<8x128xf32>
    %c0_6 = arith.constant 0 : index
    %c0_7 = arith.constant 0 : index
    %14 = vector.load %arg3[%c0_6, %c0_7] : memref<64x128xf32, #tpu.memory_space<vmem>>, vector<64x128xf32>
    %15 = vector.broadcast %10 : vector<1x128xf32> to vector<64x128xf32>
    %16 = arith.mulf %14, %15 : vector<64x128xf32>
    %cst_8 = arith.constant 0.000000e+00 : f32
    %17 = vector.broadcast %cst_8 : f32 to vector<8x128xf32>
    %18 = vector.extract_strided_slice %16 {offsets = [0, 0], sizes = [1, 128], strides = [1, 1]} : vector<64x128xf32> to vector<1x128xf32>
    %19 = vector.broadcast %18 : vector<1x128xf32> to vector<8x128xf32>
    %20 = arith.subf %13, %19 : vector<8x128xf32>
    %21 = math.absf %20 : vector<8x128xf32>
    %cst_9 = arith.constant 0.327591091 : f32
    %22 = vector.broadcast %cst_9 : f32 to vector<8x128xf32>
    %23 = arith.mulf %22, %21 : vector<8x128xf32>
    %cst_10 = arith.constant 1.000000e+00 : f32
    %24 = vector.broadcast %cst_10 : f32 to vector<8x128xf32>
    %25 = arith.addf %24, %23 : vector<8x128xf32>
    %26 = tpu.reciprocal %25 {approx = true} : vector<8x128xf32> -> vector<8x128xf32>
    %27 = arith.mulf %25, %26 : vector<8x128xf32>
    %cst_11 = arith.constant 2.000000e+00 : f32
    %28 = vector.broadcast %cst_11 : f32 to vector<8x128xf32>
    %29 = arith.subf %28, %27 : vector<8x128xf32>
    %30 = arith.mulf %26, %29 : vector<8x128xf32>
    %cst_12 = arith.constant 0.53070271 : f32
    %31 = vector.broadcast %cst_12 : f32 to vector<8x128xf32>
    %32 = arith.mulf %31, %30 : vector<8x128xf32>
    %cst_13 = arith.constant -0.72657603 : f32
    %33 = vector.broadcast %cst_13 : f32 to vector<8x128xf32>
    %34 = arith.addf %32, %33 : vector<8x128xf32>
    %35 = arith.mulf %34, %30 : vector<8x128xf32>
    %cst_14 = arith.constant 0.710706889 : f32
    %36 = vector.broadcast %cst_14 : f32 to vector<8x128xf32>
    %37 = arith.addf %35, %36 : vector<8x128xf32>
    %38 = arith.mulf %37, %30 : vector<8x128xf32>
    %cst_15 = arith.constant -0.142248362 : f32
    %39 = vector.broadcast %cst_15 : f32 to vector<8x128xf32>
    %40 = arith.addf %38, %39 : vector<8x128xf32>
    %41 = arith.mulf %40, %30 : vector<8x128xf32>
    %cst_16 = arith.constant 0.127414793 : f32
    %42 = vector.broadcast %cst_16 : f32 to vector<8x128xf32>
    %43 = arith.addf %41, %42 : vector<8x128xf32>
    %44 = arith.mulf %43, %30 : vector<8x128xf32>
    %45 = arith.mulf %20, %20 : vector<8x128xf32>
    %cst_17 = arith.constant 0.000000e+00 : f32
    %46 = vector.broadcast %cst_17 : f32 to vector<8x128xf32>
    %47 = arith.subf %46, %45 : vector<8x128xf32>
    %48 = math.exp %47 : vector<8x128xf32>
    %49 = arith.mulf %44, %48 : vector<8x128xf32>
    %cst_18 = arith.constant 0.000000e+00 : f32
    %50 = vector.broadcast %cst_18 : f32 to vector<8x128xf32>
    %51 = arith.cmpf oge, %20, %50 : vector<8x128xf32>
    %cst_19 = arith.constant 1.000000e+00 : f32
    %52 = vector.broadcast %cst_19 : f32 to vector<8x128xf32>
    %53 = arith.subf %52, %49 : vector<8x128xf32>
    %54 = arith.select %51, %53, %49 : vector<8x128xi1>, vector<8x128xf32>
    %55 = arith.addf %17, %54 : vector<8x128xf32>
    %56 = vector.extract_strided_slice %16 {offsets = [1, 0], sizes = [1, 128], strides = [1, 1]} : vector<64x128xf32> to vector<1x128xf32>
    %57 = vector.broadcast %56 : vector<1x128xf32> to vector<8x128xf32>
    %58 = arith.subf %13, %57 : vector<8x128xf32>
    %59 = math.absf %58 : vector<8x128xf32>
    %cst_20 = arith.constant 0.327591091 : f32
    %60 = vector.broadcast %cst_20 : f32 to vector<8x128xf32>
    %61 = arith.mulf %60, %59 : vector<8x128xf32>
    %cst_21 = arith.constant 1.000000e+00 : f32
    %62 = vector.broadcast %cst_21 : f32 to vector<8x128xf32>
    %63 = arith.addf %62, %61 : vector<8x128xf32>
    %64 = tpu.reciprocal %63 {approx = true} : vector<8x128xf32> -> vector<8x128xf32>
    %65 = arith.mulf %63, %64 : vector<8x128xf32>
    %cst_22 = arith.constant 2.000000e+00 : f32
    %66 = vector.broadcast %cst_22 : f32 to vector<8x128xf32>
    %67 = arith.subf %66, %65 : vector<8x128xf32>
    %68 = arith.mulf %64, %67 : vector<8x128xf32>
    %cst_23 = arith.constant 0.53070271 : f32
    %69 = vector.broadcast %cst_23 : f32 to vector<8x128xf32>
    %70 = arith.mulf %69, %68 : vector<8x128xf32>
    %cst_24 = arith.constant -0.72657603 : f32
    %71 = vector.broadcast %cst_24 : f32 to vector<8x128xf32>
    %72 = arith.addf %70, %71 : vector<8x128xf32>
    %73 = arith.mulf %72, %68 : vector<8x128xf32>
    %cst_25 = arith.constant 0.710706889 : f32
    %74 = vector.broadcast %cst_25 : f32 to vector<8x128xf32>
    %75 = arith.addf %73, %74 : vector<8x128xf32>
    %76 = arith.mulf %75, %68 : vector<8x128xf32>
    %cst_26 = arith.constant -0.142248362 : f32
    %77 = vector.broadcast %cst_26 : f32 to vector<8x128xf32>
    %78 = arith.addf %76, %77 : vector<8x128xf32>
    %79 = arith.mulf %78, %68 : vector<8x128xf32>
    %cst_27 = arith.constant 0.127414793 : f32
    %80 = vector.broadcast %cst_27 : f32 to vector<8x128xf32>
    %81 = arith.addf %79, %80 : vector<8x128xf32>
    %82 = arith.mulf %81, %68 : vector<8x128xf32>
    %83 = arith.mulf %58, %58 : vector<8x128xf32>
    %cst_28 = arith.constant 0.000000e+00 : f32
    %84 = vector.broadcast %cst_28 : f32 to vector<8x128xf32>
    %85 = arith.subf %84, %83 : vector<8x128xf32>
    %86 = math.exp %85 : vector<8x128xf32>
    %87 = arith.mulf %82, %86 : vector<8x128xf32>
    %cst_29 = arith.constant 0.000000e+00 : f32
    %88 = vector.broadcast %cst_29 : f32 to vector<8x128xf32>
    %89 = arith.cmpf oge, %58, %88 : vector<8x128xf32>
    %cst_30 = arith.constant 1.000000e+00 : f32
    %90 = vector.broadcast %cst_30 : f32 to vector<8x128xf32>
    %91 = arith.subf %90, %87 : vector<8x128xf32>
    %92 = arith.select %89, %91, %87 : vector<8x128xi1>, vector<8x128xf32>
    %93 = arith.addf %55, %92 : vector<8x128xf32>
    %94 = vector.extract_strided_slice %16 {offsets = [2, 0], sizes = [1, 128], strides = [1, 1]} : vector<64x128xf32> to vector<1x128xf32>
    %95 = vector.broadcast %94 : vector<1x128xf32> to vector<8x128xf32>
    %96 = arith.subf %13, %95 : vector<8x128xf32>
    %97 = math.absf %96 : vector<8x128xf32>
    %cst_31 = arith.constant 0.327591091 : f32
    %98 = vector.broadcast %cst_31 : f32 to vector<8x128xf32>
    %99 = arith.mulf %98, %97 : vector<8x128xf32>
    %cst_32 = arith.constant 1.000000e+00 : f32
    %100 = vector.broadcast %cst_32 : f32 to vector<8x128xf32>
    %101 = arith.addf %100, %99 : vector<8x128xf32>
    %102 = tpu.reciprocal %101 {approx = true} : vector<8x128xf32> -> vector<8x128xf32>
    %103 = arith.mulf %101, %102 : vector<8x128xf32>
    %cst_33 = arith.constant 2.000000e+00 : f32
    %104 = vector.broadcast %cst_33 : f32 to vector<8x128xf32>
    %105 = arith.subf %104, %103 : vector<8x128xf32>
    %106 = arith.mulf %102, %105 : vector<8x128xf32>
    %cst_34 = arith.constant 0.53070271 : f32
    %107 = vector.broadcast %cst_34 : f32 to vector<8x128xf32>
    %108 = arith.mulf %107, %106 : vector<8x128xf32>
    %cst_35 = arith.constant -0.72657603 : f32
    %109 = vector.broadcast %cst_35 : f32 to vector<8x128xf32>
    %110 = arith.addf %108, %109 : vector<8x128xf32>
    %111 = arith.mulf %110, %106 : vector<8x128xf32>
    %cst_36 = arith.constant 0.710706889 : f32
    %112 = vector.broadcast %cst_36 : f32 to vector<8x128xf32>
    %113 = arith.addf %111, %112 : vector<8x128xf32>
    %114 = arith.mulf %113, %106 : vector<8x128xf32>
    %cst_37 = arith.constant -0.142248362 : f32
    %115 = vector.broadcast %cst_37 : f32 to vector<8x128xf32>
    %116 = arith.addf %114, %115 : vector<8x128xf32>
    %117 = arith.mulf %116, %106 : vector<8x128xf32>
    %cst_38 = arith.constant 0.127414793 : f32
    %118 = vector.broadcast %cst_38 : f32 to vector<8x128xf32>
    %119 = arith.addf %117, %118 : vector<8x128xf32>
    %120 = arith.mulf %119, %106 : vector<8x128xf32>
    %121 = arith.mulf %96, %96 : vector<8x128xf32>
    %cst_39 = arith.constant 0.000000e+00 : f32
    %122 = vector.broadcast %cst_39 : f32 to vector<8x128xf32>
    %123 = arith.subf %122, %121 : vector<8x128xf32>
    %124 = math.exp %123 : vector<8x128xf32>
    %125 = arith.mulf %120, %124 : vector<8x128xf32>
    %cst_40 = arith.constant 0.000000e+00 : f32
    %126 = vector.broadcast %cst_40 : f32 to vector<8x128xf32>
    %127 = arith.cmpf oge, %96, %126 : vector<8x128xf32>
    %cst_41 = arith.constant 1.000000e+00 : f32
    %128 = vector.broadcast %cst_41 : f32 to vector<8x128xf32>
    %129 = arith.subf %128, %125 : vector<8x128xf32>
    %130 = arith.select %127, %129, %125 : vector<8x128xi1>, vector<8x128xf32>
    %131 = arith.addf %93, %130 : vector<8x128xf32>
    %132 = vector.extract_strided_slice %16 {offsets = [3, 0], sizes = [1, 128], strides = [1, 1]} : vector<64x128xf32> to vector<1x128xf32>
    %133 = vector.broadcast %132 : vector<1x128xf32> to vector<8x128xf32>
    %134 = arith.subf %13, %133 : vector<8x128xf32>
    %135 = math.absf %134 : vector<8x128xf32>
    %cst_42 = arith.constant 0.327591091 : f32
    %136 = vector.broadcast %cst_42 : f32 to vector<8x128xf32>
    %137 = arith.mulf %136, %135 : vector<8x128xf32>
    %cst_43 = arith.constant 1.000000e+00 : f32
    %138 = vector.broadcast %cst_43 : f32 to vector<8x128xf32>
    %139 = arith.addf %138, %137 : vector<8x128xf32>
    %140 = tpu.reciprocal %139 {approx = true} : vector<8x128xf32> -> vector<8x128xf32>
    %141 = arith.mulf %139, %140 : vector<8x128xf32>
    %cst_44 = arith.constant 2.000000e+00 : f32
    %142 = vector.broadcast %cst_44 : f32 to vector<8x128xf32>
    %143 = arith.subf %142, %141 : vector<8x128xf32>
    %144 = arith.mulf %140, %143 : vector<8x128xf32>
    %cst_45 = arith.constant 0.53070271 : f32
    %145 = vector.broadcast %cst_45 : f32 to vector<8x128xf32>
    %146 = arith.mulf %145, %144 : vector<8x128xf32>
    %cst_46 = arith.constant -0.72657603 : f32
    %147 = vector.broadcast %cst_46 : f32 to vector<8x128xf32>
    %148 = arith.addf %146, %147 : vector<8x128xf32>
    %149 = arith.mulf %148, %144 : vector<8x128xf32>
    %cst_47 = arith.constant 0.710706889 : f32
    %150 = vector.broadcast %cst_47 : f32 to vector<8x128xf32>
    %151 = arith.addf %149, %150 : vector<8x128xf32>
    %152 = arith.mulf %151, %144 : vector<8x128xf32>
    %cst_48 = arith.constant -0.142248362 : f32
    %153 = vector.broadcast %cst_48 : f32 to vector<8x128xf32>
    %154 = arith.addf %152, %153 : vector<8x128xf32>
    %155 = arith.mulf %154, %144 : vector<8x128xf32>
    %cst_49 = arith.constant 0.127414793 : f32
    %156 = vector.broadcast %cst_49 : f32 to vector<8x128xf32>
    %157 = arith.addf %155, %156 : vector<8x128xf32>
    %158 = arith.mulf %157, %144 : vector<8x128xf32>
    %159 = arith.mulf %134, %134 : vector<8x128xf32>
    %cst_50 = arith.constant 0.000000e+00 : f32
    %160 = vector.broadcast %cst_50 : f32 to vector<8x128xf32>
    %161 = arith.subf %160, %159 : vector<8x128xf32>
    %162 = math.exp %161 : vector<8x128xf32>
    %163 = arith.mulf %158, %162 : vector<8x128xf32>
    %cst_51 = arith.constant 0.000000e+00 : f32
    %164 = vector.broadcast %cst_51 : f32 to vector<8x128xf32>
    %165 = arith.cmpf oge, %134, %164 : vector<8x128xf32>
    %cst_52 = arith.constant 1.000000e+00 : f32
    %166 = vector.broadcast %cst_52 : f32 to vector<8x128xf32>
    %167 = arith.subf %166, %163 : vector<8x128xf32>
    %168 = arith.select %165, %167, %163 : vector<8x128xi1>, vector<8x128xf32>
    %169 = arith.addf %131, %168 : vector<8x128xf32>
    %170 = vector.extract_strided_slice %16 {offsets = [4, 0], sizes = [1, 128], strides = [1, 1]} : vector<64x128xf32> to vector<1x128xf32>
    %171 = vector.broadcast %170 : vector<1x128xf32> to vector<8x128xf32>
    %172 = arith.subf %13, %171 : vector<8x128xf32>
    %173 = math.absf %172 : vector<8x128xf32>
    %cst_53 = arith.constant 0.327591091 : f32
    %174 = vector.broadcast %cst_53 : f32 to vector<8x128xf32>
    %175 = arith.mulf %174, %173 : vector<8x128xf32>
    %cst_54 = arith.constant 1.000000e+00 : f32
    %176 = vector.broadcast %cst_54 : f32 to vector<8x128xf32>
    %177 = arith.addf %176, %175 : vector<8x128xf32>
    %178 = tpu.reciprocal %177 {approx = true} : vector<8x128xf32> -> vector<8x128xf32>
    %179 = arith.mulf %177, %178 : vector<8x128xf32>
    %cst_55 = arith.constant 2.000000e+00 : f32
    %180 = vector.broadcast %cst_55 : f32 to vector<8x128xf32>
    %181 = arith.subf %180, %179 : vector<8x128xf32>
    %182 = arith.mulf %178, %181 : vector<8x128xf32>
    %cst_56 = arith.constant 0.53070271 : f32
    %183 = vector.broadcast %cst_56 : f32 to vector<8x128xf32>
    %184 = arith.mulf %183, %182 : vector<8x128xf32>
    %cst_57 = arith.constant -0.72657603 : f32
    %185 = vector.broadcast %cst_57 : f32 to vector<8x128xf32>
    %186 = arith.addf %184, %185 : vector<8x128xf32>
    %187 = arith.mulf %186, %182 : vector<8x128xf32>
    %cst_58 = arith.constant 0.710706889 : f32
    %188 = vector.broadcast %cst_58 : f32 to vector<8x128xf32>
    %189 = arith.addf %187, %188 : vector<8x128xf32>
    %190 = arith.mulf %189, %182 : vector<8x128xf32>
    %cst_59 = arith.constant -0.142248362 : f32
    %191 = vector.broadcast %cst_59 : f32 to vector<8x128xf32>
    %192 = arith.addf %190, %191 : vector<8x128xf32>
    %193 = arith.mulf %192, %182 : vector<8x128xf32>
    %cst_60 = arith.constant 0.127414793 : f32
    %194 = vector.broadcast %cst_60 : f32 to vector<8x128xf32>
    %195 = arith.addf %193, %194 : vector<8x128xf32>
    %196 = arith.mulf %195, %182 : vector<8x128xf32>
    %197 = arith.mulf %172, %172 : vector<8x128xf32>
    %cst_61 = arith.constant 0.000000e+00 : f32
    %198 = vector.broadcast %cst_61 : f32 to vector<8x128xf32>
    %199 = arith.subf %198, %197 : vector<8x128xf32>
    %200 = math.exp %199 : vector<8x128xf32>
    %201 = arith.mulf %196, %200 : vector<8x128xf32>
    %cst_62 = arith.constant 0.000000e+00 : f32
    %202 = vector.broadcast %cst_62 : f32 to vector<8x128xf32>
    %203 = arith.cmpf oge, %172, %202 : vector<8x128xf32>
    %cst_63 = arith.constant 1.000000e+00 : f32
    %204 = vector.broadcast %cst_63 : f32 to vector<8x128xf32>
    %205 = arith.subf %204, %201 : vector<8x128xf32>
    %206 = arith.select %203, %205, %201 : vector<8x128xi1>, vector<8x128xf32>
    %207 = arith.addf %169, %206 : vector<8x128xf32>
    %208 = vector.extract_strided_slice %16 {offsets = [5, 0], sizes = [1, 128], strides = [1, 1]} : vector<64x128xf32> to vector<1x128xf32>
    %209 = vector.broadcast %208 : vector<1x128xf32> to vector<8x128xf32>
    %210 = arith.subf %13, %209 : vector<8x128xf32>
    %211 = math.absf %210 : vector<8x128xf32>
    %cst_64 = arith.constant 0.327591091 : f32
    %212 = vector.broadcast %cst_64 : f32 to vector<8x128xf32>
    %213 = arith.mulf %212, %211 : vector<8x128xf32>
    %cst_65 = arith.constant 1.000000e+00 : f32
    %214 = vector.broadcast %cst_65 : f32 to vector<8x128xf32>
    %215 = arith.addf %214, %213 : vector<8x128xf32>
    %216 = tpu.reciprocal %215 {approx = true} : vector<8x128xf32> -> vector<8x128xf32>
    %217 = arith.mulf %215, %216 : vector<8x128xf32>
    %cst_66 = arith.constant 2.000000e+00 : f32
    %218 = vector.broadcast %cst_66 : f32 to vector<8x128xf32>
    %219 = arith.subf %218, %217 : vector<8x128xf32>
    %220 = arith.mulf %216, %219 : vector<8x128xf32>
    %cst_67 = arith.constant 0.53070271 : f32
    %221 = vector.broadcast %cst_67 : f32 to vector<8x128xf32>
    %222 = arith.mulf %221, %220 : vector<8x128xf32>
    %cst_68 = arith.constant -0.72657603 : f32
    %223 = vector.broadcast %cst_68 : f32 to vector<8x128xf32>
    %224 = arith.addf %222, %223 : vector<8x128xf32>
    %225 = arith.mulf %224, %220 : vector<8x128xf32>
    %cst_69 = arith.constant 0.710706889 : f32
    %226 = vector.broadcast %cst_69 : f32 to vector<8x128xf32>
    %227 = arith.addf %225, %226 : vector<8x128xf32>
    %228 = arith.mulf %227, %220 : vector<8x128xf32>
    %cst_70 = arith.constant -0.142248362 : f32
    %229 = vector.broadcast %cst_70 : f32 to vector<8x128xf32>
    %230 = arith.addf %228, %229 : vector<8x128xf32>
    %231 = arith.mulf %230, %220 : vector<8x128xf32>
    %cst_71 = arith.constant 0.127414793 : f32
    %232 = vector.broadcast %cst_71 : f32 to vector<8x128xf32>
    %233 = arith.addf %231, %232 : vector<8x128xf32>
    %234 = arith.mulf %233, %220 : vector<8x128xf32>
    %235 = arith.mulf %210, %210 : vector<8x128xf32>
    %cst_72 = arith.constant 0.000000e+00 : f32
    %236 = vector.broadcast %cst_72 : f32 to vector<8x128xf32>
    %237 = arith.subf %236, %235 : vector<8x128xf32>
    %238 = math.exp %237 : vector<8x128xf32>
    %239 = arith.mulf %234, %238 : vector<8x128xf32>
    %cst_73 = arith.constant 0.000000e+00 : f32
    %240 = vector.broadcast %cst_73 : f32 to vector<8x128xf32>
    %241 = arith.cmpf oge, %210, %240 : vector<8x128xf32>
    %cst_74 = arith.constant 1.000000e+00 : f32
    %242 = vector.broadcast %cst_74 : f32 to vector<8x128xf32>
    %243 = arith.subf %242, %239 : vector<8x128xf32>
    %244 = arith.select %241, %243, %239 : vector<8x128xi1>, vector<8x128xf32>
    %245 = arith.addf %207, %244 : vector<8x128xf32>
    %246 = vector.extract_strided_slice %16 {offsets = [6, 0], sizes = [1, 128], strides = [1, 1]} : vector<64x128xf32> to vector<1x128xf32>
    %247 = vector.broadcast %246 : vector<1x128xf32> to vector<8x128xf32>
    %248 = arith.subf %13, %247 : vector<8x128xf32>
    %249 = math.absf %248 : vector<8x128xf32>
    %cst_75 = arith.constant 0.327591091 : f32
    %250 = vector.broadcast %cst_75 : f32 to vector<8x128xf32>
    %251 = arith.mulf %250, %249 : vector<8x128xf32>
    %cst_76 = arith.constant 1.000000e+00 : f32
    %252 = vector.broadcast %cst_76 : f32 to vector<8x128xf32>
    %253 = arith.addf %252, %251 : vector<8x128xf32>
    %254 = tpu.reciprocal %253 {approx = true} : vector<8x128xf32> -> vector<8x128xf32>
    %255 = arith.mulf %253, %254 : vector<8x128xf32>
    %cst_77 = arith.constant 2.000000e+00 : f32
    %256 = vector.broadcast %cst_77 : f32 to vector<8x128xf32>
    %257 = arith.subf %256, %255 : vector<8x128xf32>
    %258 = arith.mulf %254, %257 : vector<8x128xf32>
    %cst_78 = arith.constant 0.53070271 : f32
    %259 = vector.broadcast %cst_78 : f32 to vector<8x128xf32>
    %260 = arith.mulf %259, %258 : vector<8x128xf32>
    %cst_79 = arith.constant -0.72657603 : f32
    %261 = vector.broadcast %cst_79 : f32 to vector<8x128xf32>
    %262 = arith.addf %260, %261 : vector<8x128xf32>
    %263 = arith.mulf %262, %258 : vector<8x128xf32>
    %cst_80 = arith.constant 0.710706889 : f32
    %264 = vector.broadcast %cst_80 : f32 to vector<8x128xf32>
    %265 = arith.addf %263, %264 : vector<8x128xf32>
    %266 = arith.mulf %265, %258 : vector<8x128xf32>
    %cst_81 = arith.constant -0.142248362 : f32
    %267 = vector.broadcast %cst_81 : f32 to vector<8x128xf32>
    %268 = arith.addf %266, %267 : vector<8x128xf32>
    %269 = arith.mulf %268, %258 : vector<8x128xf32>
    %cst_82 = arith.constant 0.127414793 : f32
    %270 = vector.broadcast %cst_82 : f32 to vector<8x128xf32>
    %271 = arith.addf %269, %270 : vector<8x128xf32>
    %272 = arith.mulf %271, %258 : vector<8x128xf32>
    %273 = arith.mulf %248, %248 : vector<8x128xf32>
    %cst_83 = arith.constant 0.000000e+00 : f32
    %274 = vector.broadcast %cst_83 : f32 to vector<8x128xf32>
    %275 = arith.subf %274, %273 : vector<8x128xf32>
    %276 = math.exp %275 : vector<8x128xf32>
    %277 = arith.mulf %272, %276 : vector<8x128xf32>
    %cst_84 = arith.constant 0.000000e+00 : f32
    %278 = vector.broadcast %cst_84 : f32 to vector<8x128xf32>
    %279 = arith.cmpf oge, %248, %278 : vector<8x128xf32>
    %cst_85 = arith.constant 1.000000e+00 : f32
    %280 = vector.broadcast %cst_85 : f32 to vector<8x128xf32>
    %281 = arith.subf %280, %277 : vector<8x128xf32>
    %282 = arith.select %279, %281, %277 : vector<8x128xi1>, vector<8x128xf32>
    %283 = arith.addf %245, %282 : vector<8x128xf32>
    %284 = vector.extract_strided_slice %16 {offsets = [7, 0], sizes = [1, 128], strides = [1, 1]} : vector<64x128xf32> to vector<1x128xf32>
    %285 = vector.broadcast %284 : vector<1x128xf32> to vector<8x128xf32>
    %286 = arith.subf %13, %285 : vector<8x128xf32>
    %287 = math.absf %286 : vector<8x128xf32>
    %cst_86 = arith.constant 0.327591091 : f32
    %288 = vector.broadcast %cst_86 : f32 to vector<8x128xf32>
    %289 = arith.mulf %288, %287 : vector<8x128xf32>
    %cst_87 = arith.constant 1.000000e+00 : f32
    %290 = vector.broadcast %cst_87 : f32 to vector<8x128xf32>
    %291 = arith.addf %290, %289 : vector<8x128xf32>
    %292 = tpu.reciprocal %291 {approx = true} : vector<8x128xf32> -> vector<8x128xf32>
    %293 = arith.mulf %291, %292 : vector<8x128xf32>
    %cst_88 = arith.constant 2.000000e+00 : f32
    %294 = vector.broadcast %cst_88 : f32 to vector<8x128xf32>
    %295 = arith.subf %294, %293 : vector<8x128xf32>
    %296 = arith.mulf %292, %295 : vector<8x128xf32>
    %cst_89 = arith.constant 0.53070271 : f32
    %297 = vector.broadcast %cst_89 : f32 to vector<8x128xf32>
    %298 = arith.mulf %297, %296 : vector<8x128xf32>
    %cst_90 = arith.constant -0.72657603 : f32
    %299 = vector.broadcast %cst_90 : f32 to vector<8x128xf32>
    %300 = arith.addf %298, %299 : vector<8x128xf32>
    %301 = arith.mulf %300, %296 : vector<8x128xf32>
    %cst_91 = arith.constant 0.710706889 : f32
    %302 = vector.broadcast %cst_91 : f32 to vector<8x128xf32>
    %303 = arith.addf %301, %302 : vector<8x128xf32>
    %304 = arith.mulf %303, %296 : vector<8x128xf32>
    %cst_92 = arith.constant -0.142248362 : f32
    %305 = vector.broadcast %cst_92 : f32 to vector<8x128xf32>
    %306 = arith.addf %304, %305 : vector<8x128xf32>
    %307 = arith.mulf %306, %296 : vector<8x128xf32>
    %cst_93 = arith.constant 0.127414793 : f32
    %308 = vector.broadcast %cst_93 : f32 to vector<8x128xf32>
    %309 = arith.addf %307, %308 : vector<8x128xf32>
    %310 = arith.mulf %309, %296 : vector<8x128xf32>
    %311 = arith.mulf %286, %286 : vector<8x128xf32>
    %cst_94 = arith.constant 0.000000e+00 : f32
    %312 = vector.broadcast %cst_94 : f32 to vector<8x128xf32>
    %313 = arith.subf %312, %311 : vector<8x128xf32>
    %314 = math.exp %313 : vector<8x128xf32>
    %315 = arith.mulf %310, %314 : vector<8x128xf32>
    %cst_95 = arith.constant 0.000000e+00 : f32
    %316 = vector.broadcast %cst_95 : f32 to vector<8x128xf32>
    %317 = arith.cmpf oge, %286, %316 : vector<8x128xf32>
    %cst_96 = arith.constant 1.000000e+00 : f32
    %318 = vector.broadcast %cst_96 : f32 to vector<8x128xf32>
    %319 = arith.subf %318, %315 : vector<8x128xf32>
    %320 = arith.select %317, %319, %315 : vector<8x128xi1>, vector<8x128xf32>
    %321 = arith.addf %283, %320 : vector<8x128xf32>
    %322 = vector.extract_strided_slice %16 {offsets = [8, 0], sizes = [1, 128], strides = [1, 1]} : vector<64x128xf32> to vector<1x128xf32>
    %323 = vector.broadcast %322 : vector<1x128xf32> to vector<8x128xf32>
    %324 = arith.subf %13, %323 : vector<8x128xf32>
    %325 = math.absf %324 : vector<8x128xf32>
    %cst_97 = arith.constant 0.327591091 : f32
    %326 = vector.broadcast %cst_97 : f32 to vector<8x128xf32>
    %327 = arith.mulf %326, %325 : vector<8x128xf32>
    %cst_98 = arith.constant 1.000000e+00 : f32
    %328 = vector.broadcast %cst_98 : f32 to vector<8x128xf32>
    %329 = arith.addf %328, %327 : vector<8x128xf32>
    %330 = tpu.reciprocal %329 {approx = true} : vector<8x128xf32> -> vector<8x128xf32>
    %331 = arith.mulf %329, %330 : vector<8x128xf32>
    %cst_99 = arith.constant 2.000000e+00 : f32
    %332 = vector.broadcast %cst_99 : f32 to vector<8x128xf32>
    %333 = arith.subf %332, %331 : vector<8x128xf32>
    %334 = arith.mulf %330, %333 : vector<8x128xf32>
    %cst_100 = arith.constant 0.53070271 : f32
    %335 = vector.broadcast %cst_100 : f32 to vector<8x128xf32>
    %336 = arith.mulf %335, %334 : vector<8x128xf32>
    %cst_101 = arith.constant -0.72657603 : f32
    %337 = vector.broadcast %cst_101 : f32 to vector<8x128xf32>
    %338 = arith.addf %336, %337 : vector<8x128xf32>
    %339 = arith.mulf %338, %334 : vector<8x128xf32>
    %cst_102 = arith.constant 0.710706889 : f32
    %340 = vector.broadcast %cst_102 : f32 to vector<8x128xf32>
    %341 = arith.addf %339, %340 : vector<8x128xf32>
    %342 = arith.mulf %341, %334 : vector<8x128xf32>
    %cst_103 = arith.constant -0.142248362 : f32
    %343 = vector.broadcast %cst_103 : f32 to vector<8x128xf32>
    %344 = arith.addf %342, %343 : vector<8x128xf32>
    %345 = arith.mulf %344, %334 : vector<8x128xf32>
    %cst_104 = arith.constant 0.127414793 : f32
    %346 = vector.broadcast %cst_104 : f32 to vector<8x128xf32>
    %347 = arith.addf %345, %346 : vector<8x128xf32>
    %348 = arith.mulf %347, %334 : vector<8x128xf32>
    %349 = arith.mulf %324, %324 : vector<8x128xf32>
    %cst_105 = arith.constant 0.000000e+00 : f32
    %350 = vector.broadcast %cst_105 : f32 to vector<8x128xf32>
    %351 = arith.subf %350, %349 : vector<8x128xf32>
    %352 = math.exp %351 : vector<8x128xf32>
    %353 = arith.mulf %348, %352 : vector<8x128xf32>
    %cst_106 = arith.constant 0.000000e+00 : f32
    %354 = vector.broadcast %cst_106 : f32 to vector<8x128xf32>
    %355 = arith.cmpf oge, %324, %354 : vector<8x128xf32>
    %cst_107 = arith.constant 1.000000e+00 : f32
    %356 = vector.broadcast %cst_107 : f32 to vector<8x128xf32>
    %357 = arith.subf %356, %353 : vector<8x128xf32>
    %358 = arith.select %355, %357, %353 : vector<8x128xi1>, vector<8x128xf32>
    %359 = arith.addf %321, %358 : vector<8x128xf32>
    %360 = vector.extract_strided_slice %16 {offsets = [9, 0], sizes = [1, 128], strides = [1, 1]} : vector<64x128xf32> to vector<1x128xf32>
    %361 = vector.broadcast %360 : vector<1x128xf32> to vector<8x128xf32>
    %362 = arith.subf %13, %361 : vector<8x128xf32>
    %363 = math.absf %362 : vector<8x128xf32>
    %cst_108 = arith.constant 0.327591091 : f32
    %364 = vector.broadcast %cst_108 : f32 to vector<8x128xf32>
    %365 = arith.mulf %364, %363 : vector<8x128xf32>
    %cst_109 = arith.constant 1.000000e+00 : f32
    %366 = vector.broadcast %cst_109 : f32 to vector<8x128xf32>
    %367 = arith.addf %366, %365 : vector<8x128xf32>
    %368 = tpu.reciprocal %367 {approx = true} : vector<8x128xf32> -> vector<8x128xf32>
    %369 = arith.mulf %367, %368 : vector<8x128xf32>
    %cst_110 = arith.constant 2.000000e+00 : f32
    %370 = vector.broadcast %cst_110 : f32 to vector<8x128xf32>
    %371 = arith.subf %370, %369 : vector<8x128xf32>
    %372 = arith.mulf %368, %371 : vector<8x128xf32>
    %cst_111 = arith.constant 0.53070271 : f32
    %373 = vector.broadcast %cst_111 : f32 to vector<8x128xf32>
    %374 = arith.mulf %373, %372 : vector<8x128xf32>
    %cst_112 = arith.constant -0.72657603 : f32
    %375 = vector.broadcast %cst_112 : f32 to vector<8x128xf32>
    %376 = arith.addf %374, %375 : vector<8x128xf32>
    %377 = arith.mulf %376, %372 : vector<8x128xf32>
    %cst_113 = arith.constant 0.710706889 : f32
    %378 = vector.broadcast %cst_113 : f32 to vector<8x128xf32>
    %379 = arith.addf %377, %378 : vector<8x128xf32>
    %380 = arith.mulf %379, %372 : vector<8x128xf32>
    %cst_114 = arith.constant -0.142248362 : f32
    %381 = vector.broadcast %cst_114 : f32 to vector<8x128xf32>
    %382 = arith.addf %380, %381 : vector<8x128xf32>
    %383 = arith.mulf %382, %372 : vector<8x128xf32>
    %cst_115 = arith.constant 0.127414793 : f32
    %384 = vector.broadcast %cst_115 : f32 to vector<8x128xf32>
    %385 = arith.addf %383, %384 : vector<8x128xf32>
    %386 = arith.mulf %385, %372 : vector<8x128xf32>
    %387 = arith.mulf %362, %362 : vector<8x128xf32>
    %cst_116 = arith.constant 0.000000e+00 : f32
    %388 = vector.broadcast %cst_116 : f32 to vector<8x128xf32>
    %389 = arith.subf %388, %387 : vector<8x128xf32>
    %390 = math.exp %389 : vector<8x128xf32>
    %391 = arith.mulf %386, %390 : vector<8x128xf32>
    %cst_117 = arith.constant 0.000000e+00 : f32
    %392 = vector.broadcast %cst_117 : f32 to vector<8x128xf32>
    %393 = arith.cmpf oge, %362, %392 : vector<8x128xf32>
    %cst_118 = arith.constant 1.000000e+00 : f32
    %394 = vector.broadcast %cst_118 : f32 to vector<8x128xf32>
    %395 = arith.subf %394, %391 : vector<8x128xf32>
    %396 = arith.select %393, %395, %391 : vector<8x128xi1>, vector<8x128xf32>
    %397 = arith.addf %359, %396 : vector<8x128xf32>
    %398 = vector.extract_strided_slice %16 {offsets = [10, 0], sizes = [1, 128], strides = [1, 1]} : vector<64x128xf32> to vector<1x128xf32>
    %399 = vector.broadcast %398 : vector<1x128xf32> to vector<8x128xf32>
    %400 = arith.subf %13, %399 : vector<8x128xf32>
    %401 = math.absf %400 : vector<8x128xf32>
    %cst_119 = arith.constant 0.327591091 : f32
    %402 = vector.broadcast %cst_119 : f32 to vector<8x128xf32>
    %403 = arith.mulf %402, %401 : vector<8x128xf32>
    %cst_120 = arith.constant 1.000000e+00 : f32
    %404 = vector.broadcast %cst_120 : f32 to vector<8x128xf32>
    %405 = arith.addf %404, %403 : vector<8x128xf32>
    %406 = tpu.reciprocal %405 {approx = true} : vector<8x128xf32> -> vector<8x128xf32>
    %407 = arith.mulf %405, %406 : vector<8x128xf32>
    %cst_121 = arith.constant 2.000000e+00 : f32
    %408 = vector.broadcast %cst_121 : f32 to vector<8x128xf32>
    %409 = arith.subf %408, %407 : vector<8x128xf32>
    %410 = arith.mulf %406, %409 : vector<8x128xf32>
    %cst_122 = arith.constant 0.53070271 : f32
    %411 = vector.broadcast %cst_122 : f32 to vector<8x128xf32>
    %412 = arith.mulf %411, %410 : vector<8x128xf32>
    %cst_123 = arith.constant -0.72657603 : f32
    %413 = vector.broadcast %cst_123 : f32 to vector<8x128xf32>
    %414 = arith.addf %412, %413 : vector<8x128xf32>
    %415 = arith.mulf %414, %410 : vector<8x128xf32>
    %cst_124 = arith.constant 0.710706889 : f32
    %416 = vector.broadcast %cst_124 : f32 to vector<8x128xf32>
    %417 = arith.addf %415, %416 : vector<8x128xf32>
    %418 = arith.mulf %417, %410 : vector<8x128xf32>
    %cst_125 = arith.constant -0.142248362 : f32
    %419 = vector.broadcast %cst_125 : f32 to vector<8x128xf32>
    %420 = arith.addf %418, %419 : vector<8x128xf32>
    %421 = arith.mulf %420, %410 : vector<8x128xf32>
    %cst_126 = arith.constant 0.127414793 : f32
    %422 = vector.broadcast %cst_126 : f32 to vector<8x128xf32>
    %423 = arith.addf %421, %422 : vector<8x128xf32>
    %424 = arith.mulf %423, %410 : vector<8x128xf32>
    %425 = arith.mulf %400, %400 : vector<8x128xf32>
    %cst_127 = arith.constant 0.000000e+00 : f32
    %426 = vector.broadcast %cst_127 : f32 to vector<8x128xf32>
    %427 = arith.subf %426, %425 : vector<8x128xf32>
    %428 = math.exp %427 : vector<8x128xf32>
    %429 = arith.mulf %424, %428 : vector<8x128xf32>
    %cst_128 = arith.constant 0.000000e+00 : f32
    %430 = vector.broadcast %cst_128 : f32 to vector<8x128xf32>
    %431 = arith.cmpf oge, %400, %430 : vector<8x128xf32>
    %cst_129 = arith.constant 1.000000e+00 : f32
    %432 = vector.broadcast %cst_129 : f32 to vector<8x128xf32>
    %433 = arith.subf %432, %429 : vector<8x128xf32>
    %434 = arith.select %431, %433, %429 : vector<8x128xi1>, vector<8x128xf32>
    %435 = arith.addf %397, %434 : vector<8x128xf32>
    %436 = vector.extract_strided_slice %16 {offsets = [11, 0], sizes = [1, 128], strides = [1, 1]} : vector<64x128xf32> to vector<1x128xf32>
    %437 = vector.broadcast %436 : vector<1x128xf32> to vector<8x128xf32>
    %438 = arith.subf %13, %437 : vector<8x128xf32>
    %439 = math.absf %438 : vector<8x128xf32>
    %cst_130 = arith.constant 0.327591091 : f32
    %440 = vector.broadcast %cst_130 : f32 to vector<8x128xf32>
    %441 = arith.mulf %440, %439 : vector<8x128xf32>
    %cst_131 = arith.constant 1.000000e+00 : f32
    %442 = vector.broadcast %cst_131 : f32 to vector<8x128xf32>
    %443 = arith.addf %442, %441 : vector<8x128xf32>
    %444 = tpu.reciprocal %443 {approx = true} : vector<8x128xf32> -> vector<8x128xf32>
    %445 = arith.mulf %443, %444 : vector<8x128xf32>
    %cst_132 = arith.constant 2.000000e+00 : f32
    %446 = vector.broadcast %cst_132 : f32 to vector<8x128xf32>
    %447 = arith.subf %446, %445 : vector<8x128xf32>
    %448 = arith.mulf %444, %447 : vector<8x128xf32>
    %cst_133 = arith.constant 0.53070271 : f32
    %449 = vector.broadcast %cst_133 : f32 to vector<8x128xf32>
    %450 = arith.mulf %449, %448 : vector<8x128xf32>
    %cst_134 = arith.constant -0.72657603 : f32
    %451 = vector.broadcast %cst_134 : f32 to vector<8x128xf32>
    %452 = arith.addf %450, %451 : vector<8x128xf32>
    %453 = arith.mulf %452, %448 : vector<8x128xf32>
    %cst_135 = arith.constant 0.710706889 : f32
    %454 = vector.broadcast %cst_135 : f32 to vector<8x128xf32>
    %455 = arith.addf %453, %454 : vector<8x128xf32>
    %456 = arith.mulf %455, %448 : vector<8x128xf32>
    %cst_136 = arith.constant -0.142248362 : f32
    %457 = vector.broadcast %cst_136 : f32 to vector<8x128xf32>
    %458 = arith.addf %456, %457 : vector<8x128xf32>
    %459 = arith.mulf %458, %448 : vector<8x128xf32>
    %cst_137 = arith.constant 0.127414793 : f32
    %460 = vector.broadcast %cst_137 : f32 to vector<8x128xf32>
    %461 = arith.addf %459, %460 : vector<8x128xf32>
    %462 = arith.mulf %461, %448 : vector<8x128xf32>
    %463 = arith.mulf %438, %438 : vector<8x128xf32>
    %cst_138 = arith.constant 0.000000e+00 : f32
    %464 = vector.broadcast %cst_138 : f32 to vector<8x128xf32>
    %465 = arith.subf %464, %463 : vector<8x128xf32>
    %466 = math.exp %465 : vector<8x128xf32>
    %467 = arith.mulf %462, %466 : vector<8x128xf32>
    %cst_139 = arith.constant 0.000000e+00 : f32
    %468 = vector.broadcast %cst_139 : f32 to vector<8x128xf32>
    %469 = arith.cmpf oge, %438, %468 : vector<8x128xf32>
    %cst_140 = arith.constant 1.000000e+00 : f32
    %470 = vector.broadcast %cst_140 : f32 to vector<8x128xf32>
    %471 = arith.subf %470, %467 : vector<8x128xf32>
    %472 = arith.select %469, %471, %467 : vector<8x128xi1>, vector<8x128xf32>
    %473 = arith.addf %435, %472 : vector<8x128xf32>
    %474 = vector.extract_strided_slice %16 {offsets = [12, 0], sizes = [1, 128], strides = [1, 1]} : vector<64x128xf32> to vector<1x128xf32>
    %475 = vector.broadcast %474 : vector<1x128xf32> to vector<8x128xf32>
    %476 = arith.subf %13, %475 : vector<8x128xf32>
    %477 = math.absf %476 : vector<8x128xf32>
    %cst_141 = arith.constant 0.327591091 : f32
    %478 = vector.broadcast %cst_141 : f32 to vector<8x128xf32>
    %479 = arith.mulf %478, %477 : vector<8x128xf32>
    %cst_142 = arith.constant 1.000000e+00 : f32
    %480 = vector.broadcast %cst_142 : f32 to vector<8x128xf32>
    %481 = arith.addf %480, %479 : vector<8x128xf32>
    %482 = tpu.reciprocal %481 {approx = true} : vector<8x128xf32> -> vector<8x128xf32>
    %483 = arith.mulf %481, %482 : vector<8x128xf32>
    %cst_143 = arith.constant 2.000000e+00 : f32
    %484 = vector.broadcast %cst_143 : f32 to vector<8x128xf32>
    %485 = arith.subf %484, %483 : vector<8x128xf32>
    %486 = arith.mulf %482, %485 : vector<8x128xf32>
    %cst_144 = arith.constant 0.53070271 : f32
    %487 = vector.broadcast %cst_144 : f32 to vector<8x128xf32>
    %488 = arith.mulf %487, %486 : vector<8x128xf32>
    %cst_145 = arith.constant -0.72657603 : f32
    %489 = vector.broadcast %cst_145 : f32 to vector<8x128xf32>
    %490 = arith.addf %488, %489 : vector<8x128xf32>
    %491 = arith.mulf %490, %486 : vector<8x128xf32>
    %cst_146 = arith.constant 0.710706889 : f32
    %492 = vector.broadcast %cst_146 : f32 to vector<8x128xf32>
    %493 = arith.addf %491, %492 : vector<8x128xf32>
    %494 = arith.mulf %493, %486 : vector<8x128xf32>
    %cst_147 = arith.constant -0.142248362 : f32
    %495 = vector.broadcast %cst_147 : f32 to vector<8x128xf32>
    %496 = arith.addf %494, %495 : vector<8x128xf32>
    %497 = arith.mulf %496, %486 : vector<8x128xf32>
    %cst_148 = arith.constant 0.127414793 : f32
    %498 = vector.broadcast %cst_148 : f32 to vector<8x128xf32>
    %499 = arith.addf %497, %498 : vector<8x128xf32>
    %500 = arith.mulf %499, %486 : vector<8x128xf32>
    %501 = arith.mulf %476, %476 : vector<8x128xf32>
    %cst_149 = arith.constant 0.000000e+00 : f32
    %502 = vector.broadcast %cst_149 : f32 to vector<8x128xf32>
    %503 = arith.subf %502, %501 : vector<8x128xf32>
    %504 = math.exp %503 : vector<8x128xf32>
    %505 = arith.mulf %500, %504 : vector<8x128xf32>
    %cst_150 = arith.constant 0.000000e+00 : f32
    %506 = vector.broadcast %cst_150 : f32 to vector<8x128xf32>
    %507 = arith.cmpf oge, %476, %506 : vector<8x128xf32>
    %cst_151 = arith.constant 1.000000e+00 : f32
    %508 = vector.broadcast %cst_151 : f32 to vector<8x128xf32>
    %509 = arith.subf %508, %505 : vector<8x128xf32>
    %510 = arith.select %507, %509, %505 : vector<8x128xi1>, vector<8x128xf32>
    %511 = arith.addf %473, %510 : vector<8x128xf32>
    %512 = vector.extract_strided_slice %16 {offsets = [13, 0], sizes = [1, 128], strides = [1, 1]} : vector<64x128xf32> to vector<1x128xf32>
    %513 = vector.broadcast %512 : vector<1x128xf32> to vector<8x128xf32>
    %514 = arith.subf %13, %513 : vector<8x128xf32>
    %515 = math.absf %514 : vector<8x128xf32>
    %cst_152 = arith.constant 0.327591091 : f32
    %516 = vector.broadcast %cst_152 : f32 to vector<8x128xf32>
    %517 = arith.mulf %516, %515 : vector<8x128xf32>
    %cst_153 = arith.constant 1.000000e+00 : f32
    %518 = vector.broadcast %cst_153 : f32 to vector<8x128xf32>
    %519 = arith.addf %518, %517 : vector<8x128xf32>
    %520 = tpu.reciprocal %519 {approx = true} : vector<8x128xf32> -> vector<8x128xf32>
    %521 = arith.mulf %519, %520 : vector<8x128xf32>
    %cst_154 = arith.constant 2.000000e+00 : f32
    %522 = vector.broadcast %cst_154 : f32 to vector<8x128xf32>
    %523 = arith.subf %522, %521 : vector<8x128xf32>
    %524 = arith.mulf %520, %523 : vector<8x128xf32>
    %cst_155 = arith.constant 0.53070271 : f32
    %525 = vector.broadcast %cst_155 : f32 to vector<8x128xf32>
    %526 = arith.mulf %525, %524 : vector<8x128xf32>
    %cst_156 = arith.constant -0.72657603 : f32
    %527 = vector.broadcast %cst_156 : f32 to vector<8x128xf32>
    %528 = arith.addf %526, %527 : vector<8x128xf32>
    %529 = arith.mulf %528, %524 : vector<8x128xf32>
    %cst_157 = arith.constant 0.710706889 : f32
    %530 = vector.broadcast %cst_157 : f32 to vector<8x128xf32>
    %531 = arith.addf %529, %530 : vector<8x128xf32>
    %532 = arith.mulf %531, %524 : vector<8x128xf32>
    %cst_158 = arith.constant -0.142248362 : f32
    %533 = vector.broadcast %cst_158 : f32 to vector<8x128xf32>
    %534 = arith.addf %532, %533 : vector<8x128xf32>
    %535 = arith.mulf %534, %524 : vector<8x128xf32>
    %cst_159 = arith.constant 0.127414793 : f32
    %536 = vector.broadcast %cst_159 : f32 to vector<8x128xf32>
    %537 = arith.addf %535, %536 : vector<8x128xf32>
    %538 = arith.mulf %537, %524 : vector<8x128xf32>
    %539 = arith.mulf %514, %514 : vector<8x128xf32>
    %cst_160 = arith.constant 0.000000e+00 : f32
    %540 = vector.broadcast %cst_160 : f32 to vector<8x128xf32>
    %541 = arith.subf %540, %539 : vector<8x128xf32>
    %542 = math.exp %541 : vector<8x128xf32>
    %543 = arith.mulf %538, %542 : vector<8x128xf32>
    %cst_161 = arith.constant 0.000000e+00 : f32
    %544 = vector.broadcast %cst_161 : f32 to vector<8x128xf32>
    %545 = arith.cmpf oge, %514, %544 : vector<8x128xf32>
    %cst_162 = arith.constant 1.000000e+00 : f32
    %546 = vector.broadcast %cst_162 : f32 to vector<8x128xf32>
    %547 = arith.subf %546, %543 : vector<8x128xf32>
    %548 = arith.select %545, %547, %543 : vector<8x128xi1>, vector<8x128xf32>
    %549 = arith.addf %511, %548 : vector<8x128xf32>
    %550 = vector.extract_strided_slice %16 {offsets = [14, 0], sizes = [1, 128], strides = [1, 1]} : vector<64x128xf32> to vector<1x128xf32>
    %551 = vector.broadcast %550 : vector<1x128xf32> to vector<8x128xf32>
    %552 = arith.subf %13, %551 : vector<8x128xf32>
    %553 = math.absf %552 : vector<8x128xf32>
    %cst_163 = arith.constant 0.327591091 : f32
    %554 = vector.broadcast %cst_163 : f32 to vector<8x128xf32>
    %555 = arith.mulf %554, %553 : vector<8x128xf32>
    %cst_164 = arith.constant 1.000000e+00 : f32
    %556 = vector.broadcast %cst_164 : f32 to vector<8x128xf32>
    %557 = arith.addf %556, %555 : vector<8x128xf32>
    %558 = tpu.reciprocal %557 {approx = true} : vector<8x128xf32> -> vector<8x128xf32>
    %559 = arith.mulf %557, %558 : vector<8x128xf32>
    %cst_165 = arith.constant 2.000000e+00 : f32
    %560 = vector.broadcast %cst_165 : f32 to vector<8x128xf32>
    %561 = arith.subf %560, %559 : vector<8x128xf32>
    %562 = arith.mulf %558, %561 : vector<8x128xf32>
    %cst_166 = arith.constant 0.53070271 : f32
    %563 = vector.broadcast %cst_166 : f32 to vector<8x128xf32>
    %564 = arith.mulf %563, %562 : vector<8x128xf32>
    %cst_167 = arith.constant -0.72657603 : f32
    %565 = vector.broadcast %cst_167 : f32 to vector<8x128xf32>
    %566 = arith.addf %564, %565 : vector<8x128xf32>
    %567 = arith.mulf %566, %562 : vector<8x128xf32>
    %cst_168 = arith.constant 0.710706889 : f32
    %568 = vector.broadcast %cst_168 : f32 to vector<8x128xf32>
    %569 = arith.addf %567, %568 : vector<8x128xf32>
    %570 = arith.mulf %569, %562 : vector<8x128xf32>
    %cst_169 = arith.constant -0.142248362 : f32
    %571 = vector.broadcast %cst_169 : f32 to vector<8x128xf32>
    %572 = arith.addf %570, %571 : vector<8x128xf32>
    %573 = arith.mulf %572, %562 : vector<8x128xf32>
    %cst_170 = arith.constant 0.127414793 : f32
    %574 = vector.broadcast %cst_170 : f32 to vector<8x128xf32>
    %575 = arith.addf %573, %574 : vector<8x128xf32>
    %576 = arith.mulf %575, %562 : vector<8x128xf32>
    %577 = arith.mulf %552, %552 : vector<8x128xf32>
    %cst_171 = arith.constant 0.000000e+00 : f32
    %578 = vector.broadcast %cst_171 : f32 to vector<8x128xf32>
    %579 = arith.subf %578, %577 : vector<8x128xf32>
    %580 = math.exp %579 : vector<8x128xf32>
    %581 = arith.mulf %576, %580 : vector<8x128xf32>
    %cst_172 = arith.constant 0.000000e+00 : f32
    %582 = vector.broadcast %cst_172 : f32 to vector<8x128xf32>
    %583 = arith.cmpf oge, %552, %582 : vector<8x128xf32>
    %cst_173 = arith.constant 1.000000e+00 : f32
    %584 = vector.broadcast %cst_173 : f32 to vector<8x128xf32>
    %585 = arith.subf %584, %581 : vector<8x128xf32>
    %586 = arith.select %583, %585, %581 : vector<8x128xi1>, vector<8x128xf32>
    %587 = arith.addf %549, %586 : vector<8x128xf32>
    %588 = vector.extract_strided_slice %16 {offsets = [15, 0], sizes = [1, 128], strides = [1, 1]} : vector<64x128xf32> to vector<1x128xf32>
    %589 = vector.broadcast %588 : vector<1x128xf32> to vector<8x128xf32>
    %590 = arith.subf %13, %589 : vector<8x128xf32>
    %591 = math.absf %590 : vector<8x128xf32>
    %cst_174 = arith.constant 0.327591091 : f32
    %592 = vector.broadcast %cst_174 : f32 to vector<8x128xf32>
    %593 = arith.mulf %592, %591 : vector<8x128xf32>
    %cst_175 = arith.constant 1.000000e+00 : f32
    %594 = vector.broadcast %cst_175 : f32 to vector<8x128xf32>
    %595 = arith.addf %594, %593 : vector<8x128xf32>
    %596 = tpu.reciprocal %595 {approx = true} : vector<8x128xf32> -> vector<8x128xf32>
    %597 = arith.mulf %595, %596 : vector<8x128xf32>
    %cst_176 = arith.constant 2.000000e+00 : f32
    %598 = vector.broadcast %cst_176 : f32 to vector<8x128xf32>
    %599 = arith.subf %598, %597 : vector<8x128xf32>
    %600 = arith.mulf %596, %599 : vector<8x128xf32>
    %cst_177 = arith.constant 0.53070271 : f32
    %601 = vector.broadcast %cst_177 : f32 to vector<8x128xf32>
    %602 = arith.mulf %601, %600 : vector<8x128xf32>
    %cst_178 = arith.constant -0.72657603 : f32
    %603 = vector.broadcast %cst_178 : f32 to vector<8x128xf32>
    %604 = arith.addf %602, %603 : vector<8x128xf32>
    %605 = arith.mulf %604, %600 : vector<8x128xf32>
    %cst_179 = arith.constant 0.710706889 : f32
    %606 = vector.broadcast %cst_179 : f32 to vector<8x128xf32>
    %607 = arith.addf %605, %606 : vector<8x128xf32>
    %608 = arith.mulf %607, %600 : vector<8x128xf32>
    %cst_180 = arith.constant -0.142248362 : f32
    %609 = vector.broadcast %cst_180 : f32 to vector<8x128xf32>
    %610 = arith.addf %608, %609 : vector<8x128xf32>
    %611 = arith.mulf %610, %600 : vector<8x128xf32>
    %cst_181 = arith.constant 0.127414793 : f32
    %612 = vector.broadcast %cst_181 : f32 to vector<8x128xf32>
    %613 = arith.addf %611, %612 : vector<8x128xf32>
    %614 = arith.mulf %613, %600 : vector<8x128xf32>
    %615 = arith.mulf %590, %590 : vector<8x128xf32>
    %cst_182 = arith.constant 0.000000e+00 : f32
    %616 = vector.broadcast %cst_182 : f32 to vector<8x128xf32>
    %617 = arith.subf %616, %615 : vector<8x128xf32>
    %618 = math.exp %617 : vector<8x128xf32>
    %619 = arith.mulf %614, %618 : vector<8x128xf32>
    %cst_183 = arith.constant 0.000000e+00 : f32
    %620 = vector.broadcast %cst_183 : f32 to vector<8x128xf32>
    %621 = arith.cmpf oge, %590, %620 : vector<8x128xf32>
    %cst_184 = arith.constant 1.000000e+00 : f32
    %622 = vector.broadcast %cst_184 : f32 to vector<8x128xf32>
    %623 = arith.subf %622, %619 : vector<8x128xf32>
    %624 = arith.select %621, %623, %619 : vector<8x128xi1>, vector<8x128xf32>
    %625 = arith.addf %587, %624 : vector<8x128xf32>
    %626 = vector.extract_strided_slice %16 {offsets = [16, 0], sizes = [1, 128], strides = [1, 1]} : vector<64x128xf32> to vector<1x128xf32>
    %627 = vector.broadcast %626 : vector<1x128xf32> to vector<8x128xf32>
    %628 = arith.subf %13, %627 : vector<8x128xf32>
    %629 = math.absf %628 : vector<8x128xf32>
    %cst_185 = arith.constant 0.327591091 : f32
    %630 = vector.broadcast %cst_185 : f32 to vector<8x128xf32>
    %631 = arith.mulf %630, %629 : vector<8x128xf32>
    %cst_186 = arith.constant 1.000000e+00 : f32
    %632 = vector.broadcast %cst_186 : f32 to vector<8x128xf32>
    %633 = arith.addf %632, %631 : vector<8x128xf32>
    %634 = tpu.reciprocal %633 {approx = true} : vector<8x128xf32> -> vector<8x128xf32>
    %635 = arith.mulf %633, %634 : vector<8x128xf32>
    %cst_187 = arith.constant 2.000000e+00 : f32
    %636 = vector.broadcast %cst_187 : f32 to vector<8x128xf32>
    %637 = arith.subf %636, %635 : vector<8x128xf32>
    %638 = arith.mulf %634, %637 : vector<8x128xf32>
    %cst_188 = arith.constant 0.53070271 : f32
    %639 = vector.broadcast %cst_188 : f32 to vector<8x128xf32>
    %640 = arith.mulf %639, %638 : vector<8x128xf32>
    %cst_189 = arith.constant -0.72657603 : f32
    %641 = vector.broadcast %cst_189 : f32 to vector<8x128xf32>
    %642 = arith.addf %640, %641 : vector<8x128xf32>
    %643 = arith.mulf %642, %638 : vector<8x128xf32>
    %cst_190 = arith.constant 0.710706889 : f32
    %644 = vector.broadcast %cst_190 : f32 to vector<8x128xf32>
    %645 = arith.addf %643, %644 : vector<8x128xf32>
    %646 = arith.mulf %645, %638 : vector<8x128xf32>
    %cst_191 = arith.constant -0.142248362 : f32
    %647 = vector.broadcast %cst_191 : f32 to vector<8x128xf32>
    %648 = arith.addf %646, %647 : vector<8x128xf32>
    %649 = arith.mulf %648, %638 : vector<8x128xf32>
    %cst_192 = arith.constant 0.127414793 : f32
    %650 = vector.broadcast %cst_192 : f32 to vector<8x128xf32>
    %651 = arith.addf %649, %650 : vector<8x128xf32>
    %652 = arith.mulf %651, %638 : vector<8x128xf32>
    %653 = arith.mulf %628, %628 : vector<8x128xf32>
    %cst_193 = arith.constant 0.000000e+00 : f32
    %654 = vector.broadcast %cst_193 : f32 to vector<8x128xf32>
    %655 = arith.subf %654, %653 : vector<8x128xf32>
    %656 = math.exp %655 : vector<8x128xf32>
    %657 = arith.mulf %652, %656 : vector<8x128xf32>
    %cst_194 = arith.constant 0.000000e+00 : f32
    %658 = vector.broadcast %cst_194 : f32 to vector<8x128xf32>
    %659 = arith.cmpf oge, %628, %658 : vector<8x128xf32>
    %cst_195 = arith.constant 1.000000e+00 : f32
    %660 = vector.broadcast %cst_195 : f32 to vector<8x128xf32>
    %661 = arith.subf %660, %657 : vector<8x128xf32>
    %662 = arith.select %659, %661, %657 : vector<8x128xi1>, vector<8x128xf32>
    %663 = arith.addf %625, %662 : vector<8x128xf32>
    %664 = vector.extract_strided_slice %16 {offsets = [17, 0], sizes = [1, 128], strides = [1, 1]} : vector<64x128xf32> to vector<1x128xf32>
    %665 = vector.broadcast %664 : vector<1x128xf32> to vector<8x128xf32>
    %666 = arith.subf %13, %665 : vector<8x128xf32>
    %667 = math.absf %666 : vector<8x128xf32>
    %cst_196 = arith.constant 0.327591091 : f32
    %668 = vector.broadcast %cst_196 : f32 to vector<8x128xf32>
    %669 = arith.mulf %668, %667 : vector<8x128xf32>
    %cst_197 = arith.constant 1.000000e+00 : f32
    %670 = vector.broadcast %cst_197 : f32 to vector<8x128xf32>
    %671 = arith.addf %670, %669 : vector<8x128xf32>
    %672 = tpu.reciprocal %671 {approx = true} : vector<8x128xf32> -> vector<8x128xf32>
    %673 = arith.mulf %671, %672 : vector<8x128xf32>
    %cst_198 = arith.constant 2.000000e+00 : f32
    %674 = vector.broadcast %cst_198 : f32 to vector<8x128xf32>
    %675 = arith.subf %674, %673 : vector<8x128xf32>
    %676 = arith.mulf %672, %675 : vector<8x128xf32>
    %cst_199 = arith.constant 0.53070271 : f32
    %677 = vector.broadcast %cst_199 : f32 to vector<8x128xf32>
    %678 = arith.mulf %677, %676 : vector<8x128xf32>
    %cst_200 = arith.constant -0.72657603 : f32
    %679 = vector.broadcast %cst_200 : f32 to vector<8x128xf32>
    %680 = arith.addf %678, %679 : vector<8x128xf32>
    %681 = arith.mulf %680, %676 : vector<8x128xf32>
    %cst_201 = arith.constant 0.710706889 : f32
    %682 = vector.broadcast %cst_201 : f32 to vector<8x128xf32>
    %683 = arith.addf %681, %682 : vector<8x128xf32>
    %684 = arith.mulf %683, %676 : vector<8x128xf32>
    %cst_202 = arith.constant -0.142248362 : f32
    %685 = vector.broadcast %cst_202 : f32 to vector<8x128xf32>
    %686 = arith.addf %684, %685 : vector<8x128xf32>
    %687 = arith.mulf %686, %676 : vector<8x128xf32>
    %cst_203 = arith.constant 0.127414793 : f32
    %688 = vector.broadcast %cst_203 : f32 to vector<8x128xf32>
    %689 = arith.addf %687, %688 : vector<8x128xf32>
    %690 = arith.mulf %689, %676 : vector<8x128xf32>
    %691 = arith.mulf %666, %666 : vector<8x128xf32>
    %cst_204 = arith.constant 0.000000e+00 : f32
    %692 = vector.broadcast %cst_204 : f32 to vector<8x128xf32>
    %693 = arith.subf %692, %691 : vector<8x128xf32>
    %694 = math.exp %693 : vector<8x128xf32>
    %695 = arith.mulf %690, %694 : vector<8x128xf32>
    %cst_205 = arith.constant 0.000000e+00 : f32
    %696 = vector.broadcast %cst_205 : f32 to vector<8x128xf32>
    %697 = arith.cmpf oge, %666, %696 : vector<8x128xf32>
    %cst_206 = arith.constant 1.000000e+00 : f32
    %698 = vector.broadcast %cst_206 : f32 to vector<8x128xf32>
    %699 = arith.subf %698, %695 : vector<8x128xf32>
    %700 = arith.select %697, %699, %695 : vector<8x128xi1>, vector<8x128xf32>
    %701 = arith.addf %663, %700 : vector<8x128xf32>
    %702 = vector.extract_strided_slice %16 {offsets = [18, 0], sizes = [1, 128], strides = [1, 1]} : vector<64x128xf32> to vector<1x128xf32>
    %703 = vector.broadcast %702 : vector<1x128xf32> to vector<8x128xf32>
    %704 = arith.subf %13, %703 : vector<8x128xf32>
    %705 = math.absf %704 : vector<8x128xf32>
    %cst_207 = arith.constant 0.327591091 : f32
    %706 = vector.broadcast %cst_207 : f32 to vector<8x128xf32>
    %707 = arith.mulf %706, %705 : vector<8x128xf32>
    %cst_208 = arith.constant 1.000000e+00 : f32
    %708 = vector.broadcast %cst_208 : f32 to vector<8x128xf32>
    %709 = arith.addf %708, %707 : vector<8x128xf32>
    %710 = tpu.reciprocal %709 {approx = true} : vector<8x128xf32> -> vector<8x128xf32>
    %711 = arith.mulf %709, %710 : vector<8x128xf32>
    %cst_209 = arith.constant 2.000000e+00 : f32
    %712 = vector.broadcast %cst_209 : f32 to vector<8x128xf32>
    %713 = arith.subf %712, %711 : vector<8x128xf32>
    %714 = arith.mulf %710, %713 : vector<8x128xf32>
    %cst_210 = arith.constant 0.53070271 : f32
    %715 = vector.broadcast %cst_210 : f32 to vector<8x128xf32>
    %716 = arith.mulf %715, %714 : vector<8x128xf32>
    %cst_211 = arith.constant -0.72657603 : f32
    %717 = vector.broadcast %cst_211 : f32 to vector<8x128xf32>
    %718 = arith.addf %716, %717 : vector<8x128xf32>
    %719 = arith.mulf %718, %714 : vector<8x128xf32>
    %cst_212 = arith.constant 0.710706889 : f32
    %720 = vector.broadcast %cst_212 : f32 to vector<8x128xf32>
    %721 = arith.addf %719, %720 : vector<8x128xf32>
    %722 = arith.mulf %721, %714 : vector<8x128xf32>
    %cst_213 = arith.constant -0.142248362 : f32
    %723 = vector.broadcast %cst_213 : f32 to vector<8x128xf32>
    %724 = arith.addf %722, %723 : vector<8x128xf32>
    %725 = arith.mulf %724, %714 : vector<8x128xf32>
    %cst_214 = arith.constant 0.127414793 : f32
    %726 = vector.broadcast %cst_214 : f32 to vector<8x128xf32>
    %727 = arith.addf %725, %726 : vector<8x128xf32>
    %728 = arith.mulf %727, %714 : vector<8x128xf32>
    %729 = arith.mulf %704, %704 : vector<8x128xf32>
    %cst_215 = arith.constant 0.000000e+00 : f32
    %730 = vector.broadcast %cst_215 : f32 to vector<8x128xf32>
    %731 = arith.subf %730, %729 : vector<8x128xf32>
    %732 = math.exp %731 : vector<8x128xf32>
    %733 = arith.mulf %728, %732 : vector<8x128xf32>
    %cst_216 = arith.constant 0.000000e+00 : f32
    %734 = vector.broadcast %cst_216 : f32 to vector<8x128xf32>
    %735 = arith.cmpf oge, %704, %734 : vector<8x128xf32>
    %cst_217 = arith.constant 1.000000e+00 : f32
    %736 = vector.broadcast %cst_217 : f32 to vector<8x128xf32>
    %737 = arith.subf %736, %733 : vector<8x128xf32>
    %738 = arith.select %735, %737, %733 : vector<8x128xi1>, vector<8x128xf32>
    %739 = arith.addf %701, %738 : vector<8x128xf32>
    %740 = vector.extract_strided_slice %16 {offsets = [19, 0], sizes = [1, 128], strides = [1, 1]} : vector<64x128xf32> to vector<1x128xf32>
    %741 = vector.broadcast %740 : vector<1x128xf32> to vector<8x128xf32>
    %742 = arith.subf %13, %741 : vector<8x128xf32>
    %743 = math.absf %742 : vector<8x128xf32>
    %cst_218 = arith.constant 0.327591091 : f32
    %744 = vector.broadcast %cst_218 : f32 to vector<8x128xf32>
    %745 = arith.mulf %744, %743 : vector<8x128xf32>
    %cst_219 = arith.constant 1.000000e+00 : f32
    %746 = vector.broadcast %cst_219 : f32 to vector<8x128xf32>
    %747 = arith.addf %746, %745 : vector<8x128xf32>
    %748 = tpu.reciprocal %747 {approx = true} : vector<8x128xf32> -> vector<8x128xf32>
    %749 = arith.mulf %747, %748 : vector<8x128xf32>
    %cst_220 = arith.constant 2.000000e+00 : f32
    %750 = vector.broadcast %cst_220 : f32 to vector<8x128xf32>
    %751 = arith.subf %750, %749 : vector<8x128xf32>
    %752 = arith.mulf %748, %751 : vector<8x128xf32>
    %cst_221 = arith.constant 0.53070271 : f32
    %753 = vector.broadcast %cst_221 : f32 to vector<8x128xf32>
    %754 = arith.mulf %753, %752 : vector<8x128xf32>
    %cst_222 = arith.constant -0.72657603 : f32
    %755 = vector.broadcast %cst_222 : f32 to vector<8x128xf32>
    %756 = arith.addf %754, %755 : vector<8x128xf32>
    %757 = arith.mulf %756, %752 : vector<8x128xf32>
    %cst_223 = arith.constant 0.710706889 : f32
    %758 = vector.broadcast %cst_223 : f32 to vector<8x128xf32>
    %759 = arith.addf %757, %758 : vector<8x128xf32>
    %760 = arith.mulf %759, %752 : vector<8x128xf32>
    %cst_224 = arith.constant -0.142248362 : f32
    %761 = vector.broadcast %cst_224 : f32 to vector<8x128xf32>
    %762 = arith.addf %760, %761 : vector<8x128xf32>
    %763 = arith.mulf %762, %752 : vector<8x128xf32>
    %cst_225 = arith.constant 0.127414793 : f32
    %764 = vector.broadcast %cst_225 : f32 to vector<8x128xf32>
    %765 = arith.addf %763, %764 : vector<8x128xf32>
    %766 = arith.mulf %765, %752 : vector<8x128xf32>
    %767 = arith.mulf %742, %742 : vector<8x128xf32>
    %cst_226 = arith.constant 0.000000e+00 : f32
    %768 = vector.broadcast %cst_226 : f32 to vector<8x128xf32>
    %769 = arith.subf %768, %767 : vector<8x128xf32>
    %770 = math.exp %769 : vector<8x128xf32>
    %771 = arith.mulf %766, %770 : vector<8x128xf32>
    %cst_227 = arith.constant 0.000000e+00 : f32
    %772 = vector.broadcast %cst_227 : f32 to vector<8x128xf32>
    %773 = arith.cmpf oge, %742, %772 : vector<8x128xf32>
    %cst_228 = arith.constant 1.000000e+00 : f32
    %774 = vector.broadcast %cst_228 : f32 to vector<8x128xf32>
    %775 = arith.subf %774, %771 : vector<8x128xf32>
    %776 = arith.select %773, %775, %771 : vector<8x128xi1>, vector<8x128xf32>
    %777 = arith.addf %739, %776 : vector<8x128xf32>
    %778 = vector.extract_strided_slice %16 {offsets = [20, 0], sizes = [1, 128], strides = [1, 1]} : vector<64x128xf32> to vector<1x128xf32>
    %779 = vector.broadcast %778 : vector<1x128xf32> to vector<8x128xf32>
    %780 = arith.subf %13, %779 : vector<8x128xf32>
    %781 = math.absf %780 : vector<8x128xf32>
    %cst_229 = arith.constant 0.327591091 : f32
    %782 = vector.broadcast %cst_229 : f32 to vector<8x128xf32>
    %783 = arith.mulf %782, %781 : vector<8x128xf32>
    %cst_230 = arith.constant 1.000000e+00 : f32
    %784 = vector.broadcast %cst_230 : f32 to vector<8x128xf32>
    %785 = arith.addf %784, %783 : vector<8x128xf32>
    %786 = tpu.reciprocal %785 {approx = true} : vector<8x128xf32> -> vector<8x128xf32>
    %787 = arith.mulf %785, %786 : vector<8x128xf32>
    %cst_231 = arith.constant 2.000000e+00 : f32
    %788 = vector.broadcast %cst_231 : f32 to vector<8x128xf32>
    %789 = arith.subf %788, %787 : vector<8x128xf32>
    %790 = arith.mulf %786, %789 : vector<8x128xf32>
    %cst_232 = arith.constant 0.53070271 : f32
    %791 = vector.broadcast %cst_232 : f32 to vector<8x128xf32>
    %792 = arith.mulf %791, %790 : vector<8x128xf32>
    %cst_233 = arith.constant -0.72657603 : f32
    %793 = vector.broadcast %cst_233 : f32 to vector<8x128xf32>
    %794 = arith.addf %792, %793 : vector<8x128xf32>
    %795 = arith.mulf %794, %790 : vector<8x128xf32>
    %cst_234 = arith.constant 0.710706889 : f32
    %796 = vector.broadcast %cst_234 : f32 to vector<8x128xf32>
    %797 = arith.addf %795, %796 : vector<8x128xf32>
    %798 = arith.mulf %797, %790 : vector<8x128xf32>
    %cst_235 = arith.constant -0.142248362 : f32
    %799 = vector.broadcast %cst_235 : f32 to vector<8x128xf32>
    %800 = arith.addf %798, %799 : vector<8x128xf32>
    %801 = arith.mulf %800, %790 : vector<8x128xf32>
    %cst_236 = arith.constant 0.127414793 : f32
    %802 = vector.broadcast %cst_236 : f32 to vector<8x128xf32>
    %803 = arith.addf %801, %802 : vector<8x128xf32>
    %804 = arith.mulf %803, %790 : vector<8x128xf32>
    %805 = arith.mulf %780, %780 : vector<8x128xf32>
    %cst_237 = arith.constant 0.000000e+00 : f32
    %806 = vector.broadcast %cst_237 : f32 to vector<8x128xf32>
    %807 = arith.subf %806, %805 : vector<8x128xf32>
    %808 = math.exp %807 : vector<8x128xf32>
    %809 = arith.mulf %804, %808 : vector<8x128xf32>
    %cst_238 = arith.constant 0.000000e+00 : f32
    %810 = vector.broadcast %cst_238 : f32 to vector<8x128xf32>
    %811 = arith.cmpf oge, %780, %810 : vector<8x128xf32>
    %cst_239 = arith.constant 1.000000e+00 : f32
    %812 = vector.broadcast %cst_239 : f32 to vector<8x128xf32>
    %813 = arith.subf %812, %809 : vector<8x128xf32>
    %814 = arith.select %811, %813, %809 : vector<8x128xi1>, vector<8x128xf32>
    %815 = arith.addf %777, %814 : vector<8x128xf32>
    %816 = vector.extract_strided_slice %16 {offsets = [21, 0], sizes = [1, 128], strides = [1, 1]} : vector<64x128xf32> to vector<1x128xf32>
    %817 = vector.broadcast %816 : vector<1x128xf32> to vector<8x128xf32>
    %818 = arith.subf %13, %817 : vector<8x128xf32>
    %819 = math.absf %818 : vector<8x128xf32>
    %cst_240 = arith.constant 0.327591091 : f32
    %820 = vector.broadcast %cst_240 : f32 to vector<8x128xf32>
    %821 = arith.mulf %820, %819 : vector<8x128xf32>
    %cst_241 = arith.constant 1.000000e+00 : f32
    %822 = vector.broadcast %cst_241 : f32 to vector<8x128xf32>
    %823 = arith.addf %822, %821 : vector<8x128xf32>
    %824 = tpu.reciprocal %823 {approx = true} : vector<8x128xf32> -> vector<8x128xf32>
    %825 = arith.mulf %823, %824 : vector<8x128xf32>
    %cst_242 = arith.constant 2.000000e+00 : f32
    %826 = vector.broadcast %cst_242 : f32 to vector<8x128xf32>
    %827 = arith.subf %826, %825 : vector<8x128xf32>
    %828 = arith.mulf %824, %827 : vector<8x128xf32>
    %cst_243 = arith.constant 0.53070271 : f32
    %829 = vector.broadcast %cst_243 : f32 to vector<8x128xf32>
    %830 = arith.mulf %829, %828 : vector<8x128xf32>
    %cst_244 = arith.constant -0.72657603 : f32
    %831 = vector.broadcast %cst_244 : f32 to vector<8x128xf32>
    %832 = arith.addf %830, %831 : vector<8x128xf32>
    %833 = arith.mulf %832, %828 : vector<8x128xf32>
    %cst_245 = arith.constant 0.710706889 : f32
    %834 = vector.broadcast %cst_245 : f32 to vector<8x128xf32>
    %835 = arith.addf %833, %834 : vector<8x128xf32>
    %836 = arith.mulf %835, %828 : vector<8x128xf32>
    %cst_246 = arith.constant -0.142248362 : f32
    %837 = vector.broadcast %cst_246 : f32 to vector<8x128xf32>
    %838 = arith.addf %836, %837 : vector<8x128xf32>
    %839 = arith.mulf %838, %828 : vector<8x128xf32>
    %cst_247 = arith.constant 0.127414793 : f32
    %840 = vector.broadcast %cst_247 : f32 to vector<8x128xf32>
    %841 = arith.addf %839, %840 : vector<8x128xf32>
    %842 = arith.mulf %841, %828 : vector<8x128xf32>
    %843 = arith.mulf %818, %818 : vector<8x128xf32>
    %cst_248 = arith.constant 0.000000e+00 : f32
    %844 = vector.broadcast %cst_248 : f32 to vector<8x128xf32>
    %845 = arith.subf %844, %843 : vector<8x128xf32>
    %846 = math.exp %845 : vector<8x128xf32>
    %847 = arith.mulf %842, %846 : vector<8x128xf32>
    %cst_249 = arith.constant 0.000000e+00 : f32
    %848 = vector.broadcast %cst_249 : f32 to vector<8x128xf32>
    %849 = arith.cmpf oge, %818, %848 : vector<8x128xf32>
    %cst_250 = arith.constant 1.000000e+00 : f32
    %850 = vector.broadcast %cst_250 : f32 to vector<8x128xf32>
    %851 = arith.subf %850, %847 : vector<8x128xf32>
    %852 = arith.select %849, %851, %847 : vector<8x128xi1>, vector<8x128xf32>
    %853 = arith.addf %815, %852 : vector<8x128xf32>
    %854 = vector.extract_strided_slice %16 {offsets = [22, 0], sizes = [1, 128], strides = [1, 1]} : vector<64x128xf32> to vector<1x128xf32>
    %855 = vector.broadcast %854 : vector<1x128xf32> to vector<8x128xf32>
    %856 = arith.subf %13, %855 : vector<8x128xf32>
    %857 = math.absf %856 : vector<8x128xf32>
    %cst_251 = arith.constant 0.327591091 : f32
    %858 = vector.broadcast %cst_251 : f32 to vector<8x128xf32>
    %859 = arith.mulf %858, %857 : vector<8x128xf32>
    %cst_252 = arith.constant 1.000000e+00 : f32
    %860 = vector.broadcast %cst_252 : f32 to vector<8x128xf32>
    %861 = arith.addf %860, %859 : vector<8x128xf32>
    %862 = tpu.reciprocal %861 {approx = true} : vector<8x128xf32> -> vector<8x128xf32>
    %863 = arith.mulf %861, %862 : vector<8x128xf32>
    %cst_253 = arith.constant 2.000000e+00 : f32
    %864 = vector.broadcast %cst_253 : f32 to vector<8x128xf32>
    %865 = arith.subf %864, %863 : vector<8x128xf32>
    %866 = arith.mulf %862, %865 : vector<8x128xf32>
    %cst_254 = arith.constant 0.53070271 : f32
    %867 = vector.broadcast %cst_254 : f32 to vector<8x128xf32>
    %868 = arith.mulf %867, %866 : vector<8x128xf32>
    %cst_255 = arith.constant -0.72657603 : f32
    %869 = vector.broadcast %cst_255 : f32 to vector<8x128xf32>
    %870 = arith.addf %868, %869 : vector<8x128xf32>
    %871 = arith.mulf %870, %866 : vector<8x128xf32>
    %cst_256 = arith.constant 0.710706889 : f32
    %872 = vector.broadcast %cst_256 : f32 to vector<8x128xf32>
    %873 = arith.addf %871, %872 : vector<8x128xf32>
    %874 = arith.mulf %873, %866 : vector<8x128xf32>
    %cst_257 = arith.constant -0.142248362 : f32
    %875 = vector.broadcast %cst_257 : f32 to vector<8x128xf32>
    %876 = arith.addf %874, %875 : vector<8x128xf32>
    %877 = arith.mulf %876, %866 : vector<8x128xf32>
    %cst_258 = arith.constant 0.127414793 : f32
    %878 = vector.broadcast %cst_258 : f32 to vector<8x128xf32>
    %879 = arith.addf %877, %878 : vector<8x128xf32>
    %880 = arith.mulf %879, %866 : vector<8x128xf32>
    %881 = arith.mulf %856, %856 : vector<8x128xf32>
    %cst_259 = arith.constant 0.000000e+00 : f32
    %882 = vector.broadcast %cst_259 : f32 to vector<8x128xf32>
    %883 = arith.subf %882, %881 : vector<8x128xf32>
    %884 = math.exp %883 : vector<8x128xf32>
    %885 = arith.mulf %880, %884 : vector<8x128xf32>
    %cst_260 = arith.constant 0.000000e+00 : f32
    %886 = vector.broadcast %cst_260 : f32 to vector<8x128xf32>
    %887 = arith.cmpf oge, %856, %886 : vector<8x128xf32>
    %cst_261 = arith.constant 1.000000e+00 : f32
    %888 = vector.broadcast %cst_261 : f32 to vector<8x128xf32>
    %889 = arith.subf %888, %885 : vector<8x128xf32>
    %890 = arith.select %887, %889, %885 : vector<8x128xi1>, vector<8x128xf32>
    %891 = arith.addf %853, %890 : vector<8x128xf32>
    %892 = vector.extract_strided_slice %16 {offsets = [23, 0], sizes = [1, 128], strides = [1, 1]} : vector<64x128xf32> to vector<1x128xf32>
    %893 = vector.broadcast %892 : vector<1x128xf32> to vector<8x128xf32>
    %894 = arith.subf %13, %893 : vector<8x128xf32>
    %895 = math.absf %894 : vector<8x128xf32>
    %cst_262 = arith.constant 0.327591091 : f32
    %896 = vector.broadcast %cst_262 : f32 to vector<8x128xf32>
    %897 = arith.mulf %896, %895 : vector<8x128xf32>
    %cst_263 = arith.constant 1.000000e+00 : f32
    %898 = vector.broadcast %cst_263 : f32 to vector<8x128xf32>
    %899 = arith.addf %898, %897 : vector<8x128xf32>
    %900 = tpu.reciprocal %899 {approx = true} : vector<8x128xf32> -> vector<8x128xf32>
    %901 = arith.mulf %899, %900 : vector<8x128xf32>
    %cst_264 = arith.constant 2.000000e+00 : f32
    %902 = vector.broadcast %cst_264 : f32 to vector<8x128xf32>
    %903 = arith.subf %902, %901 : vector<8x128xf32>
    %904 = arith.mulf %900, %903 : vector<8x128xf32>
    %cst_265 = arith.constant 0.53070271 : f32
    %905 = vector.broadcast %cst_265 : f32 to vector<8x128xf32>
    %906 = arith.mulf %905, %904 : vector<8x128xf32>
    %cst_266 = arith.constant -0.72657603 : f32
    %907 = vector.broadcast %cst_266 : f32 to vector<8x128xf32>
    %908 = arith.addf %906, %907 : vector<8x128xf32>
    %909 = arith.mulf %908, %904 : vector<8x128xf32>
    %cst_267 = arith.constant 0.710706889 : f32
    %910 = vector.broadcast %cst_267 : f32 to vector<8x128xf32>
    %911 = arith.addf %909, %910 : vector<8x128xf32>
    %912 = arith.mulf %911, %904 : vector<8x128xf32>
    %cst_268 = arith.constant -0.142248362 : f32
    %913 = vector.broadcast %cst_268 : f32 to vector<8x128xf32>
    %914 = arith.addf %912, %913 : vector<8x128xf32>
    %915 = arith.mulf %914, %904 : vector<8x128xf32>
    %cst_269 = arith.constant 0.127414793 : f32
    %916 = vector.broadcast %cst_269 : f32 to vector<8x128xf32>
    %917 = arith.addf %915, %916 : vector<8x128xf32>
    %918 = arith.mulf %917, %904 : vector<8x128xf32>
    %919 = arith.mulf %894, %894 : vector<8x128xf32>
    %cst_270 = arith.constant 0.000000e+00 : f32
    %920 = vector.broadcast %cst_270 : f32 to vector<8x128xf32>
    %921 = arith.subf %920, %919 : vector<8x128xf32>
    %922 = math.exp %921 : vector<8x128xf32>
    %923 = arith.mulf %918, %922 : vector<8x128xf32>
    %cst_271 = arith.constant 0.000000e+00 : f32
    %924 = vector.broadcast %cst_271 : f32 to vector<8x128xf32>
    %925 = arith.cmpf oge, %894, %924 : vector<8x128xf32>
    %cst_272 = arith.constant 1.000000e+00 : f32
    %926 = vector.broadcast %cst_272 : f32 to vector<8x128xf32>
    %927 = arith.subf %926, %923 : vector<8x128xf32>
    %928 = arith.select %925, %927, %923 : vector<8x128xi1>, vector<8x128xf32>
    %929 = arith.addf %891, %928 : vector<8x128xf32>
    %930 = vector.extract_strided_slice %16 {offsets = [24, 0], sizes = [1, 128], strides = [1, 1]} : vector<64x128xf32> to vector<1x128xf32>
    %931 = vector.broadcast %930 : vector<1x128xf32> to vector<8x128xf32>
    %932 = arith.subf %13, %931 : vector<8x128xf32>
    %933 = math.absf %932 : vector<8x128xf32>
    %cst_273 = arith.constant 0.327591091 : f32
    %934 = vector.broadcast %cst_273 : f32 to vector<8x128xf32>
    %935 = arith.mulf %934, %933 : vector<8x128xf32>
    %cst_274 = arith.constant 1.000000e+00 : f32
    %936 = vector.broadcast %cst_274 : f32 to vector<8x128xf32>
    %937 = arith.addf %936, %935 : vector<8x128xf32>
    %938 = tpu.reciprocal %937 {approx = true} : vector<8x128xf32> -> vector<8x128xf32>
    %939 = arith.mulf %937, %938 : vector<8x128xf32>
    %cst_275 = arith.constant 2.000000e+00 : f32
    %940 = vector.broadcast %cst_275 : f32 to vector<8x128xf32>
    %941 = arith.subf %940, %939 : vector<8x128xf32>
    %942 = arith.mulf %938, %941 : vector<8x128xf32>
    %cst_276 = arith.constant 0.53070271 : f32
    %943 = vector.broadcast %cst_276 : f32 to vector<8x128xf32>
    %944 = arith.mulf %943, %942 : vector<8x128xf32>
    %cst_277 = arith.constant -0.72657603 : f32
    %945 = vector.broadcast %cst_277 : f32 to vector<8x128xf32>
    %946 = arith.addf %944, %945 : vector<8x128xf32>
    %947 = arith.mulf %946, %942 : vector<8x128xf32>
    %cst_278 = arith.constant 0.710706889 : f32
    %948 = vector.broadcast %cst_278 : f32 to vector<8x128xf32>
    %949 = arith.addf %947, %948 : vector<8x128xf32>
    %950 = arith.mulf %949, %942 : vector<8x128xf32>
    %cst_279 = arith.constant -0.142248362 : f32
    %951 = vector.broadcast %cst_279 : f32 to vector<8x128xf32>
    %952 = arith.addf %950, %951 : vector<8x128xf32>
    %953 = arith.mulf %952, %942 : vector<8x128xf32>
    %cst_280 = arith.constant 0.127414793 : f32
    %954 = vector.broadcast %cst_280 : f32 to vector<8x128xf32>
    %955 = arith.addf %953, %954 : vector<8x128xf32>
    %956 = arith.mulf %955, %942 : vector<8x128xf32>
    %957 = arith.mulf %932, %932 : vector<8x128xf32>
    %cst_281 = arith.constant 0.000000e+00 : f32
    %958 = vector.broadcast %cst_281 : f32 to vector<8x128xf32>
    %959 = arith.subf %958, %957 : vector<8x128xf32>
    %960 = math.exp %959 : vector<8x128xf32>
    %961 = arith.mulf %956, %960 : vector<8x128xf32>
    %cst_282 = arith.constant 0.000000e+00 : f32
    %962 = vector.broadcast %cst_282 : f32 to vector<8x128xf32>
    %963 = arith.cmpf oge, %932, %962 : vector<8x128xf32>
    %cst_283 = arith.constant 1.000000e+00 : f32
    %964 = vector.broadcast %cst_283 : f32 to vector<8x128xf32>
    %965 = arith.subf %964, %961 : vector<8x128xf32>
    %966 = arith.select %963, %965, %961 : vector<8x128xi1>, vector<8x128xf32>
    %967 = arith.addf %929, %966 : vector<8x128xf32>
    %968 = vector.extract_strided_slice %16 {offsets = [25, 0], sizes = [1, 128], strides = [1, 1]} : vector<64x128xf32> to vector<1x128xf32>
    %969 = vector.broadcast %968 : vector<1x128xf32> to vector<8x128xf32>
    %970 = arith.subf %13, %969 : vector<8x128xf32>
    %971 = math.absf %970 : vector<8x128xf32>
    %cst_284 = arith.constant 0.327591091 : f32
    %972 = vector.broadcast %cst_284 : f32 to vector<8x128xf32>
    %973 = arith.mulf %972, %971 : vector<8x128xf32>
    %cst_285 = arith.constant 1.000000e+00 : f32
    %974 = vector.broadcast %cst_285 : f32 to vector<8x128xf32>
    %975 = arith.addf %974, %973 : vector<8x128xf32>
    %976 = tpu.reciprocal %975 {approx = true} : vector<8x128xf32> -> vector<8x128xf32>
    %977 = arith.mulf %975, %976 : vector<8x128xf32>
    %cst_286 = arith.constant 2.000000e+00 : f32
    %978 = vector.broadcast %cst_286 : f32 to vector<8x128xf32>
    %979 = arith.subf %978, %977 : vector<8x128xf32>
    %980 = arith.mulf %976, %979 : vector<8x128xf32>
    %cst_287 = arith.constant 0.53070271 : f32
    %981 = vector.broadcast %cst_287 : f32 to vector<8x128xf32>
    %982 = arith.mulf %981, %980 : vector<8x128xf32>
    %cst_288 = arith.constant -0.72657603 : f32
    %983 = vector.broadcast %cst_288 : f32 to vector<8x128xf32>
    %984 = arith.addf %982, %983 : vector<8x128xf32>
    %985 = arith.mulf %984, %980 : vector<8x128xf32>
    %cst_289 = arith.constant 0.710706889 : f32
    %986 = vector.broadcast %cst_289 : f32 to vector<8x128xf32>
    %987 = arith.addf %985, %986 : vector<8x128xf32>
    %988 = arith.mulf %987, %980 : vector<8x128xf32>
    %cst_290 = arith.constant -0.142248362 : f32
    %989 = vector.broadcast %cst_290 : f32 to vector<8x128xf32>
    %990 = arith.addf %988, %989 : vector<8x128xf32>
    %991 = arith.mulf %990, %980 : vector<8x128xf32>
    %cst_291 = arith.constant 0.127414793 : f32
    %992 = vector.broadcast %cst_291 : f32 to vector<8x128xf32>
    %993 = arith.addf %991, %992 : vector<8x128xf32>
    %994 = arith.mulf %993, %980 : vector<8x128xf32>
    %995 = arith.mulf %970, %970 : vector<8x128xf32>
    %cst_292 = arith.constant 0.000000e+00 : f32
    %996 = vector.broadcast %cst_292 : f32 to vector<8x128xf32>
    %997 = arith.subf %996, %995 : vector<8x128xf32>
    %998 = math.exp %997 : vector<8x128xf32>
    %999 = arith.mulf %994, %998 : vector<8x128xf32>
    %cst_293 = arith.constant 0.000000e+00 : f32
    %1000 = vector.broadcast %cst_293 : f32 to vector<8x128xf32>
    %1001 = arith.cmpf oge, %970, %1000 : vector<8x128xf32>
    %cst_294 = arith.constant 1.000000e+00 : f32
    %1002 = vector.broadcast %cst_294 : f32 to vector<8x128xf32>
    %1003 = arith.subf %1002, %999 : vector<8x128xf32>
    %1004 = arith.select %1001, %1003, %999 : vector<8x128xi1>, vector<8x128xf32>
    %1005 = arith.addf %967, %1004 : vector<8x128xf32>
    %1006 = vector.extract_strided_slice %16 {offsets = [26, 0], sizes = [1, 128], strides = [1, 1]} : vector<64x128xf32> to vector<1x128xf32>
    %1007 = vector.broadcast %1006 : vector<1x128xf32> to vector<8x128xf32>
    %1008 = arith.subf %13, %1007 : vector<8x128xf32>
    %1009 = math.absf %1008 : vector<8x128xf32>
    %cst_295 = arith.constant 0.327591091 : f32
    %1010 = vector.broadcast %cst_295 : f32 to vector<8x128xf32>
    %1011 = arith.mulf %1010, %1009 : vector<8x128xf32>
    %cst_296 = arith.constant 1.000000e+00 : f32
    %1012 = vector.broadcast %cst_296 : f32 to vector<8x128xf32>
    %1013 = arith.addf %1012, %1011 : vector<8x128xf32>
    %1014 = tpu.reciprocal %1013 {approx = true} : vector<8x128xf32> -> vector<8x128xf32>
    %1015 = arith.mulf %1013, %1014 : vector<8x128xf32>
    %cst_297 = arith.constant 2.000000e+00 : f32
    %1016 = vector.broadcast %cst_297 : f32 to vector<8x128xf32>
    %1017 = arith.subf %1016, %1015 : vector<8x128xf32>
    %1018 = arith.mulf %1014, %1017 : vector<8x128xf32>
    %cst_298 = arith.constant 0.53070271 : f32
    %1019 = vector.broadcast %cst_298 : f32 to vector<8x128xf32>
    %1020 = arith.mulf %1019, %1018 : vector<8x128xf32>
    %cst_299 = arith.constant -0.72657603 : f32
    %1021 = vector.broadcast %cst_299 : f32 to vector<8x128xf32>
    %1022 = arith.addf %1020, %1021 : vector<8x128xf32>
    %1023 = arith.mulf %1022, %1018 : vector<8x128xf32>
    %cst_300 = arith.constant 0.710706889 : f32
    %1024 = vector.broadcast %cst_300 : f32 to vector<8x128xf32>
    %1025 = arith.addf %1023, %1024 : vector<8x128xf32>
    %1026 = arith.mulf %1025, %1018 : vector<8x128xf32>
    %cst_301 = arith.constant -0.142248362 : f32
    %1027 = vector.broadcast %cst_301 : f32 to vector<8x128xf32>
    %1028 = arith.addf %1026, %1027 : vector<8x128xf32>
    %1029 = arith.mulf %1028, %1018 : vector<8x128xf32>
    %cst_302 = arith.constant 0.127414793 : f32
    %1030 = vector.broadcast %cst_302 : f32 to vector<8x128xf32>
    %1031 = arith.addf %1029, %1030 : vector<8x128xf32>
    %1032 = arith.mulf %1031, %1018 : vector<8x128xf32>
    %1033 = arith.mulf %1008, %1008 : vector<8x128xf32>
    %cst_303 = arith.constant 0.000000e+00 : f32
    %1034 = vector.broadcast %cst_303 : f32 to vector<8x128xf32>
    %1035 = arith.subf %1034, %1033 : vector<8x128xf32>
    %1036 = math.exp %1035 : vector<8x128xf32>
    %1037 = arith.mulf %1032, %1036 : vector<8x128xf32>
    %cst_304 = arith.constant 0.000000e+00 : f32
    %1038 = vector.broadcast %cst_304 : f32 to vector<8x128xf32>
    %1039 = arith.cmpf oge, %1008, %1038 : vector<8x128xf32>
    %cst_305 = arith.constant 1.000000e+00 : f32
    %1040 = vector.broadcast %cst_305 : f32 to vector<8x128xf32>
    %1041 = arith.subf %1040, %1037 : vector<8x128xf32>
    %1042 = arith.select %1039, %1041, %1037 : vector<8x128xi1>, vector<8x128xf32>
    %1043 = arith.addf %1005, %1042 : vector<8x128xf32>
    %1044 = vector.extract_strided_slice %16 {offsets = [27, 0], sizes = [1, 128], strides = [1, 1]} : vector<64x128xf32> to vector<1x128xf32>
    %1045 = vector.broadcast %1044 : vector<1x128xf32> to vector<8x128xf32>
    %1046 = arith.subf %13, %1045 : vector<8x128xf32>
    %1047 = math.absf %1046 : vector<8x128xf32>
    %cst_306 = arith.constant 0.327591091 : f32
    %1048 = vector.broadcast %cst_306 : f32 to vector<8x128xf32>
    %1049 = arith.mulf %1048, %1047 : vector<8x128xf32>
    %cst_307 = arith.constant 1.000000e+00 : f32
    %1050 = vector.broadcast %cst_307 : f32 to vector<8x128xf32>
    %1051 = arith.addf %1050, %1049 : vector<8x128xf32>
    %1052 = tpu.reciprocal %1051 {approx = true} : vector<8x128xf32> -> vector<8x128xf32>
    %1053 = arith.mulf %1051, %1052 : vector<8x128xf32>
    %cst_308 = arith.constant 2.000000e+00 : f32
    %1054 = vector.broadcast %cst_308 : f32 to vector<8x128xf32>
    %1055 = arith.subf %1054, %1053 : vector<8x128xf32>
    %1056 = arith.mulf %1052, %1055 : vector<8x128xf32>
    %cst_309 = arith.constant 0.53070271 : f32
    %1057 = vector.broadcast %cst_309 : f32 to vector<8x128xf32>
    %1058 = arith.mulf %1057, %1056 : vector<8x128xf32>
    %cst_310 = arith.constant -0.72657603 : f32
    %1059 = vector.broadcast %cst_310 : f32 to vector<8x128xf32>
    %1060 = arith.addf %1058, %1059 : vector<8x128xf32>
    %1061 = arith.mulf %1060, %1056 : vector<8x128xf32>
    %cst_311 = arith.constant 0.710706889 : f32
    %1062 = vector.broadcast %cst_311 : f32 to vector<8x128xf32>
    %1063 = arith.addf %1061, %1062 : vector<8x128xf32>
    %1064 = arith.mulf %1063, %1056 : vector<8x128xf32>
    %cst_312 = arith.constant -0.142248362 : f32
    %1065 = vector.broadcast %cst_312 : f32 to vector<8x128xf32>
    %1066 = arith.addf %1064, %1065 : vector<8x128xf32>
    %1067 = arith.mulf %1066, %1056 : vector<8x128xf32>
    %cst_313 = arith.constant 0.127414793 : f32
    %1068 = vector.broadcast %cst_313 : f32 to vector<8x128xf32>
    %1069 = arith.addf %1067, %1068 : vector<8x128xf32>
    %1070 = arith.mulf %1069, %1056 : vector<8x128xf32>
    %1071 = arith.mulf %1046, %1046 : vector<8x128xf32>
    %cst_314 = arith.constant 0.000000e+00 : f32
    %1072 = vector.broadcast %cst_314 : f32 to vector<8x128xf32>
    %1073 = arith.subf %1072, %1071 : vector<8x128xf32>
    %1074 = math.exp %1073 : vector<8x128xf32>
    %1075 = arith.mulf %1070, %1074 : vector<8x128xf32>
    %cst_315 = arith.constant 0.000000e+00 : f32
    %1076 = vector.broadcast %cst_315 : f32 to vector<8x128xf32>
    %1077 = arith.cmpf oge, %1046, %1076 : vector<8x128xf32>
    %cst_316 = arith.constant 1.000000e+00 : f32
    %1078 = vector.broadcast %cst_316 : f32 to vector<8x128xf32>
    %1079 = arith.subf %1078, %1075 : vector<8x128xf32>
    %1080 = arith.select %1077, %1079, %1075 : vector<8x128xi1>, vector<8x128xf32>
    %1081 = arith.addf %1043, %1080 : vector<8x128xf32>
    %1082 = vector.extract_strided_slice %16 {offsets = [28, 0], sizes = [1, 128], strides = [1, 1]} : vector<64x128xf32> to vector<1x128xf32>
    %1083 = vector.broadcast %1082 : vector<1x128xf32> to vector<8x128xf32>
    %1084 = arith.subf %13, %1083 : vector<8x128xf32>
    %1085 = math.absf %1084 : vector<8x128xf32>
    %cst_317 = arith.constant 0.327591091 : f32
    %1086 = vector.broadcast %cst_317 : f32 to vector<8x128xf32>
    %1087 = arith.mulf %1086, %1085 : vector<8x128xf32>
    %cst_318 = arith.constant 1.000000e+00 : f32
    %1088 = vector.broadcast %cst_318 : f32 to vector<8x128xf32>
    %1089 = arith.addf %1088, %1087 : vector<8x128xf32>
    %1090 = tpu.reciprocal %1089 {approx = true} : vector<8x128xf32> -> vector<8x128xf32>
    %1091 = arith.mulf %1089, %1090 : vector<8x128xf32>
    %cst_319 = arith.constant 2.000000e+00 : f32
    %1092 = vector.broadcast %cst_319 : f32 to vector<8x128xf32>
    %1093 = arith.subf %1092, %1091 : vector<8x128xf32>
    %1094 = arith.mulf %1090, %1093 : vector<8x128xf32>
    %cst_320 = arith.constant 0.53070271 : f32
    %1095 = vector.broadcast %cst_320 : f32 to vector<8x128xf32>
    %1096 = arith.mulf %1095, %1094 : vector<8x128xf32>
    %cst_321 = arith.constant -0.72657603 : f32
    %1097 = vector.broadcast %cst_321 : f32 to vector<8x128xf32>
    %1098 = arith.addf %1096, %1097 : vector<8x128xf32>
    %1099 = arith.mulf %1098, %1094 : vector<8x128xf32>
    %cst_322 = arith.constant 0.710706889 : f32
    %1100 = vector.broadcast %cst_322 : f32 to vector<8x128xf32>
    %1101 = arith.addf %1099, %1100 : vector<8x128xf32>
    %1102 = arith.mulf %1101, %1094 : vector<8x128xf32>
    %cst_323 = arith.constant -0.142248362 : f32
    %1103 = vector.broadcast %cst_323 : f32 to vector<8x128xf32>
    %1104 = arith.addf %1102, %1103 : vector<8x128xf32>
    %1105 = arith.mulf %1104, %1094 : vector<8x128xf32>
    %cst_324 = arith.constant 0.127414793 : f32
    %1106 = vector.broadcast %cst_324 : f32 to vector<8x128xf32>
    %1107 = arith.addf %1105, %1106 : vector<8x128xf32>
    %1108 = arith.mulf %1107, %1094 : vector<8x128xf32>
    %1109 = arith.mulf %1084, %1084 : vector<8x128xf32>
    %cst_325 = arith.constant 0.000000e+00 : f32
    %1110 = vector.broadcast %cst_325 : f32 to vector<8x128xf32>
    %1111 = arith.subf %1110, %1109 : vector<8x128xf32>
    %1112 = math.exp %1111 : vector<8x128xf32>
    %1113 = arith.mulf %1108, %1112 : vector<8x128xf32>
    %cst_326 = arith.constant 0.000000e+00 : f32
    %1114 = vector.broadcast %cst_326 : f32 to vector<8x128xf32>
    %1115 = arith.cmpf oge, %1084, %1114 : vector<8x128xf32>
    %cst_327 = arith.constant 1.000000e+00 : f32
    %1116 = vector.broadcast %cst_327 : f32 to vector<8x128xf32>
    %1117 = arith.subf %1116, %1113 : vector<8x128xf32>
    %1118 = arith.select %1115, %1117, %1113 : vector<8x128xi1>, vector<8x128xf32>
    %1119 = arith.addf %1081, %1118 : vector<8x128xf32>
    %1120 = vector.extract_strided_slice %16 {offsets = [29, 0], sizes = [1, 128], strides = [1, 1]} : vector<64x128xf32> to vector<1x128xf32>
    %1121 = vector.broadcast %1120 : vector<1x128xf32> to vector<8x128xf32>
    %1122 = arith.subf %13, %1121 : vector<8x128xf32>
    %1123 = math.absf %1122 : vector<8x128xf32>
    %cst_328 = arith.constant 0.327591091 : f32
    %1124 = vector.broadcast %cst_328 : f32 to vector<8x128xf32>
    %1125 = arith.mulf %1124, %1123 : vector<8x128xf32>
    %cst_329 = arith.constant 1.000000e+00 : f32
    %1126 = vector.broadcast %cst_329 : f32 to vector<8x128xf32>
    %1127 = arith.addf %1126, %1125 : vector<8x128xf32>
    %1128 = tpu.reciprocal %1127 {approx = true} : vector<8x128xf32> -> vector<8x128xf32>
    %1129 = arith.mulf %1127, %1128 : vector<8x128xf32>
    %cst_330 = arith.constant 2.000000e+00 : f32
    %1130 = vector.broadcast %cst_330 : f32 to vector<8x128xf32>
    %1131 = arith.subf %1130, %1129 : vector<8x128xf32>
    %1132 = arith.mulf %1128, %1131 : vector<8x128xf32>
    %cst_331 = arith.constant 0.53070271 : f32
    %1133 = vector.broadcast %cst_331 : f32 to vector<8x128xf32>
    %1134 = arith.mulf %1133, %1132 : vector<8x128xf32>
    %cst_332 = arith.constant -0.72657603 : f32
    %1135 = vector.broadcast %cst_332 : f32 to vector<8x128xf32>
    %1136 = arith.addf %1134, %1135 : vector<8x128xf32>
    %1137 = arith.mulf %1136, %1132 : vector<8x128xf32>
    %cst_333 = arith.constant 0.710706889 : f32
    %1138 = vector.broadcast %cst_333 : f32 to vector<8x128xf32>
    %1139 = arith.addf %1137, %1138 : vector<8x128xf32>
    %1140 = arith.mulf %1139, %1132 : vector<8x128xf32>
    %cst_334 = arith.constant -0.142248362 : f32
    %1141 = vector.broadcast %cst_334 : f32 to vector<8x128xf32>
    %1142 = arith.addf %1140, %1141 : vector<8x128xf32>
    %1143 = arith.mulf %1142, %1132 : vector<8x128xf32>
    %cst_335 = arith.constant 0.127414793 : f32
    %1144 = vector.broadcast %cst_335 : f32 to vector<8x128xf32>
    %1145 = arith.addf %1143, %1144 : vector<8x128xf32>
    %1146 = arith.mulf %1145, %1132 : vector<8x128xf32>
    %1147 = arith.mulf %1122, %1122 : vector<8x128xf32>
    %cst_336 = arith.constant 0.000000e+00 : f32
    %1148 = vector.broadcast %cst_336 : f32 to vector<8x128xf32>
    %1149 = arith.subf %1148, %1147 : vector<8x128xf32>
    %1150 = math.exp %1149 : vector<8x128xf32>
    %1151 = arith.mulf %1146, %1150 : vector<8x128xf32>
    %cst_337 = arith.constant 0.000000e+00 : f32
    %1152 = vector.broadcast %cst_337 : f32 to vector<8x128xf32>
    %1153 = arith.cmpf oge, %1122, %1152 : vector<8x128xf32>
    %cst_338 = arith.constant 1.000000e+00 : f32
    %1154 = vector.broadcast %cst_338 : f32 to vector<8x128xf32>
    %1155 = arith.subf %1154, %1151 : vector<8x128xf32>
    %1156 = arith.select %1153, %1155, %1151 : vector<8x128xi1>, vector<8x128xf32>
    %1157 = arith.addf %1119, %1156 : vector<8x128xf32>
    %1158 = vector.extract_strided_slice %16 {offsets = [30, 0], sizes = [1, 128], strides = [1, 1]} : vector<64x128xf32> to vector<1x128xf32>
    %1159 = vector.broadcast %1158 : vector<1x128xf32> to vector<8x128xf32>
    %1160 = arith.subf %13, %1159 : vector<8x128xf32>
    %1161 = math.absf %1160 : vector<8x128xf32>
    %cst_339 = arith.constant 0.327591091 : f32
    %1162 = vector.broadcast %cst_339 : f32 to vector<8x128xf32>
    %1163 = arith.mulf %1162, %1161 : vector<8x128xf32>
    %cst_340 = arith.constant 1.000000e+00 : f32
    %1164 = vector.broadcast %cst_340 : f32 to vector<8x128xf32>
    %1165 = arith.addf %1164, %1163 : vector<8x128xf32>
    %1166 = tpu.reciprocal %1165 {approx = true} : vector<8x128xf32> -> vector<8x128xf32>
    %1167 = arith.mulf %1165, %1166 : vector<8x128xf32>
    %cst_341 = arith.constant 2.000000e+00 : f32
    %1168 = vector.broadcast %cst_341 : f32 to vector<8x128xf32>
    %1169 = arith.subf %1168, %1167 : vector<8x128xf32>
    %1170 = arith.mulf %1166, %1169 : vector<8x128xf32>
    %cst_342 = arith.constant 0.53070271 : f32
    %1171 = vector.broadcast %cst_342 : f32 to vector<8x128xf32>
    %1172 = arith.mulf %1171, %1170 : vector<8x128xf32>
    %cst_343 = arith.constant -0.72657603 : f32
    %1173 = vector.broadcast %cst_343 : f32 to vector<8x128xf32>
    %1174 = arith.addf %1172, %1173 : vector<8x128xf32>
    %1175 = arith.mulf %1174, %1170 : vector<8x128xf32>
    %cst_344 = arith.constant 0.710706889 : f32
    %1176 = vector.broadcast %cst_344 : f32 to vector<8x128xf32>
    %1177 = arith.addf %1175, %1176 : vector<8x128xf32>
    %1178 = arith.mulf %1177, %1170 : vector<8x128xf32>
    %cst_345 = arith.constant -0.142248362 : f32
    %1179 = vector.broadcast %cst_345 : f32 to vector<8x128xf32>
    %1180 = arith.addf %1178, %1179 : vector<8x128xf32>
    %1181 = arith.mulf %1180, %1170 : vector<8x128xf32>
    %cst_346 = arith.constant 0.127414793 : f32
    %1182 = vector.broadcast %cst_346 : f32 to vector<8x128xf32>
    %1183 = arith.addf %1181, %1182 : vector<8x128xf32>
    %1184 = arith.mulf %1183, %1170 : vector<8x128xf32>
    %1185 = arith.mulf %1160, %1160 : vector<8x128xf32>
    %cst_347 = arith.constant 0.000000e+00 : f32
    %1186 = vector.broadcast %cst_347 : f32 to vector<8x128xf32>
    %1187 = arith.subf %1186, %1185 : vector<8x128xf32>
    %1188 = math.exp %1187 : vector<8x128xf32>
    %1189 = arith.mulf %1184, %1188 : vector<8x128xf32>
    %cst_348 = arith.constant 0.000000e+00 : f32
    %1190 = vector.broadcast %cst_348 : f32 to vector<8x128xf32>
    %1191 = arith.cmpf oge, %1160, %1190 : vector<8x128xf32>
    %cst_349 = arith.constant 1.000000e+00 : f32
    %1192 = vector.broadcast %cst_349 : f32 to vector<8x128xf32>
    %1193 = arith.subf %1192, %1189 : vector<8x128xf32>
    %1194 = arith.select %1191, %1193, %1189 : vector<8x128xi1>, vector<8x128xf32>
    %1195 = arith.addf %1157, %1194 : vector<8x128xf32>
    %1196 = vector.extract_strided_slice %16 {offsets = [31, 0], sizes = [1, 128], strides = [1, 1]} : vector<64x128xf32> to vector<1x128xf32>
    %1197 = vector.broadcast %1196 : vector<1x128xf32> to vector<8x128xf32>
    %1198 = arith.subf %13, %1197 : vector<8x128xf32>
    %1199 = math.absf %1198 : vector<8x128xf32>
    %cst_350 = arith.constant 0.327591091 : f32
    %1200 = vector.broadcast %cst_350 : f32 to vector<8x128xf32>
    %1201 = arith.mulf %1200, %1199 : vector<8x128xf32>
    %cst_351 = arith.constant 1.000000e+00 : f32
    %1202 = vector.broadcast %cst_351 : f32 to vector<8x128xf32>
    %1203 = arith.addf %1202, %1201 : vector<8x128xf32>
    %1204 = tpu.reciprocal %1203 {approx = true} : vector<8x128xf32> -> vector<8x128xf32>
    %1205 = arith.mulf %1203, %1204 : vector<8x128xf32>
    %cst_352 = arith.constant 2.000000e+00 : f32
    %1206 = vector.broadcast %cst_352 : f32 to vector<8x128xf32>
    %1207 = arith.subf %1206, %1205 : vector<8x128xf32>
    %1208 = arith.mulf %1204, %1207 : vector<8x128xf32>
    %cst_353 = arith.constant 0.53070271 : f32
    %1209 = vector.broadcast %cst_353 : f32 to vector<8x128xf32>
    %1210 = arith.mulf %1209, %1208 : vector<8x128xf32>
    %cst_354 = arith.constant -0.72657603 : f32
    %1211 = vector.broadcast %cst_354 : f32 to vector<8x128xf32>
    %1212 = arith.addf %1210, %1211 : vector<8x128xf32>
    %1213 = arith.mulf %1212, %1208 : vector<8x128xf32>
    %cst_355 = arith.constant 0.710706889 : f32
    %1214 = vector.broadcast %cst_355 : f32 to vector<8x128xf32>
    %1215 = arith.addf %1213, %1214 : vector<8x128xf32>
    %1216 = arith.mulf %1215, %1208 : vector<8x128xf32>
    %cst_356 = arith.constant -0.142248362 : f32
    %1217 = vector.broadcast %cst_356 : f32 to vector<8x128xf32>
    %1218 = arith.addf %1216, %1217 : vector<8x128xf32>
    %1219 = arith.mulf %1218, %1208 : vector<8x128xf32>
    %cst_357 = arith.constant 0.127414793 : f32
    %1220 = vector.broadcast %cst_357 : f32 to vector<8x128xf32>
    %1221 = arith.addf %1219, %1220 : vector<8x128xf32>
    %1222 = arith.mulf %1221, %1208 : vector<8x128xf32>
    %1223 = arith.mulf %1198, %1198 : vector<8x128xf32>
    %cst_358 = arith.constant 0.000000e+00 : f32
    %1224 = vector.broadcast %cst_358 : f32 to vector<8x128xf32>
    %1225 = arith.subf %1224, %1223 : vector<8x128xf32>
    %1226 = math.exp %1225 : vector<8x128xf32>
    %1227 = arith.mulf %1222, %1226 : vector<8x128xf32>
    %cst_359 = arith.constant 0.000000e+00 : f32
    %1228 = vector.broadcast %cst_359 : f32 to vector<8x128xf32>
    %1229 = arith.cmpf oge, %1198, %1228 : vector<8x128xf32>
    %cst_360 = arith.constant 1.000000e+00 : f32
    %1230 = vector.broadcast %cst_360 : f32 to vector<8x128xf32>
    %1231 = arith.subf %1230, %1227 : vector<8x128xf32>
    %1232 = arith.select %1229, %1231, %1227 : vector<8x128xi1>, vector<8x128xf32>
    %1233 = arith.addf %1195, %1232 : vector<8x128xf32>
    %1234 = vector.extract_strided_slice %16 {offsets = [32, 0], sizes = [1, 128], strides = [1, 1]} : vector<64x128xf32> to vector<1x128xf32>
    %1235 = vector.broadcast %1234 : vector<1x128xf32> to vector<8x128xf32>
    %1236 = arith.subf %13, %1235 : vector<8x128xf32>
    %1237 = math.absf %1236 : vector<8x128xf32>
    %cst_361 = arith.constant 0.327591091 : f32
    %1238 = vector.broadcast %cst_361 : f32 to vector<8x128xf32>
    %1239 = arith.mulf %1238, %1237 : vector<8x128xf32>
    %cst_362 = arith.constant 1.000000e+00 : f32
    %1240 = vector.broadcast %cst_362 : f32 to vector<8x128xf32>
    %1241 = arith.addf %1240, %1239 : vector<8x128xf32>
    %1242 = tpu.reciprocal %1241 {approx = true} : vector<8x128xf32> -> vector<8x128xf32>
    %1243 = arith.mulf %1241, %1242 : vector<8x128xf32>
    %cst_363 = arith.constant 2.000000e+00 : f32
    %1244 = vector.broadcast %cst_363 : f32 to vector<8x128xf32>
    %1245 = arith.subf %1244, %1243 : vector<8x128xf32>
    %1246 = arith.mulf %1242, %1245 : vector<8x128xf32>
    %cst_364 = arith.constant 0.53070271 : f32
    %1247 = vector.broadcast %cst_364 : f32 to vector<8x128xf32>
    %1248 = arith.mulf %1247, %1246 : vector<8x128xf32>
    %cst_365 = arith.constant -0.72657603 : f32
    %1249 = vector.broadcast %cst_365 : f32 to vector<8x128xf32>
    %1250 = arith.addf %1248, %1249 : vector<8x128xf32>
    %1251 = arith.mulf %1250, %1246 : vector<8x128xf32>
    %cst_366 = arith.constant 0.710706889 : f32
    %1252 = vector.broadcast %cst_366 : f32 to vector<8x128xf32>
    %1253 = arith.addf %1251, %1252 : vector<8x128xf32>
    %1254 = arith.mulf %1253, %1246 : vector<8x128xf32>
    %cst_367 = arith.constant -0.142248362 : f32
    %1255 = vector.broadcast %cst_367 : f32 to vector<8x128xf32>
    %1256 = arith.addf %1254, %1255 : vector<8x128xf32>
    %1257 = arith.mulf %1256, %1246 : vector<8x128xf32>
    %cst_368 = arith.constant 0.127414793 : f32
    %1258 = vector.broadcast %cst_368 : f32 to vector<8x128xf32>
    %1259 = arith.addf %1257, %1258 : vector<8x128xf32>
    %1260 = arith.mulf %1259, %1246 : vector<8x128xf32>
    %1261 = arith.mulf %1236, %1236 : vector<8x128xf32>
    %cst_369 = arith.constant 0.000000e+00 : f32
    %1262 = vector.broadcast %cst_369 : f32 to vector<8x128xf32>
    %1263 = arith.subf %1262, %1261 : vector<8x128xf32>
    %1264 = math.exp %1263 : vector<8x128xf32>
    %1265 = arith.mulf %1260, %1264 : vector<8x128xf32>
    %cst_370 = arith.constant 0.000000e+00 : f32
    %1266 = vector.broadcast %cst_370 : f32 to vector<8x128xf32>
    %1267 = arith.cmpf oge, %1236, %1266 : vector<8x128xf32>
    %cst_371 = arith.constant 1.000000e+00 : f32
    %1268 = vector.broadcast %cst_371 : f32 to vector<8x128xf32>
    %1269 = arith.subf %1268, %1265 : vector<8x128xf32>
    %1270 = arith.select %1267, %1269, %1265 : vector<8x128xi1>, vector<8x128xf32>
    %1271 = arith.addf %1233, %1270 : vector<8x128xf32>
    %1272 = vector.extract_strided_slice %16 {offsets = [33, 0], sizes = [1, 128], strides = [1, 1]} : vector<64x128xf32> to vector<1x128xf32>
    %1273 = vector.broadcast %1272 : vector<1x128xf32> to vector<8x128xf32>
    %1274 = arith.subf %13, %1273 : vector<8x128xf32>
    %1275 = math.absf %1274 : vector<8x128xf32>
    %cst_372 = arith.constant 0.327591091 : f32
    %1276 = vector.broadcast %cst_372 : f32 to vector<8x128xf32>
    %1277 = arith.mulf %1276, %1275 : vector<8x128xf32>
    %cst_373 = arith.constant 1.000000e+00 : f32
    %1278 = vector.broadcast %cst_373 : f32 to vector<8x128xf32>
    %1279 = arith.addf %1278, %1277 : vector<8x128xf32>
    %1280 = tpu.reciprocal %1279 {approx = true} : vector<8x128xf32> -> vector<8x128xf32>
    %1281 = arith.mulf %1279, %1280 : vector<8x128xf32>
    %cst_374 = arith.constant 2.000000e+00 : f32
    %1282 = vector.broadcast %cst_374 : f32 to vector<8x128xf32>
    %1283 = arith.subf %1282, %1281 : vector<8x128xf32>
    %1284 = arith.mulf %1280, %1283 : vector<8x128xf32>
    %cst_375 = arith.constant 0.53070271 : f32
    %1285 = vector.broadcast %cst_375 : f32 to vector<8x128xf32>
    %1286 = arith.mulf %1285, %1284 : vector<8x128xf32>
    %cst_376 = arith.constant -0.72657603 : f32
    %1287 = vector.broadcast %cst_376 : f32 to vector<8x128xf32>
    %1288 = arith.addf %1286, %1287 : vector<8x128xf32>
    %1289 = arith.mulf %1288, %1284 : vector<8x128xf32>
    %cst_377 = arith.constant 0.710706889 : f32
    %1290 = vector.broadcast %cst_377 : f32 to vector<8x128xf32>
    %1291 = arith.addf %1289, %1290 : vector<8x128xf32>
    %1292 = arith.mulf %1291, %1284 : vector<8x128xf32>
    %cst_378 = arith.constant -0.142248362 : f32
    %1293 = vector.broadcast %cst_378 : f32 to vector<8x128xf32>
    %1294 = arith.addf %1292, %1293 : vector<8x128xf32>
    %1295 = arith.mulf %1294, %1284 : vector<8x128xf32>
    %cst_379 = arith.constant 0.127414793 : f32
    %1296 = vector.broadcast %cst_379 : f32 to vector<8x128xf32>
    %1297 = arith.addf %1295, %1296 : vector<8x128xf32>
    %1298 = arith.mulf %1297, %1284 : vector<8x128xf32>
    %1299 = arith.mulf %1274, %1274 : vector<8x128xf32>
    %cst_380 = arith.constant 0.000000e+00 : f32
    %1300 = vector.broadcast %cst_380 : f32 to vector<8x128xf32>
    %1301 = arith.subf %1300, %1299 : vector<8x128xf32>
    %1302 = math.exp %1301 : vector<8x128xf32>
    %1303 = arith.mulf %1298, %1302 : vector<8x128xf32>
    %cst_381 = arith.constant 0.000000e+00 : f32
    %1304 = vector.broadcast %cst_381 : f32 to vector<8x128xf32>
    %1305 = arith.cmpf oge, %1274, %1304 : vector<8x128xf32>
    %cst_382 = arith.constant 1.000000e+00 : f32
    %1306 = vector.broadcast %cst_382 : f32 to vector<8x128xf32>
    %1307 = arith.subf %1306, %1303 : vector<8x128xf32>
    %1308 = arith.select %1305, %1307, %1303 : vector<8x128xi1>, vector<8x128xf32>
    %1309 = arith.addf %1271, %1308 : vector<8x128xf32>
    %1310 = vector.extract_strided_slice %16 {offsets = [34, 0], sizes = [1, 128], strides = [1, 1]} : vector<64x128xf32> to vector<1x128xf32>
    %1311 = vector.broadcast %1310 : vector<1x128xf32> to vector<8x128xf32>
    %1312 = arith.subf %13, %1311 : vector<8x128xf32>
    %1313 = math.absf %1312 : vector<8x128xf32>
    %cst_383 = arith.constant 0.327591091 : f32
    %1314 = vector.broadcast %cst_383 : f32 to vector<8x128xf32>
    %1315 = arith.mulf %1314, %1313 : vector<8x128xf32>
    %cst_384 = arith.constant 1.000000e+00 : f32
    %1316 = vector.broadcast %cst_384 : f32 to vector<8x128xf32>
    %1317 = arith.addf %1316, %1315 : vector<8x128xf32>
    %1318 = tpu.reciprocal %1317 {approx = true} : vector<8x128xf32> -> vector<8x128xf32>
    %1319 = arith.mulf %1317, %1318 : vector<8x128xf32>
    %cst_385 = arith.constant 2.000000e+00 : f32
    %1320 = vector.broadcast %cst_385 : f32 to vector<8x128xf32>
    %1321 = arith.subf %1320, %1319 : vector<8x128xf32>
    %1322 = arith.mulf %1318, %1321 : vector<8x128xf32>
    %cst_386 = arith.constant 0.53070271 : f32
    %1323 = vector.broadcast %cst_386 : f32 to vector<8x128xf32>
    %1324 = arith.mulf %1323, %1322 : vector<8x128xf32>
    %cst_387 = arith.constant -0.72657603 : f32
    %1325 = vector.broadcast %cst_387 : f32 to vector<8x128xf32>
    %1326 = arith.addf %1324, %1325 : vector<8x128xf32>
    %1327 = arith.mulf %1326, %1322 : vector<8x128xf32>
    %cst_388 = arith.constant 0.710706889 : f32
    %1328 = vector.broadcast %cst_388 : f32 to vector<8x128xf32>
    %1329 = arith.addf %1327, %1328 : vector<8x128xf32>
    %1330 = arith.mulf %1329, %1322 : vector<8x128xf32>
    %cst_389 = arith.constant -0.142248362 : f32
    %1331 = vector.broadcast %cst_389 : f32 to vector<8x128xf32>
    %1332 = arith.addf %1330, %1331 : vector<8x128xf32>
    %1333 = arith.mulf %1332, %1322 : vector<8x128xf32>
    %cst_390 = arith.constant 0.127414793 : f32
    %1334 = vector.broadcast %cst_390 : f32 to vector<8x128xf32>
    %1335 = arith.addf %1333, %1334 : vector<8x128xf32>
    %1336 = arith.mulf %1335, %1322 : vector<8x128xf32>
    %1337 = arith.mulf %1312, %1312 : vector<8x128xf32>
    %cst_391 = arith.constant 0.000000e+00 : f32
    %1338 = vector.broadcast %cst_391 : f32 to vector<8x128xf32>
    %1339 = arith.subf %1338, %1337 : vector<8x128xf32>
    %1340 = math.exp %1339 : vector<8x128xf32>
    %1341 = arith.mulf %1336, %1340 : vector<8x128xf32>
    %cst_392 = arith.constant 0.000000e+00 : f32
    %1342 = vector.broadcast %cst_392 : f32 to vector<8x128xf32>
    %1343 = arith.cmpf oge, %1312, %1342 : vector<8x128xf32>
    %cst_393 = arith.constant 1.000000e+00 : f32
    %1344 = vector.broadcast %cst_393 : f32 to vector<8x128xf32>
    %1345 = arith.subf %1344, %1341 : vector<8x128xf32>
    %1346 = arith.select %1343, %1345, %1341 : vector<8x128xi1>, vector<8x128xf32>
    %1347 = arith.addf %1309, %1346 : vector<8x128xf32>
    %1348 = vector.extract_strided_slice %16 {offsets = [35, 0], sizes = [1, 128], strides = [1, 1]} : vector<64x128xf32> to vector<1x128xf32>
    %1349 = vector.broadcast %1348 : vector<1x128xf32> to vector<8x128xf32>
    %1350 = arith.subf %13, %1349 : vector<8x128xf32>
    %1351 = math.absf %1350 : vector<8x128xf32>
    %cst_394 = arith.constant 0.327591091 : f32
    %1352 = vector.broadcast %cst_394 : f32 to vector<8x128xf32>
    %1353 = arith.mulf %1352, %1351 : vector<8x128xf32>
    %cst_395 = arith.constant 1.000000e+00 : f32
    %1354 = vector.broadcast %cst_395 : f32 to vector<8x128xf32>
    %1355 = arith.addf %1354, %1353 : vector<8x128xf32>
    %1356 = tpu.reciprocal %1355 {approx = true} : vector<8x128xf32> -> vector<8x128xf32>
    %1357 = arith.mulf %1355, %1356 : vector<8x128xf32>
    %cst_396 = arith.constant 2.000000e+00 : f32
    %1358 = vector.broadcast %cst_396 : f32 to vector<8x128xf32>
    %1359 = arith.subf %1358, %1357 : vector<8x128xf32>
    %1360 = arith.mulf %1356, %1359 : vector<8x128xf32>
    %cst_397 = arith.constant 0.53070271 : f32
    %1361 = vector.broadcast %cst_397 : f32 to vector<8x128xf32>
    %1362 = arith.mulf %1361, %1360 : vector<8x128xf32>
    %cst_398 = arith.constant -0.72657603 : f32
    %1363 = vector.broadcast %cst_398 : f32 to vector<8x128xf32>
    %1364 = arith.addf %1362, %1363 : vector<8x128xf32>
    %1365 = arith.mulf %1364, %1360 : vector<8x128xf32>
    %cst_399 = arith.constant 0.710706889 : f32
    %1366 = vector.broadcast %cst_399 : f32 to vector<8x128xf32>
    %1367 = arith.addf %1365, %1366 : vector<8x128xf32>
    %1368 = arith.mulf %1367, %1360 : vector<8x128xf32>
    %cst_400 = arith.constant -0.142248362 : f32
    %1369 = vector.broadcast %cst_400 : f32 to vector<8x128xf32>
    %1370 = arith.addf %1368, %1369 : vector<8x128xf32>
    %1371 = arith.mulf %1370, %1360 : vector<8x128xf32>
    %cst_401 = arith.constant 0.127414793 : f32
    %1372 = vector.broadcast %cst_401 : f32 to vector<8x128xf32>
    %1373 = arith.addf %1371, %1372 : vector<8x128xf32>
    %1374 = arith.mulf %1373, %1360 : vector<8x128xf32>
    %1375 = arith.mulf %1350, %1350 : vector<8x128xf32>
    %cst_402 = arith.constant 0.000000e+00 : f32
    %1376 = vector.broadcast %cst_402 : f32 to vector<8x128xf32>
    %1377 = arith.subf %1376, %1375 : vector<8x128xf32>
    %1378 = math.exp %1377 : vector<8x128xf32>
    %1379 = arith.mulf %1374, %1378 : vector<8x128xf32>
    %cst_403 = arith.constant 0.000000e+00 : f32
    %1380 = vector.broadcast %cst_403 : f32 to vector<8x128xf32>
    %1381 = arith.cmpf oge, %1350, %1380 : vector<8x128xf32>
    %cst_404 = arith.constant 1.000000e+00 : f32
    %1382 = vector.broadcast %cst_404 : f32 to vector<8x128xf32>
    %1383 = arith.subf %1382, %1379 : vector<8x128xf32>
    %1384 = arith.select %1381, %1383, %1379 : vector<8x128xi1>, vector<8x128xf32>
    %1385 = arith.addf %1347, %1384 : vector<8x128xf32>
    %1386 = vector.extract_strided_slice %16 {offsets = [36, 0], sizes = [1, 128], strides = [1, 1]} : vector<64x128xf32> to vector<1x128xf32>
    %1387 = vector.broadcast %1386 : vector<1x128xf32> to vector<8x128xf32>
    %1388 = arith.subf %13, %1387 : vector<8x128xf32>
    %1389 = math.absf %1388 : vector<8x128xf32>
    %cst_405 = arith.constant 0.327591091 : f32
    %1390 = vector.broadcast %cst_405 : f32 to vector<8x128xf32>
    %1391 = arith.mulf %1390, %1389 : vector<8x128xf32>
    %cst_406 = arith.constant 1.000000e+00 : f32
    %1392 = vector.broadcast %cst_406 : f32 to vector<8x128xf32>
    %1393 = arith.addf %1392, %1391 : vector<8x128xf32>
    %1394 = tpu.reciprocal %1393 {approx = true} : vector<8x128xf32> -> vector<8x128xf32>
    %1395 = arith.mulf %1393, %1394 : vector<8x128xf32>
    %cst_407 = arith.constant 2.000000e+00 : f32
    %1396 = vector.broadcast %cst_407 : f32 to vector<8x128xf32>
    %1397 = arith.subf %1396, %1395 : vector<8x128xf32>
    %1398 = arith.mulf %1394, %1397 : vector<8x128xf32>
    %cst_408 = arith.constant 0.53070271 : f32
    %1399 = vector.broadcast %cst_408 : f32 to vector<8x128xf32>
    %1400 = arith.mulf %1399, %1398 : vector<8x128xf32>
    %cst_409 = arith.constant -0.72657603 : f32
    %1401 = vector.broadcast %cst_409 : f32 to vector<8x128xf32>
    %1402 = arith.addf %1400, %1401 : vector<8x128xf32>
    %1403 = arith.mulf %1402, %1398 : vector<8x128xf32>
    %cst_410 = arith.constant 0.710706889 : f32
    %1404 = vector.broadcast %cst_410 : f32 to vector<8x128xf32>
    %1405 = arith.addf %1403, %1404 : vector<8x128xf32>
    %1406 = arith.mulf %1405, %1398 : vector<8x128xf32>
    %cst_411 = arith.constant -0.142248362 : f32
    %1407 = vector.broadcast %cst_411 : f32 to vector<8x128xf32>
    %1408 = arith.addf %1406, %1407 : vector<8x128xf32>
    %1409 = arith.mulf %1408, %1398 : vector<8x128xf32>
    %cst_412 = arith.constant 0.127414793 : f32
    %1410 = vector.broadcast %cst_412 : f32 to vector<8x128xf32>
    %1411 = arith.addf %1409, %1410 : vector<8x128xf32>
    %1412 = arith.mulf %1411, %1398 : vector<8x128xf32>
    %1413 = arith.mulf %1388, %1388 : vector<8x128xf32>
    %cst_413 = arith.constant 0.000000e+00 : f32
    %1414 = vector.broadcast %cst_413 : f32 to vector<8x128xf32>
    %1415 = arith.subf %1414, %1413 : vector<8x128xf32>
    %1416 = math.exp %1415 : vector<8x128xf32>
    %1417 = arith.mulf %1412, %1416 : vector<8x128xf32>
    %cst_414 = arith.constant 0.000000e+00 : f32
    %1418 = vector.broadcast %cst_414 : f32 to vector<8x128xf32>
    %1419 = arith.cmpf oge, %1388, %1418 : vector<8x128xf32>
    %cst_415 = arith.constant 1.000000e+00 : f32
    %1420 = vector.broadcast %cst_415 : f32 to vector<8x128xf32>
    %1421 = arith.subf %1420, %1417 : vector<8x128xf32>
    %1422 = arith.select %1419, %1421, %1417 : vector<8x128xi1>, vector<8x128xf32>
    %1423 = arith.addf %1385, %1422 : vector<8x128xf32>
    %1424 = vector.extract_strided_slice %16 {offsets = [37, 0], sizes = [1, 128], strides = [1, 1]} : vector<64x128xf32> to vector<1x128xf32>
    %1425 = vector.broadcast %1424 : vector<1x128xf32> to vector<8x128xf32>
    %1426 = arith.subf %13, %1425 : vector<8x128xf32>
    %1427 = math.absf %1426 : vector<8x128xf32>
    %cst_416 = arith.constant 0.327591091 : f32
    %1428 = vector.broadcast %cst_416 : f32 to vector<8x128xf32>
    %1429 = arith.mulf %1428, %1427 : vector<8x128xf32>
    %cst_417 = arith.constant 1.000000e+00 : f32
    %1430 = vector.broadcast %cst_417 : f32 to vector<8x128xf32>
    %1431 = arith.addf %1430, %1429 : vector<8x128xf32>
    %1432 = tpu.reciprocal %1431 {approx = true} : vector<8x128xf32> -> vector<8x128xf32>
    %1433 = arith.mulf %1431, %1432 : vector<8x128xf32>
    %cst_418 = arith.constant 2.000000e+00 : f32
    %1434 = vector.broadcast %cst_418 : f32 to vector<8x128xf32>
    %1435 = arith.subf %1434, %1433 : vector<8x128xf32>
    %1436 = arith.mulf %1432, %1435 : vector<8x128xf32>
    %cst_419 = arith.constant 0.53070271 : f32
    %1437 = vector.broadcast %cst_419 : f32 to vector<8x128xf32>
    %1438 = arith.mulf %1437, %1436 : vector<8x128xf32>
    %cst_420 = arith.constant -0.72657603 : f32
    %1439 = vector.broadcast %cst_420 : f32 to vector<8x128xf32>
    %1440 = arith.addf %1438, %1439 : vector<8x128xf32>
    %1441 = arith.mulf %1440, %1436 : vector<8x128xf32>
    %cst_421 = arith.constant 0.710706889 : f32
    %1442 = vector.broadcast %cst_421 : f32 to vector<8x128xf32>
    %1443 = arith.addf %1441, %1442 : vector<8x128xf32>
    %1444 = arith.mulf %1443, %1436 : vector<8x128xf32>
    %cst_422 = arith.constant -0.142248362 : f32
    %1445 = vector.broadcast %cst_422 : f32 to vector<8x128xf32>
    %1446 = arith.addf %1444, %1445 : vector<8x128xf32>
    %1447 = arith.mulf %1446, %1436 : vector<8x128xf32>
    %cst_423 = arith.constant 0.127414793 : f32
    %1448 = vector.broadcast %cst_423 : f32 to vector<8x128xf32>
    %1449 = arith.addf %1447, %1448 : vector<8x128xf32>
    %1450 = arith.mulf %1449, %1436 : vector<8x128xf32>
    %1451 = arith.mulf %1426, %1426 : vector<8x128xf32>
    %cst_424 = arith.constant 0.000000e+00 : f32
    %1452 = vector.broadcast %cst_424 : f32 to vector<8x128xf32>
    %1453 = arith.subf %1452, %1451 : vector<8x128xf32>
    %1454 = math.exp %1453 : vector<8x128xf32>
    %1455 = arith.mulf %1450, %1454 : vector<8x128xf32>
    %cst_425 = arith.constant 0.000000e+00 : f32
    %1456 = vector.broadcast %cst_425 : f32 to vector<8x128xf32>
    %1457 = arith.cmpf oge, %1426, %1456 : vector<8x128xf32>
    %cst_426 = arith.constant 1.000000e+00 : f32
    %1458 = vector.broadcast %cst_426 : f32 to vector<8x128xf32>
    %1459 = arith.subf %1458, %1455 : vector<8x128xf32>
    %1460 = arith.select %1457, %1459, %1455 : vector<8x128xi1>, vector<8x128xf32>
    %1461 = arith.addf %1423, %1460 : vector<8x128xf32>
    %1462 = vector.extract_strided_slice %16 {offsets = [38, 0], sizes = [1, 128], strides = [1, 1]} : vector<64x128xf32> to vector<1x128xf32>
    %1463 = vector.broadcast %1462 : vector<1x128xf32> to vector<8x128xf32>
    %1464 = arith.subf %13, %1463 : vector<8x128xf32>
    %1465 = math.absf %1464 : vector<8x128xf32>
    %cst_427 = arith.constant 0.327591091 : f32
    %1466 = vector.broadcast %cst_427 : f32 to vector<8x128xf32>
    %1467 = arith.mulf %1466, %1465 : vector<8x128xf32>
    %cst_428 = arith.constant 1.000000e+00 : f32
    %1468 = vector.broadcast %cst_428 : f32 to vector<8x128xf32>
    %1469 = arith.addf %1468, %1467 : vector<8x128xf32>
    %1470 = tpu.reciprocal %1469 {approx = true} : vector<8x128xf32> -> vector<8x128xf32>
    %1471 = arith.mulf %1469, %1470 : vector<8x128xf32>
    %cst_429 = arith.constant 2.000000e+00 : f32
    %1472 = vector.broadcast %cst_429 : f32 to vector<8x128xf32>
    %1473 = arith.subf %1472, %1471 : vector<8x128xf32>
    %1474 = arith.mulf %1470, %1473 : vector<8x128xf32>
    %cst_430 = arith.constant 0.53070271 : f32
    %1475 = vector.broadcast %cst_430 : f32 to vector<8x128xf32>
    %1476 = arith.mulf %1475, %1474 : vector<8x128xf32>
    %cst_431 = arith.constant -0.72657603 : f32
    %1477 = vector.broadcast %cst_431 : f32 to vector<8x128xf32>
    %1478 = arith.addf %1476, %1477 : vector<8x128xf32>
    %1479 = arith.mulf %1478, %1474 : vector<8x128xf32>
    %cst_432 = arith.constant 0.710706889 : f32
    %1480 = vector.broadcast %cst_432 : f32 to vector<8x128xf32>
    %1481 = arith.addf %1479, %1480 : vector<8x128xf32>
    %1482 = arith.mulf %1481, %1474 : vector<8x128xf32>
    %cst_433 = arith.constant -0.142248362 : f32
    %1483 = vector.broadcast %cst_433 : f32 to vector<8x128xf32>
    %1484 = arith.addf %1482, %1483 : vector<8x128xf32>
    %1485 = arith.mulf %1484, %1474 : vector<8x128xf32>
    %cst_434 = arith.constant 0.127414793 : f32
    %1486 = vector.broadcast %cst_434 : f32 to vector<8x128xf32>
    %1487 = arith.addf %1485, %1486 : vector<8x128xf32>
    %1488 = arith.mulf %1487, %1474 : vector<8x128xf32>
    %1489 = arith.mulf %1464, %1464 : vector<8x128xf32>
    %cst_435 = arith.constant 0.000000e+00 : f32
    %1490 = vector.broadcast %cst_435 : f32 to vector<8x128xf32>
    %1491 = arith.subf %1490, %1489 : vector<8x128xf32>
    %1492 = math.exp %1491 : vector<8x128xf32>
    %1493 = arith.mulf %1488, %1492 : vector<8x128xf32>
    %cst_436 = arith.constant 0.000000e+00 : f32
    %1494 = vector.broadcast %cst_436 : f32 to vector<8x128xf32>
    %1495 = arith.cmpf oge, %1464, %1494 : vector<8x128xf32>
    %cst_437 = arith.constant 1.000000e+00 : f32
    %1496 = vector.broadcast %cst_437 : f32 to vector<8x128xf32>
    %1497 = arith.subf %1496, %1493 : vector<8x128xf32>
    %1498 = arith.select %1495, %1497, %1493 : vector<8x128xi1>, vector<8x128xf32>
    %1499 = arith.addf %1461, %1498 : vector<8x128xf32>
    %1500 = vector.extract_strided_slice %16 {offsets = [39, 0], sizes = [1, 128], strides = [1, 1]} : vector<64x128xf32> to vector<1x128xf32>
    %1501 = vector.broadcast %1500 : vector<1x128xf32> to vector<8x128xf32>
    %1502 = arith.subf %13, %1501 : vector<8x128xf32>
    %1503 = math.absf %1502 : vector<8x128xf32>
    %cst_438 = arith.constant 0.327591091 : f32
    %1504 = vector.broadcast %cst_438 : f32 to vector<8x128xf32>
    %1505 = arith.mulf %1504, %1503 : vector<8x128xf32>
    %cst_439 = arith.constant 1.000000e+00 : f32
    %1506 = vector.broadcast %cst_439 : f32 to vector<8x128xf32>
    %1507 = arith.addf %1506, %1505 : vector<8x128xf32>
    %1508 = tpu.reciprocal %1507 {approx = true} : vector<8x128xf32> -> vector<8x128xf32>
    %1509 = arith.mulf %1507, %1508 : vector<8x128xf32>
    %cst_440 = arith.constant 2.000000e+00 : f32
    %1510 = vector.broadcast %cst_440 : f32 to vector<8x128xf32>
    %1511 = arith.subf %1510, %1509 : vector<8x128xf32>
    %1512 = arith.mulf %1508, %1511 : vector<8x128xf32>
    %cst_441 = arith.constant 0.53070271 : f32
    %1513 = vector.broadcast %cst_441 : f32 to vector<8x128xf32>
    %1514 = arith.mulf %1513, %1512 : vector<8x128xf32>
    %cst_442 = arith.constant -0.72657603 : f32
    %1515 = vector.broadcast %cst_442 : f32 to vector<8x128xf32>
    %1516 = arith.addf %1514, %1515 : vector<8x128xf32>
    %1517 = arith.mulf %1516, %1512 : vector<8x128xf32>
    %cst_443 = arith.constant 0.710706889 : f32
    %1518 = vector.broadcast %cst_443 : f32 to vector<8x128xf32>
    %1519 = arith.addf %1517, %1518 : vector<8x128xf32>
    %1520 = arith.mulf %1519, %1512 : vector<8x128xf32>
    %cst_444 = arith.constant -0.142248362 : f32
    %1521 = vector.broadcast %cst_444 : f32 to vector<8x128xf32>
    %1522 = arith.addf %1520, %1521 : vector<8x128xf32>
    %1523 = arith.mulf %1522, %1512 : vector<8x128xf32>
    %cst_445 = arith.constant 0.127414793 : f32
    %1524 = vector.broadcast %cst_445 : f32 to vector<8x128xf32>
    %1525 = arith.addf %1523, %1524 : vector<8x128xf32>
    %1526 = arith.mulf %1525, %1512 : vector<8x128xf32>
    %1527 = arith.mulf %1502, %1502 : vector<8x128xf32>
    %cst_446 = arith.constant 0.000000e+00 : f32
    %1528 = vector.broadcast %cst_446 : f32 to vector<8x128xf32>
    %1529 = arith.subf %1528, %1527 : vector<8x128xf32>
    %1530 = math.exp %1529 : vector<8x128xf32>
    %1531 = arith.mulf %1526, %1530 : vector<8x128xf32>
    %cst_447 = arith.constant 0.000000e+00 : f32
    %1532 = vector.broadcast %cst_447 : f32 to vector<8x128xf32>
    %1533 = arith.cmpf oge, %1502, %1532 : vector<8x128xf32>
    %cst_448 = arith.constant 1.000000e+00 : f32
    %1534 = vector.broadcast %cst_448 : f32 to vector<8x128xf32>
    %1535 = arith.subf %1534, %1531 : vector<8x128xf32>
    %1536 = arith.select %1533, %1535, %1531 : vector<8x128xi1>, vector<8x128xf32>
    %1537 = arith.addf %1499, %1536 : vector<8x128xf32>
    %1538 = vector.extract_strided_slice %16 {offsets = [40, 0], sizes = [1, 128], strides = [1, 1]} : vector<64x128xf32> to vector<1x128xf32>
    %1539 = vector.broadcast %1538 : vector<1x128xf32> to vector<8x128xf32>
    %1540 = arith.subf %13, %1539 : vector<8x128xf32>
    %1541 = math.absf %1540 : vector<8x128xf32>
    %cst_449 = arith.constant 0.327591091 : f32
    %1542 = vector.broadcast %cst_449 : f32 to vector<8x128xf32>
    %1543 = arith.mulf %1542, %1541 : vector<8x128xf32>
    %cst_450 = arith.constant 1.000000e+00 : f32
    %1544 = vector.broadcast %cst_450 : f32 to vector<8x128xf32>
    %1545 = arith.addf %1544, %1543 : vector<8x128xf32>
    %1546 = tpu.reciprocal %1545 {approx = true} : vector<8x128xf32> -> vector<8x128xf32>
    %1547 = arith.mulf %1545, %1546 : vector<8x128xf32>
    %cst_451 = arith.constant 2.000000e+00 : f32
    %1548 = vector.broadcast %cst_451 : f32 to vector<8x128xf32>
    %1549 = arith.subf %1548, %1547 : vector<8x128xf32>
    %1550 = arith.mulf %1546, %1549 : vector<8x128xf32>
    %cst_452 = arith.constant 0.53070271 : f32
    %1551 = vector.broadcast %cst_452 : f32 to vector<8x128xf32>
    %1552 = arith.mulf %1551, %1550 : vector<8x128xf32>
    %cst_453 = arith.constant -0.72657603 : f32
    %1553 = vector.broadcast %cst_453 : f32 to vector<8x128xf32>
    %1554 = arith.addf %1552, %1553 : vector<8x128xf32>
    %1555 = arith.mulf %1554, %1550 : vector<8x128xf32>
    %cst_454 = arith.constant 0.710706889 : f32
    %1556 = vector.broadcast %cst_454 : f32 to vector<8x128xf32>
    %1557 = arith.addf %1555, %1556 : vector<8x128xf32>
    %1558 = arith.mulf %1557, %1550 : vector<8x128xf32>
    %cst_455 = arith.constant -0.142248362 : f32
    %1559 = vector.broadcast %cst_455 : f32 to vector<8x128xf32>
    %1560 = arith.addf %1558, %1559 : vector<8x128xf32>
    %1561 = arith.mulf %1560, %1550 : vector<8x128xf32>
    %cst_456 = arith.constant 0.127414793 : f32
    %1562 = vector.broadcast %cst_456 : f32 to vector<8x128xf32>
    %1563 = arith.addf %1561, %1562 : vector<8x128xf32>
    %1564 = arith.mulf %1563, %1550 : vector<8x128xf32>
    %1565 = arith.mulf %1540, %1540 : vector<8x128xf32>
    %cst_457 = arith.constant 0.000000e+00 : f32
    %1566 = vector.broadcast %cst_457 : f32 to vector<8x128xf32>
    %1567 = arith.subf %1566, %1565 : vector<8x128xf32>
    %1568 = math.exp %1567 : vector<8x128xf32>
    %1569 = arith.mulf %1564, %1568 : vector<8x128xf32>
    %cst_458 = arith.constant 0.000000e+00 : f32
    %1570 = vector.broadcast %cst_458 : f32 to vector<8x128xf32>
    %1571 = arith.cmpf oge, %1540, %1570 : vector<8x128xf32>
    %cst_459 = arith.constant 1.000000e+00 : f32
    %1572 = vector.broadcast %cst_459 : f32 to vector<8x128xf32>
    %1573 = arith.subf %1572, %1569 : vector<8x128xf32>
    %1574 = arith.select %1571, %1573, %1569 : vector<8x128xi1>, vector<8x128xf32>
    %1575 = arith.addf %1537, %1574 : vector<8x128xf32>
    %1576 = vector.extract_strided_slice %16 {offsets = [41, 0], sizes = [1, 128], strides = [1, 1]} : vector<64x128xf32> to vector<1x128xf32>
    %1577 = vector.broadcast %1576 : vector<1x128xf32> to vector<8x128xf32>
    %1578 = arith.subf %13, %1577 : vector<8x128xf32>
    %1579 = math.absf %1578 : vector<8x128xf32>
    %cst_460 = arith.constant 0.327591091 : f32
    %1580 = vector.broadcast %cst_460 : f32 to vector<8x128xf32>
    %1581 = arith.mulf %1580, %1579 : vector<8x128xf32>
    %cst_461 = arith.constant 1.000000e+00 : f32
    %1582 = vector.broadcast %cst_461 : f32 to vector<8x128xf32>
    %1583 = arith.addf %1582, %1581 : vector<8x128xf32>
    %1584 = tpu.reciprocal %1583 {approx = true} : vector<8x128xf32> -> vector<8x128xf32>
    %1585 = arith.mulf %1583, %1584 : vector<8x128xf32>
    %cst_462 = arith.constant 2.000000e+00 : f32
    %1586 = vector.broadcast %cst_462 : f32 to vector<8x128xf32>
    %1587 = arith.subf %1586, %1585 : vector<8x128xf32>
    %1588 = arith.mulf %1584, %1587 : vector<8x128xf32>
    %cst_463 = arith.constant 0.53070271 : f32
    %1589 = vector.broadcast %cst_463 : f32 to vector<8x128xf32>
    %1590 = arith.mulf %1589, %1588 : vector<8x128xf32>
    %cst_464 = arith.constant -0.72657603 : f32
    %1591 = vector.broadcast %cst_464 : f32 to vector<8x128xf32>
    %1592 = arith.addf %1590, %1591 : vector<8x128xf32>
    %1593 = arith.mulf %1592, %1588 : vector<8x128xf32>
    %cst_465 = arith.constant 0.710706889 : f32
    %1594 = vector.broadcast %cst_465 : f32 to vector<8x128xf32>
    %1595 = arith.addf %1593, %1594 : vector<8x128xf32>
    %1596 = arith.mulf %1595, %1588 : vector<8x128xf32>
    %cst_466 = arith.constant -0.142248362 : f32
    %1597 = vector.broadcast %cst_466 : f32 to vector<8x128xf32>
    %1598 = arith.addf %1596, %1597 : vector<8x128xf32>
    %1599 = arith.mulf %1598, %1588 : vector<8x128xf32>
    %cst_467 = arith.constant 0.127414793 : f32
    %1600 = vector.broadcast %cst_467 : f32 to vector<8x128xf32>
    %1601 = arith.addf %1599, %1600 : vector<8x128xf32>
    %1602 = arith.mulf %1601, %1588 : vector<8x128xf32>
    %1603 = arith.mulf %1578, %1578 : vector<8x128xf32>
    %cst_468 = arith.constant 0.000000e+00 : f32
    %1604 = vector.broadcast %cst_468 : f32 to vector<8x128xf32>
    %1605 = arith.subf %1604, %1603 : vector<8x128xf32>
    %1606 = math.exp %1605 : vector<8x128xf32>
    %1607 = arith.mulf %1602, %1606 : vector<8x128xf32>
    %cst_469 = arith.constant 0.000000e+00 : f32
    %1608 = vector.broadcast %cst_469 : f32 to vector<8x128xf32>
    %1609 = arith.cmpf oge, %1578, %1608 : vector<8x128xf32>
    %cst_470 = arith.constant 1.000000e+00 : f32
    %1610 = vector.broadcast %cst_470 : f32 to vector<8x128xf32>
    %1611 = arith.subf %1610, %1607 : vector<8x128xf32>
    %1612 = arith.select %1609, %1611, %1607 : vector<8x128xi1>, vector<8x128xf32>
    %1613 = arith.addf %1575, %1612 : vector<8x128xf32>
    %1614 = vector.extract_strided_slice %16 {offsets = [42, 0], sizes = [1, 128], strides = [1, 1]} : vector<64x128xf32> to vector<1x128xf32>
    %1615 = vector.broadcast %1614 : vector<1x128xf32> to vector<8x128xf32>
    %1616 = arith.subf %13, %1615 : vector<8x128xf32>
    %1617 = math.absf %1616 : vector<8x128xf32>
    %cst_471 = arith.constant 0.327591091 : f32
    %1618 = vector.broadcast %cst_471 : f32 to vector<8x128xf32>
    %1619 = arith.mulf %1618, %1617 : vector<8x128xf32>
    %cst_472 = arith.constant 1.000000e+00 : f32
    %1620 = vector.broadcast %cst_472 : f32 to vector<8x128xf32>
    %1621 = arith.addf %1620, %1619 : vector<8x128xf32>
    %1622 = tpu.reciprocal %1621 {approx = true} : vector<8x128xf32> -> vector<8x128xf32>
    %1623 = arith.mulf %1621, %1622 : vector<8x128xf32>
    %cst_473 = arith.constant 2.000000e+00 : f32
    %1624 = vector.broadcast %cst_473 : f32 to vector<8x128xf32>
    %1625 = arith.subf %1624, %1623 : vector<8x128xf32>
    %1626 = arith.mulf %1622, %1625 : vector<8x128xf32>
    %cst_474 = arith.constant 0.53070271 : f32
    %1627 = vector.broadcast %cst_474 : f32 to vector<8x128xf32>
    %1628 = arith.mulf %1627, %1626 : vector<8x128xf32>
    %cst_475 = arith.constant -0.72657603 : f32
    %1629 = vector.broadcast %cst_475 : f32 to vector<8x128xf32>
    %1630 = arith.addf %1628, %1629 : vector<8x128xf32>
    %1631 = arith.mulf %1630, %1626 : vector<8x128xf32>
    %cst_476 = arith.constant 0.710706889 : f32
    %1632 = vector.broadcast %cst_476 : f32 to vector<8x128xf32>
    %1633 = arith.addf %1631, %1632 : vector<8x128xf32>
    %1634 = arith.mulf %1633, %1626 : vector<8x128xf32>
    %cst_477 = arith.constant -0.142248362 : f32
    %1635 = vector.broadcast %cst_477 : f32 to vector<8x128xf32>
    %1636 = arith.addf %1634, %1635 : vector<8x128xf32>
    %1637 = arith.mulf %1636, %1626 : vector<8x128xf32>
    %cst_478 = arith.constant 0.127414793 : f32
    %1638 = vector.broadcast %cst_478 : f32 to vector<8x128xf32>
    %1639 = arith.addf %1637, %1638 : vector<8x128xf32>
    %1640 = arith.mulf %1639, %1626 : vector<8x128xf32>
    %1641 = arith.mulf %1616, %1616 : vector<8x128xf32>
    %cst_479 = arith.constant 0.000000e+00 : f32
    %1642 = vector.broadcast %cst_479 : f32 to vector<8x128xf32>
    %1643 = arith.subf %1642, %1641 : vector<8x128xf32>
    %1644 = math.exp %1643 : vector<8x128xf32>
    %1645 = arith.mulf %1640, %1644 : vector<8x128xf32>
    %cst_480 = arith.constant 0.000000e+00 : f32
    %1646 = vector.broadcast %cst_480 : f32 to vector<8x128xf32>
    %1647 = arith.cmpf oge, %1616, %1646 : vector<8x128xf32>
    %cst_481 = arith.constant 1.000000e+00 : f32
    %1648 = vector.broadcast %cst_481 : f32 to vector<8x128xf32>
    %1649 = arith.subf %1648, %1645 : vector<8x128xf32>
    %1650 = arith.select %1647, %1649, %1645 : vector<8x128xi1>, vector<8x128xf32>
    %1651 = arith.addf %1613, %1650 : vector<8x128xf32>
    %1652 = vector.extract_strided_slice %16 {offsets = [43, 0], sizes = [1, 128], strides = [1, 1]} : vector<64x128xf32> to vector<1x128xf32>
    %1653 = vector.broadcast %1652 : vector<1x128xf32> to vector<8x128xf32>
    %1654 = arith.subf %13, %1653 : vector<8x128xf32>
    %1655 = math.absf %1654 : vector<8x128xf32>
    %cst_482 = arith.constant 0.327591091 : f32
    %1656 = vector.broadcast %cst_482 : f32 to vector<8x128xf32>
    %1657 = arith.mulf %1656, %1655 : vector<8x128xf32>
    %cst_483 = arith.constant 1.000000e+00 : f32
    %1658 = vector.broadcast %cst_483 : f32 to vector<8x128xf32>
    %1659 = arith.addf %1658, %1657 : vector<8x128xf32>
    %1660 = tpu.reciprocal %1659 {approx = true} : vector<8x128xf32> -> vector<8x128xf32>
    %1661 = arith.mulf %1659, %1660 : vector<8x128xf32>
    %cst_484 = arith.constant 2.000000e+00 : f32
    %1662 = vector.broadcast %cst_484 : f32 to vector<8x128xf32>
    %1663 = arith.subf %1662, %1661 : vector<8x128xf32>
    %1664 = arith.mulf %1660, %1663 : vector<8x128xf32>
    %cst_485 = arith.constant 0.53070271 : f32
    %1665 = vector.broadcast %cst_485 : f32 to vector<8x128xf32>
    %1666 = arith.mulf %1665, %1664 : vector<8x128xf32>
    %cst_486 = arith.constant -0.72657603 : f32
    %1667 = vector.broadcast %cst_486 : f32 to vector<8x128xf32>
    %1668 = arith.addf %1666, %1667 : vector<8x128xf32>
    %1669 = arith.mulf %1668, %1664 : vector<8x128xf32>
    %cst_487 = arith.constant 0.710706889 : f32
    %1670 = vector.broadcast %cst_487 : f32 to vector<8x128xf32>
    %1671 = arith.addf %1669, %1670 : vector<8x128xf32>
    %1672 = arith.mulf %1671, %1664 : vector<8x128xf32>
    %cst_488 = arith.constant -0.142248362 : f32
    %1673 = vector.broadcast %cst_488 : f32 to vector<8x128xf32>
    %1674 = arith.addf %1672, %1673 : vector<8x128xf32>
    %1675 = arith.mulf %1674, %1664 : vector<8x128xf32>
    %cst_489 = arith.constant 0.127414793 : f32
    %1676 = vector.broadcast %cst_489 : f32 to vector<8x128xf32>
    %1677 = arith.addf %1675, %1676 : vector<8x128xf32>
    %1678 = arith.mulf %1677, %1664 : vector<8x128xf32>
    %1679 = arith.mulf %1654, %1654 : vector<8x128xf32>
    %cst_490 = arith.constant 0.000000e+00 : f32
    %1680 = vector.broadcast %cst_490 : f32 to vector<8x128xf32>
    %1681 = arith.subf %1680, %1679 : vector<8x128xf32>
    %1682 = math.exp %1681 : vector<8x128xf32>
    %1683 = arith.mulf %1678, %1682 : vector<8x128xf32>
    %cst_491 = arith.constant 0.000000e+00 : f32
    %1684 = vector.broadcast %cst_491 : f32 to vector<8x128xf32>
    %1685 = arith.cmpf oge, %1654, %1684 : vector<8x128xf32>
    %cst_492 = arith.constant 1.000000e+00 : f32
    %1686 = vector.broadcast %cst_492 : f32 to vector<8x128xf32>
    %1687 = arith.subf %1686, %1683 : vector<8x128xf32>
    %1688 = arith.select %1685, %1687, %1683 : vector<8x128xi1>, vector<8x128xf32>
    %1689 = arith.addf %1651, %1688 : vector<8x128xf32>
    %1690 = vector.extract_strided_slice %16 {offsets = [44, 0], sizes = [1, 128], strides = [1, 1]} : vector<64x128xf32> to vector<1x128xf32>
    %1691 = vector.broadcast %1690 : vector<1x128xf32> to vector<8x128xf32>
    %1692 = arith.subf %13, %1691 : vector<8x128xf32>
    %1693 = math.absf %1692 : vector<8x128xf32>
    %cst_493 = arith.constant 0.327591091 : f32
    %1694 = vector.broadcast %cst_493 : f32 to vector<8x128xf32>
    %1695 = arith.mulf %1694, %1693 : vector<8x128xf32>
    %cst_494 = arith.constant 1.000000e+00 : f32
    %1696 = vector.broadcast %cst_494 : f32 to vector<8x128xf32>
    %1697 = arith.addf %1696, %1695 : vector<8x128xf32>
    %1698 = tpu.reciprocal %1697 {approx = true} : vector<8x128xf32> -> vector<8x128xf32>
    %1699 = arith.mulf %1697, %1698 : vector<8x128xf32>
    %cst_495 = arith.constant 2.000000e+00 : f32
    %1700 = vector.broadcast %cst_495 : f32 to vector<8x128xf32>
    %1701 = arith.subf %1700, %1699 : vector<8x128xf32>
    %1702 = arith.mulf %1698, %1701 : vector<8x128xf32>
    %cst_496 = arith.constant 0.53070271 : f32
    %1703 = vector.broadcast %cst_496 : f32 to vector<8x128xf32>
    %1704 = arith.mulf %1703, %1702 : vector<8x128xf32>
    %cst_497 = arith.constant -0.72657603 : f32
    %1705 = vector.broadcast %cst_497 : f32 to vector<8x128xf32>
    %1706 = arith.addf %1704, %1705 : vector<8x128xf32>
    %1707 = arith.mulf %1706, %1702 : vector<8x128xf32>
    %cst_498 = arith.constant 0.710706889 : f32
    %1708 = vector.broadcast %cst_498 : f32 to vector<8x128xf32>
    %1709 = arith.addf %1707, %1708 : vector<8x128xf32>
    %1710 = arith.mulf %1709, %1702 : vector<8x128xf32>
    %cst_499 = arith.constant -0.142248362 : f32
    %1711 = vector.broadcast %cst_499 : f32 to vector<8x128xf32>
    %1712 = arith.addf %1710, %1711 : vector<8x128xf32>
    %1713 = arith.mulf %1712, %1702 : vector<8x128xf32>
    %cst_500 = arith.constant 0.127414793 : f32
    %1714 = vector.broadcast %cst_500 : f32 to vector<8x128xf32>
    %1715 = arith.addf %1713, %1714 : vector<8x128xf32>
    %1716 = arith.mulf %1715, %1702 : vector<8x128xf32>
    %1717 = arith.mulf %1692, %1692 : vector<8x128xf32>
    %cst_501 = arith.constant 0.000000e+00 : f32
    %1718 = vector.broadcast %cst_501 : f32 to vector<8x128xf32>
    %1719 = arith.subf %1718, %1717 : vector<8x128xf32>
    %1720 = math.exp %1719 : vector<8x128xf32>
    %1721 = arith.mulf %1716, %1720 : vector<8x128xf32>
    %cst_502 = arith.constant 0.000000e+00 : f32
    %1722 = vector.broadcast %cst_502 : f32 to vector<8x128xf32>
    %1723 = arith.cmpf oge, %1692, %1722 : vector<8x128xf32>
    %cst_503 = arith.constant 1.000000e+00 : f32
    %1724 = vector.broadcast %cst_503 : f32 to vector<8x128xf32>
    %1725 = arith.subf %1724, %1721 : vector<8x128xf32>
    %1726 = arith.select %1723, %1725, %1721 : vector<8x128xi1>, vector<8x128xf32>
    %1727 = arith.addf %1689, %1726 : vector<8x128xf32>
    %1728 = vector.extract_strided_slice %16 {offsets = [45, 0], sizes = [1, 128], strides = [1, 1]} : vector<64x128xf32> to vector<1x128xf32>
    %1729 = vector.broadcast %1728 : vector<1x128xf32> to vector<8x128xf32>
    %1730 = arith.subf %13, %1729 : vector<8x128xf32>
    %1731 = math.absf %1730 : vector<8x128xf32>
    %cst_504 = arith.constant 0.327591091 : f32
    %1732 = vector.broadcast %cst_504 : f32 to vector<8x128xf32>
    %1733 = arith.mulf %1732, %1731 : vector<8x128xf32>
    %cst_505 = arith.constant 1.000000e+00 : f32
    %1734 = vector.broadcast %cst_505 : f32 to vector<8x128xf32>
    %1735 = arith.addf %1734, %1733 : vector<8x128xf32>
    %1736 = tpu.reciprocal %1735 {approx = true} : vector<8x128xf32> -> vector<8x128xf32>
    %1737 = arith.mulf %1735, %1736 : vector<8x128xf32>
    %cst_506 = arith.constant 2.000000e+00 : f32
    %1738 = vector.broadcast %cst_506 : f32 to vector<8x128xf32>
    %1739 = arith.subf %1738, %1737 : vector<8x128xf32>
    %1740 = arith.mulf %1736, %1739 : vector<8x128xf32>
    %cst_507 = arith.constant 0.53070271 : f32
    %1741 = vector.broadcast %cst_507 : f32 to vector<8x128xf32>
    %1742 = arith.mulf %1741, %1740 : vector<8x128xf32>
    %cst_508 = arith.constant -0.72657603 : f32
    %1743 = vector.broadcast %cst_508 : f32 to vector<8x128xf32>
    %1744 = arith.addf %1742, %1743 : vector<8x128xf32>
    %1745 = arith.mulf %1744, %1740 : vector<8x128xf32>
    %cst_509 = arith.constant 0.710706889 : f32
    %1746 = vector.broadcast %cst_509 : f32 to vector<8x128xf32>
    %1747 = arith.addf %1745, %1746 : vector<8x128xf32>
    %1748 = arith.mulf %1747, %1740 : vector<8x128xf32>
    %cst_510 = arith.constant -0.142248362 : f32
    %1749 = vector.broadcast %cst_510 : f32 to vector<8x128xf32>
    %1750 = arith.addf %1748, %1749 : vector<8x128xf32>
    %1751 = arith.mulf %1750, %1740 : vector<8x128xf32>
    %cst_511 = arith.constant 0.127414793 : f32
    %1752 = vector.broadcast %cst_511 : f32 to vector<8x128xf32>
    %1753 = arith.addf %1751, %1752 : vector<8x128xf32>
    %1754 = arith.mulf %1753, %1740 : vector<8x128xf32>
    %1755 = arith.mulf %1730, %1730 : vector<8x128xf32>
    %cst_512 = arith.constant 0.000000e+00 : f32
    %1756 = vector.broadcast %cst_512 : f32 to vector<8x128xf32>
    %1757 = arith.subf %1756, %1755 : vector<8x128xf32>
    %1758 = math.exp %1757 : vector<8x128xf32>
    %1759 = arith.mulf %1754, %1758 : vector<8x128xf32>
    %cst_513 = arith.constant 0.000000e+00 : f32
    %1760 = vector.broadcast %cst_513 : f32 to vector<8x128xf32>
    %1761 = arith.cmpf oge, %1730, %1760 : vector<8x128xf32>
    %cst_514 = arith.constant 1.000000e+00 : f32
    %1762 = vector.broadcast %cst_514 : f32 to vector<8x128xf32>
    %1763 = arith.subf %1762, %1759 : vector<8x128xf32>
    %1764 = arith.select %1761, %1763, %1759 : vector<8x128xi1>, vector<8x128xf32>
    %1765 = arith.addf %1727, %1764 : vector<8x128xf32>
    %1766 = vector.extract_strided_slice %16 {offsets = [46, 0], sizes = [1, 128], strides = [1, 1]} : vector<64x128xf32> to vector<1x128xf32>
    %1767 = vector.broadcast %1766 : vector<1x128xf32> to vector<8x128xf32>
    %1768 = arith.subf %13, %1767 : vector<8x128xf32>
    %1769 = math.absf %1768 : vector<8x128xf32>
    %cst_515 = arith.constant 0.327591091 : f32
    %1770 = vector.broadcast %cst_515 : f32 to vector<8x128xf32>
    %1771 = arith.mulf %1770, %1769 : vector<8x128xf32>
    %cst_516 = arith.constant 1.000000e+00 : f32
    %1772 = vector.broadcast %cst_516 : f32 to vector<8x128xf32>
    %1773 = arith.addf %1772, %1771 : vector<8x128xf32>
    %1774 = tpu.reciprocal %1773 {approx = true} : vector<8x128xf32> -> vector<8x128xf32>
    %1775 = arith.mulf %1773, %1774 : vector<8x128xf32>
    %cst_517 = arith.constant 2.000000e+00 : f32
    %1776 = vector.broadcast %cst_517 : f32 to vector<8x128xf32>
    %1777 = arith.subf %1776, %1775 : vector<8x128xf32>
    %1778 = arith.mulf %1774, %1777 : vector<8x128xf32>
    %cst_518 = arith.constant 0.53070271 : f32
    %1779 = vector.broadcast %cst_518 : f32 to vector<8x128xf32>
    %1780 = arith.mulf %1779, %1778 : vector<8x128xf32>
    %cst_519 = arith.constant -0.72657603 : f32
    %1781 = vector.broadcast %cst_519 : f32 to vector<8x128xf32>
    %1782 = arith.addf %1780, %1781 : vector<8x128xf32>
    %1783 = arith.mulf %1782, %1778 : vector<8x128xf32>
    %cst_520 = arith.constant 0.710706889 : f32
    %1784 = vector.broadcast %cst_520 : f32 to vector<8x128xf32>
    %1785 = arith.addf %1783, %1784 : vector<8x128xf32>
    %1786 = arith.mulf %1785, %1778 : vector<8x128xf32>
    %cst_521 = arith.constant -0.142248362 : f32
    %1787 = vector.broadcast %cst_521 : f32 to vector<8x128xf32>
    %1788 = arith.addf %1786, %1787 : vector<8x128xf32>
    %1789 = arith.mulf %1788, %1778 : vector<8x128xf32>
    %cst_522 = arith.constant 0.127414793 : f32
    %1790 = vector.broadcast %cst_522 : f32 to vector<8x128xf32>
    %1791 = arith.addf %1789, %1790 : vector<8x128xf32>
    %1792 = arith.mulf %1791, %1778 : vector<8x128xf32>
    %1793 = arith.mulf %1768, %1768 : vector<8x128xf32>
    %cst_523 = arith.constant 0.000000e+00 : f32
    %1794 = vector.broadcast %cst_523 : f32 to vector<8x128xf32>
    %1795 = arith.subf %1794, %1793 : vector<8x128xf32>
    %1796 = math.exp %1795 : vector<8x128xf32>
    %1797 = arith.mulf %1792, %1796 : vector<8x128xf32>
    %cst_524 = arith.constant 0.000000e+00 : f32
    %1798 = vector.broadcast %cst_524 : f32 to vector<8x128xf32>
    %1799 = arith.cmpf oge, %1768, %1798 : vector<8x128xf32>
    %cst_525 = arith.constant 1.000000e+00 : f32
    %1800 = vector.broadcast %cst_525 : f32 to vector<8x128xf32>
    %1801 = arith.subf %1800, %1797 : vector<8x128xf32>
    %1802 = arith.select %1799, %1801, %1797 : vector<8x128xi1>, vector<8x128xf32>
    %1803 = arith.addf %1765, %1802 : vector<8x128xf32>
    %1804 = vector.extract_strided_slice %16 {offsets = [47, 0], sizes = [1, 128], strides = [1, 1]} : vector<64x128xf32> to vector<1x128xf32>
    %1805 = vector.broadcast %1804 : vector<1x128xf32> to vector<8x128xf32>
    %1806 = arith.subf %13, %1805 : vector<8x128xf32>
    %1807 = math.absf %1806 : vector<8x128xf32>
    %cst_526 = arith.constant 0.327591091 : f32
    %1808 = vector.broadcast %cst_526 : f32 to vector<8x128xf32>
    %1809 = arith.mulf %1808, %1807 : vector<8x128xf32>
    %cst_527 = arith.constant 1.000000e+00 : f32
    %1810 = vector.broadcast %cst_527 : f32 to vector<8x128xf32>
    %1811 = arith.addf %1810, %1809 : vector<8x128xf32>
    %1812 = tpu.reciprocal %1811 {approx = true} : vector<8x128xf32> -> vector<8x128xf32>
    %1813 = arith.mulf %1811, %1812 : vector<8x128xf32>
    %cst_528 = arith.constant 2.000000e+00 : f32
    %1814 = vector.broadcast %cst_528 : f32 to vector<8x128xf32>
    %1815 = arith.subf %1814, %1813 : vector<8x128xf32>
    %1816 = arith.mulf %1812, %1815 : vector<8x128xf32>
    %cst_529 = arith.constant 0.53070271 : f32
    %1817 = vector.broadcast %cst_529 : f32 to vector<8x128xf32>
    %1818 = arith.mulf %1817, %1816 : vector<8x128xf32>
    %cst_530 = arith.constant -0.72657603 : f32
    %1819 = vector.broadcast %cst_530 : f32 to vector<8x128xf32>
    %1820 = arith.addf %1818, %1819 : vector<8x128xf32>
    %1821 = arith.mulf %1820, %1816 : vector<8x128xf32>
    %cst_531 = arith.constant 0.710706889 : f32
    %1822 = vector.broadcast %cst_531 : f32 to vector<8x128xf32>
    %1823 = arith.addf %1821, %1822 : vector<8x128xf32>
    %1824 = arith.mulf %1823, %1816 : vector<8x128xf32>
    %cst_532 = arith.constant -0.142248362 : f32
    %1825 = vector.broadcast %cst_532 : f32 to vector<8x128xf32>
    %1826 = arith.addf %1824, %1825 : vector<8x128xf32>
    %1827 = arith.mulf %1826, %1816 : vector<8x128xf32>
    %cst_533 = arith.constant 0.127414793 : f32
    %1828 = vector.broadcast %cst_533 : f32 to vector<8x128xf32>
    %1829 = arith.addf %1827, %1828 : vector<8x128xf32>
    %1830 = arith.mulf %1829, %1816 : vector<8x128xf32>
    %1831 = arith.mulf %1806, %1806 : vector<8x128xf32>
    %cst_534 = arith.constant 0.000000e+00 : f32
    %1832 = vector.broadcast %cst_534 : f32 to vector<8x128xf32>
    %1833 = arith.subf %1832, %1831 : vector<8x128xf32>
    %1834 = math.exp %1833 : vector<8x128xf32>
    %1835 = arith.mulf %1830, %1834 : vector<8x128xf32>
    %cst_535 = arith.constant 0.000000e+00 : f32
    %1836 = vector.broadcast %cst_535 : f32 to vector<8x128xf32>
    %1837 = arith.cmpf oge, %1806, %1836 : vector<8x128xf32>
    %cst_536 = arith.constant 1.000000e+00 : f32
    %1838 = vector.broadcast %cst_536 : f32 to vector<8x128xf32>
    %1839 = arith.subf %1838, %1835 : vector<8x128xf32>
    %1840 = arith.select %1837, %1839, %1835 : vector<8x128xi1>, vector<8x128xf32>
    %1841 = arith.addf %1803, %1840 : vector<8x128xf32>
    %1842 = vector.extract_strided_slice %16 {offsets = [48, 0], sizes = [1, 128], strides = [1, 1]} : vector<64x128xf32> to vector<1x128xf32>
    %1843 = vector.broadcast %1842 : vector<1x128xf32> to vector<8x128xf32>
    %1844 = arith.subf %13, %1843 : vector<8x128xf32>
    %1845 = math.absf %1844 : vector<8x128xf32>
    %cst_537 = arith.constant 0.327591091 : f32
    %1846 = vector.broadcast %cst_537 : f32 to vector<8x128xf32>
    %1847 = arith.mulf %1846, %1845 : vector<8x128xf32>
    %cst_538 = arith.constant 1.000000e+00 : f32
    %1848 = vector.broadcast %cst_538 : f32 to vector<8x128xf32>
    %1849 = arith.addf %1848, %1847 : vector<8x128xf32>
    %1850 = tpu.reciprocal %1849 {approx = true} : vector<8x128xf32> -> vector<8x128xf32>
    %1851 = arith.mulf %1849, %1850 : vector<8x128xf32>
    %cst_539 = arith.constant 2.000000e+00 : f32
    %1852 = vector.broadcast %cst_539 : f32 to vector<8x128xf32>
    %1853 = arith.subf %1852, %1851 : vector<8x128xf32>
    %1854 = arith.mulf %1850, %1853 : vector<8x128xf32>
    %cst_540 = arith.constant 0.53070271 : f32
    %1855 = vector.broadcast %cst_540 : f32 to vector<8x128xf32>
    %1856 = arith.mulf %1855, %1854 : vector<8x128xf32>
    %cst_541 = arith.constant -0.72657603 : f32
    %1857 = vector.broadcast %cst_541 : f32 to vector<8x128xf32>
    %1858 = arith.addf %1856, %1857 : vector<8x128xf32>
    %1859 = arith.mulf %1858, %1854 : vector<8x128xf32>
    %cst_542 = arith.constant 0.710706889 : f32
    %1860 = vector.broadcast %cst_542 : f32 to vector<8x128xf32>
    %1861 = arith.addf %1859, %1860 : vector<8x128xf32>
    %1862 = arith.mulf %1861, %1854 : vector<8x128xf32>
    %cst_543 = arith.constant -0.142248362 : f32
    %1863 = vector.broadcast %cst_543 : f32 to vector<8x128xf32>
    %1864 = arith.addf %1862, %1863 : vector<8x128xf32>
    %1865 = arith.mulf %1864, %1854 : vector<8x128xf32>
    %cst_544 = arith.constant 0.127414793 : f32
    %1866 = vector.broadcast %cst_544 : f32 to vector<8x128xf32>
    %1867 = arith.addf %1865, %1866 : vector<8x128xf32>
    %1868 = arith.mulf %1867, %1854 : vector<8x128xf32>
    %1869 = arith.mulf %1844, %1844 : vector<8x128xf32>
    %cst_545 = arith.constant 0.000000e+00 : f32
    %1870 = vector.broadcast %cst_545 : f32 to vector<8x128xf32>
    %1871 = arith.subf %1870, %1869 : vector<8x128xf32>
    %1872 = math.exp %1871 : vector<8x128xf32>
    %1873 = arith.mulf %1868, %1872 : vector<8x128xf32>
    %cst_546 = arith.constant 0.000000e+00 : f32
    %1874 = vector.broadcast %cst_546 : f32 to vector<8x128xf32>
    %1875 = arith.cmpf oge, %1844, %1874 : vector<8x128xf32>
    %cst_547 = arith.constant 1.000000e+00 : f32
    %1876 = vector.broadcast %cst_547 : f32 to vector<8x128xf32>
    %1877 = arith.subf %1876, %1873 : vector<8x128xf32>
    %1878 = arith.select %1875, %1877, %1873 : vector<8x128xi1>, vector<8x128xf32>
    %1879 = arith.addf %1841, %1878 : vector<8x128xf32>
    %1880 = vector.extract_strided_slice %16 {offsets = [49, 0], sizes = [1, 128], strides = [1, 1]} : vector<64x128xf32> to vector<1x128xf32>
    %1881 = vector.broadcast %1880 : vector<1x128xf32> to vector<8x128xf32>
    %1882 = arith.subf %13, %1881 : vector<8x128xf32>
    %1883 = math.absf %1882 : vector<8x128xf32>
    %cst_548 = arith.constant 0.327591091 : f32
    %1884 = vector.broadcast %cst_548 : f32 to vector<8x128xf32>
    %1885 = arith.mulf %1884, %1883 : vector<8x128xf32>
    %cst_549 = arith.constant 1.000000e+00 : f32
    %1886 = vector.broadcast %cst_549 : f32 to vector<8x128xf32>
    %1887 = arith.addf %1886, %1885 : vector<8x128xf32>
    %1888 = tpu.reciprocal %1887 {approx = true} : vector<8x128xf32> -> vector<8x128xf32>
    %1889 = arith.mulf %1887, %1888 : vector<8x128xf32>
    %cst_550 = arith.constant 2.000000e+00 : f32
    %1890 = vector.broadcast %cst_550 : f32 to vector<8x128xf32>
    %1891 = arith.subf %1890, %1889 : vector<8x128xf32>
    %1892 = arith.mulf %1888, %1891 : vector<8x128xf32>
    %cst_551 = arith.constant 0.53070271 : f32
    %1893 = vector.broadcast %cst_551 : f32 to vector<8x128xf32>
    %1894 = arith.mulf %1893, %1892 : vector<8x128xf32>
    %cst_552 = arith.constant -0.72657603 : f32
    %1895 = vector.broadcast %cst_552 : f32 to vector<8x128xf32>
    %1896 = arith.addf %1894, %1895 : vector<8x128xf32>
    %1897 = arith.mulf %1896, %1892 : vector<8x128xf32>
    %cst_553 = arith.constant 0.710706889 : f32
    %1898 = vector.broadcast %cst_553 : f32 to vector<8x128xf32>
    %1899 = arith.addf %1897, %1898 : vector<8x128xf32>
    %1900 = arith.mulf %1899, %1892 : vector<8x128xf32>
    %cst_554 = arith.constant -0.142248362 : f32
    %1901 = vector.broadcast %cst_554 : f32 to vector<8x128xf32>
    %1902 = arith.addf %1900, %1901 : vector<8x128xf32>
    %1903 = arith.mulf %1902, %1892 : vector<8x128xf32>
    %cst_555 = arith.constant 0.127414793 : f32
    %1904 = vector.broadcast %cst_555 : f32 to vector<8x128xf32>
    %1905 = arith.addf %1903, %1904 : vector<8x128xf32>
    %1906 = arith.mulf %1905, %1892 : vector<8x128xf32>
    %1907 = arith.mulf %1882, %1882 : vector<8x128xf32>
    %cst_556 = arith.constant 0.000000e+00 : f32
    %1908 = vector.broadcast %cst_556 : f32 to vector<8x128xf32>
    %1909 = arith.subf %1908, %1907 : vector<8x128xf32>
    %1910 = math.exp %1909 : vector<8x128xf32>
    %1911 = arith.mulf %1906, %1910 : vector<8x128xf32>
    %cst_557 = arith.constant 0.000000e+00 : f32
    %1912 = vector.broadcast %cst_557 : f32 to vector<8x128xf32>
    %1913 = arith.cmpf oge, %1882, %1912 : vector<8x128xf32>
    %cst_558 = arith.constant 1.000000e+00 : f32
    %1914 = vector.broadcast %cst_558 : f32 to vector<8x128xf32>
    %1915 = arith.subf %1914, %1911 : vector<8x128xf32>
    %1916 = arith.select %1913, %1915, %1911 : vector<8x128xi1>, vector<8x128xf32>
    %1917 = arith.addf %1879, %1916 : vector<8x128xf32>
    %1918 = vector.extract_strided_slice %16 {offsets = [50, 0], sizes = [1, 128], strides = [1, 1]} : vector<64x128xf32> to vector<1x128xf32>
    %1919 = vector.broadcast %1918 : vector<1x128xf32> to vector<8x128xf32>
    %1920 = arith.subf %13, %1919 : vector<8x128xf32>
    %1921 = math.absf %1920 : vector<8x128xf32>
    %cst_559 = arith.constant 0.327591091 : f32
    %1922 = vector.broadcast %cst_559 : f32 to vector<8x128xf32>
    %1923 = arith.mulf %1922, %1921 : vector<8x128xf32>
    %cst_560 = arith.constant 1.000000e+00 : f32
    %1924 = vector.broadcast %cst_560 : f32 to vector<8x128xf32>
    %1925 = arith.addf %1924, %1923 : vector<8x128xf32>
    %1926 = tpu.reciprocal %1925 {approx = true} : vector<8x128xf32> -> vector<8x128xf32>
    %1927 = arith.mulf %1925, %1926 : vector<8x128xf32>
    %cst_561 = arith.constant 2.000000e+00 : f32
    %1928 = vector.broadcast %cst_561 : f32 to vector<8x128xf32>
    %1929 = arith.subf %1928, %1927 : vector<8x128xf32>
    %1930 = arith.mulf %1926, %1929 : vector<8x128xf32>
    %cst_562 = arith.constant 0.53070271 : f32
    %1931 = vector.broadcast %cst_562 : f32 to vector<8x128xf32>
    %1932 = arith.mulf %1931, %1930 : vector<8x128xf32>
    %cst_563 = arith.constant -0.72657603 : f32
    %1933 = vector.broadcast %cst_563 : f32 to vector<8x128xf32>
    %1934 = arith.addf %1932, %1933 : vector<8x128xf32>
    %1935 = arith.mulf %1934, %1930 : vector<8x128xf32>
    %cst_564 = arith.constant 0.710706889 : f32
    %1936 = vector.broadcast %cst_564 : f32 to vector<8x128xf32>
    %1937 = arith.addf %1935, %1936 : vector<8x128xf32>
    %1938 = arith.mulf %1937, %1930 : vector<8x128xf32>
    %cst_565 = arith.constant -0.142248362 : f32
    %1939 = vector.broadcast %cst_565 : f32 to vector<8x128xf32>
    %1940 = arith.addf %1938, %1939 : vector<8x128xf32>
    %1941 = arith.mulf %1940, %1930 : vector<8x128xf32>
    %cst_566 = arith.constant 0.127414793 : f32
    %1942 = vector.broadcast %cst_566 : f32 to vector<8x128xf32>
    %1943 = arith.addf %1941, %1942 : vector<8x128xf32>
    %1944 = arith.mulf %1943, %1930 : vector<8x128xf32>
    %1945 = arith.mulf %1920, %1920 : vector<8x128xf32>
    %cst_567 = arith.constant 0.000000e+00 : f32
    %1946 = vector.broadcast %cst_567 : f32 to vector<8x128xf32>
    %1947 = arith.subf %1946, %1945 : vector<8x128xf32>
    %1948 = math.exp %1947 : vector<8x128xf32>
    %1949 = arith.mulf %1944, %1948 : vector<8x128xf32>
    %cst_568 = arith.constant 0.000000e+00 : f32
    %1950 = vector.broadcast %cst_568 : f32 to vector<8x128xf32>
    %1951 = arith.cmpf oge, %1920, %1950 : vector<8x128xf32>
    %cst_569 = arith.constant 1.000000e+00 : f32
    %1952 = vector.broadcast %cst_569 : f32 to vector<8x128xf32>
    %1953 = arith.subf %1952, %1949 : vector<8x128xf32>
    %1954 = arith.select %1951, %1953, %1949 : vector<8x128xi1>, vector<8x128xf32>
    %1955 = arith.addf %1917, %1954 : vector<8x128xf32>
    %1956 = vector.extract_strided_slice %16 {offsets = [51, 0], sizes = [1, 128], strides = [1, 1]} : vector<64x128xf32> to vector<1x128xf32>
    %1957 = vector.broadcast %1956 : vector<1x128xf32> to vector<8x128xf32>
    %1958 = arith.subf %13, %1957 : vector<8x128xf32>
    %1959 = math.absf %1958 : vector<8x128xf32>
    %cst_570 = arith.constant 0.327591091 : f32
    %1960 = vector.broadcast %cst_570 : f32 to vector<8x128xf32>
    %1961 = arith.mulf %1960, %1959 : vector<8x128xf32>
    %cst_571 = arith.constant 1.000000e+00 : f32
    %1962 = vector.broadcast %cst_571 : f32 to vector<8x128xf32>
    %1963 = arith.addf %1962, %1961 : vector<8x128xf32>
    %1964 = tpu.reciprocal %1963 {approx = true} : vector<8x128xf32> -> vector<8x128xf32>
    %1965 = arith.mulf %1963, %1964 : vector<8x128xf32>
    %cst_572 = arith.constant 2.000000e+00 : f32
    %1966 = vector.broadcast %cst_572 : f32 to vector<8x128xf32>
    %1967 = arith.subf %1966, %1965 : vector<8x128xf32>
    %1968 = arith.mulf %1964, %1967 : vector<8x128xf32>
    %cst_573 = arith.constant 0.53070271 : f32
    %1969 = vector.broadcast %cst_573 : f32 to vector<8x128xf32>
    %1970 = arith.mulf %1969, %1968 : vector<8x128xf32>
    %cst_574 = arith.constant -0.72657603 : f32
    %1971 = vector.broadcast %cst_574 : f32 to vector<8x128xf32>
    %1972 = arith.addf %1970, %1971 : vector<8x128xf32>
    %1973 = arith.mulf %1972, %1968 : vector<8x128xf32>
    %cst_575 = arith.constant 0.710706889 : f32
    %1974 = vector.broadcast %cst_575 : f32 to vector<8x128xf32>
    %1975 = arith.addf %1973, %1974 : vector<8x128xf32>
    %1976 = arith.mulf %1975, %1968 : vector<8x128xf32>
    %cst_576 = arith.constant -0.142248362 : f32
    %1977 = vector.broadcast %cst_576 : f32 to vector<8x128xf32>
    %1978 = arith.addf %1976, %1977 : vector<8x128xf32>
    %1979 = arith.mulf %1978, %1968 : vector<8x128xf32>
    %cst_577 = arith.constant 0.127414793 : f32
    %1980 = vector.broadcast %cst_577 : f32 to vector<8x128xf32>
    %1981 = arith.addf %1979, %1980 : vector<8x128xf32>
    %1982 = arith.mulf %1981, %1968 : vector<8x128xf32>
    %1983 = arith.mulf %1958, %1958 : vector<8x128xf32>
    %cst_578 = arith.constant 0.000000e+00 : f32
    %1984 = vector.broadcast %cst_578 : f32 to vector<8x128xf32>
    %1985 = arith.subf %1984, %1983 : vector<8x128xf32>
    %1986 = math.exp %1985 : vector<8x128xf32>
    %1987 = arith.mulf %1982, %1986 : vector<8x128xf32>
    %cst_579 = arith.constant 0.000000e+00 : f32
    %1988 = vector.broadcast %cst_579 : f32 to vector<8x128xf32>
    %1989 = arith.cmpf oge, %1958, %1988 : vector<8x128xf32>
    %cst_580 = arith.constant 1.000000e+00 : f32
    %1990 = vector.broadcast %cst_580 : f32 to vector<8x128xf32>
    %1991 = arith.subf %1990, %1987 : vector<8x128xf32>
    %1992 = arith.select %1989, %1991, %1987 : vector<8x128xi1>, vector<8x128xf32>
    %1993 = arith.addf %1955, %1992 : vector<8x128xf32>
    %1994 = vector.extract_strided_slice %16 {offsets = [52, 0], sizes = [1, 128], strides = [1, 1]} : vector<64x128xf32> to vector<1x128xf32>
    %1995 = vector.broadcast %1994 : vector<1x128xf32> to vector<8x128xf32>
    %1996 = arith.subf %13, %1995 : vector<8x128xf32>
    %1997 = math.absf %1996 : vector<8x128xf32>
    %cst_581 = arith.constant 0.327591091 : f32
    %1998 = vector.broadcast %cst_581 : f32 to vector<8x128xf32>
    %1999 = arith.mulf %1998, %1997 : vector<8x128xf32>
    %cst_582 = arith.constant 1.000000e+00 : f32
    %2000 = vector.broadcast %cst_582 : f32 to vector<8x128xf32>
    %2001 = arith.addf %2000, %1999 : vector<8x128xf32>
    %2002 = tpu.reciprocal %2001 {approx = true} : vector<8x128xf32> -> vector<8x128xf32>
    %2003 = arith.mulf %2001, %2002 : vector<8x128xf32>
    %cst_583 = arith.constant 2.000000e+00 : f32
    %2004 = vector.broadcast %cst_583 : f32 to vector<8x128xf32>
    %2005 = arith.subf %2004, %2003 : vector<8x128xf32>
    %2006 = arith.mulf %2002, %2005 : vector<8x128xf32>
    %cst_584 = arith.constant 0.53070271 : f32
    %2007 = vector.broadcast %cst_584 : f32 to vector<8x128xf32>
    %2008 = arith.mulf %2007, %2006 : vector<8x128xf32>
    %cst_585 = arith.constant -0.72657603 : f32
    %2009 = vector.broadcast %cst_585 : f32 to vector<8x128xf32>
    %2010 = arith.addf %2008, %2009 : vector<8x128xf32>
    %2011 = arith.mulf %2010, %2006 : vector<8x128xf32>
    %cst_586 = arith.constant 0.710706889 : f32
    %2012 = vector.broadcast %cst_586 : f32 to vector<8x128xf32>
    %2013 = arith.addf %2011, %2012 : vector<8x128xf32>
    %2014 = arith.mulf %2013, %2006 : vector<8x128xf32>
    %cst_587 = arith.constant -0.142248362 : f32
    %2015 = vector.broadcast %cst_587 : f32 to vector<8x128xf32>
    %2016 = arith.addf %2014, %2015 : vector<8x128xf32>
    %2017 = arith.mulf %2016, %2006 : vector<8x128xf32>
    %cst_588 = arith.constant 0.127414793 : f32
    %2018 = vector.broadcast %cst_588 : f32 to vector<8x128xf32>
    %2019 = arith.addf %2017, %2018 : vector<8x128xf32>
    %2020 = arith.mulf %2019, %2006 : vector<8x128xf32>
    %2021 = arith.mulf %1996, %1996 : vector<8x128xf32>
    %cst_589 = arith.constant 0.000000e+00 : f32
    %2022 = vector.broadcast %cst_589 : f32 to vector<8x128xf32>
    %2023 = arith.subf %2022, %2021 : vector<8x128xf32>
    %2024 = math.exp %2023 : vector<8x128xf32>
    %2025 = arith.mulf %2020, %2024 : vector<8x128xf32>
    %cst_590 = arith.constant 0.000000e+00 : f32
    %2026 = vector.broadcast %cst_590 : f32 to vector<8x128xf32>
    %2027 = arith.cmpf oge, %1996, %2026 : vector<8x128xf32>
    %cst_591 = arith.constant 1.000000e+00 : f32
    %2028 = vector.broadcast %cst_591 : f32 to vector<8x128xf32>
    %2029 = arith.subf %2028, %2025 : vector<8x128xf32>
    %2030 = arith.select %2027, %2029, %2025 : vector<8x128xi1>, vector<8x128xf32>
    %2031 = arith.addf %1993, %2030 : vector<8x128xf32>
    %2032 = vector.extract_strided_slice %16 {offsets = [53, 0], sizes = [1, 128], strides = [1, 1]} : vector<64x128xf32> to vector<1x128xf32>
    %2033 = vector.broadcast %2032 : vector<1x128xf32> to vector<8x128xf32>
    %2034 = arith.subf %13, %2033 : vector<8x128xf32>
    %2035 = math.absf %2034 : vector<8x128xf32>
    %cst_592 = arith.constant 0.327591091 : f32
    %2036 = vector.broadcast %cst_592 : f32 to vector<8x128xf32>
    %2037 = arith.mulf %2036, %2035 : vector<8x128xf32>
    %cst_593 = arith.constant 1.000000e+00 : f32
    %2038 = vector.broadcast %cst_593 : f32 to vector<8x128xf32>
    %2039 = arith.addf %2038, %2037 : vector<8x128xf32>
    %2040 = tpu.reciprocal %2039 {approx = true} : vector<8x128xf32> -> vector<8x128xf32>
    %2041 = arith.mulf %2039, %2040 : vector<8x128xf32>
    %cst_594 = arith.constant 2.000000e+00 : f32
    %2042 = vector.broadcast %cst_594 : f32 to vector<8x128xf32>
    %2043 = arith.subf %2042, %2041 : vector<8x128xf32>
    %2044 = arith.mulf %2040, %2043 : vector<8x128xf32>
    %cst_595 = arith.constant 0.53070271 : f32
    %2045 = vector.broadcast %cst_595 : f32 to vector<8x128xf32>
    %2046 = arith.mulf %2045, %2044 : vector<8x128xf32>
    %cst_596 = arith.constant -0.72657603 : f32
    %2047 = vector.broadcast %cst_596 : f32 to vector<8x128xf32>
    %2048 = arith.addf %2046, %2047 : vector<8x128xf32>
    %2049 = arith.mulf %2048, %2044 : vector<8x128xf32>
    %cst_597 = arith.constant 0.710706889 : f32
    %2050 = vector.broadcast %cst_597 : f32 to vector<8x128xf32>
    %2051 = arith.addf %2049, %2050 : vector<8x128xf32>
    %2052 = arith.mulf %2051, %2044 : vector<8x128xf32>
    %cst_598 = arith.constant -0.142248362 : f32
    %2053 = vector.broadcast %cst_598 : f32 to vector<8x128xf32>
    %2054 = arith.addf %2052, %2053 : vector<8x128xf32>
    %2055 = arith.mulf %2054, %2044 : vector<8x128xf32>
    %cst_599 = arith.constant 0.127414793 : f32
    %2056 = vector.broadcast %cst_599 : f32 to vector<8x128xf32>
    %2057 = arith.addf %2055, %2056 : vector<8x128xf32>
    %2058 = arith.mulf %2057, %2044 : vector<8x128xf32>
    %2059 = arith.mulf %2034, %2034 : vector<8x128xf32>
    %cst_600 = arith.constant 0.000000e+00 : f32
    %2060 = vector.broadcast %cst_600 : f32 to vector<8x128xf32>
    %2061 = arith.subf %2060, %2059 : vector<8x128xf32>
    %2062 = math.exp %2061 : vector<8x128xf32>
    %2063 = arith.mulf %2058, %2062 : vector<8x128xf32>
    %cst_601 = arith.constant 0.000000e+00 : f32
    %2064 = vector.broadcast %cst_601 : f32 to vector<8x128xf32>
    %2065 = arith.cmpf oge, %2034, %2064 : vector<8x128xf32>
    %cst_602 = arith.constant 1.000000e+00 : f32
    %2066 = vector.broadcast %cst_602 : f32 to vector<8x128xf32>
    %2067 = arith.subf %2066, %2063 : vector<8x128xf32>
    %2068 = arith.select %2065, %2067, %2063 : vector<8x128xi1>, vector<8x128xf32>
    %2069 = arith.addf %2031, %2068 : vector<8x128xf32>
    %2070 = vector.extract_strided_slice %16 {offsets = [54, 0], sizes = [1, 128], strides = [1, 1]} : vector<64x128xf32> to vector<1x128xf32>
    %2071 = vector.broadcast %2070 : vector<1x128xf32> to vector<8x128xf32>
    %2072 = arith.subf %13, %2071 : vector<8x128xf32>
    %2073 = math.absf %2072 : vector<8x128xf32>
    %cst_603 = arith.constant 0.327591091 : f32
    %2074 = vector.broadcast %cst_603 : f32 to vector<8x128xf32>
    %2075 = arith.mulf %2074, %2073 : vector<8x128xf32>
    %cst_604 = arith.constant 1.000000e+00 : f32
    %2076 = vector.broadcast %cst_604 : f32 to vector<8x128xf32>
    %2077 = arith.addf %2076, %2075 : vector<8x128xf32>
    %2078 = tpu.reciprocal %2077 {approx = true} : vector<8x128xf32> -> vector<8x128xf32>
    %2079 = arith.mulf %2077, %2078 : vector<8x128xf32>
    %cst_605 = arith.constant 2.000000e+00 : f32
    %2080 = vector.broadcast %cst_605 : f32 to vector<8x128xf32>
    %2081 = arith.subf %2080, %2079 : vector<8x128xf32>
    %2082 = arith.mulf %2078, %2081 : vector<8x128xf32>
    %cst_606 = arith.constant 0.53070271 : f32
    %2083 = vector.broadcast %cst_606 : f32 to vector<8x128xf32>
    %2084 = arith.mulf %2083, %2082 : vector<8x128xf32>
    %cst_607 = arith.constant -0.72657603 : f32
    %2085 = vector.broadcast %cst_607 : f32 to vector<8x128xf32>
    %2086 = arith.addf %2084, %2085 : vector<8x128xf32>
    %2087 = arith.mulf %2086, %2082 : vector<8x128xf32>
    %cst_608 = arith.constant 0.710706889 : f32
    %2088 = vector.broadcast %cst_608 : f32 to vector<8x128xf32>
    %2089 = arith.addf %2087, %2088 : vector<8x128xf32>
    %2090 = arith.mulf %2089, %2082 : vector<8x128xf32>
    %cst_609 = arith.constant -0.142248362 : f32
    %2091 = vector.broadcast %cst_609 : f32 to vector<8x128xf32>
    %2092 = arith.addf %2090, %2091 : vector<8x128xf32>
    %2093 = arith.mulf %2092, %2082 : vector<8x128xf32>
    %cst_610 = arith.constant 0.127414793 : f32
    %2094 = vector.broadcast %cst_610 : f32 to vector<8x128xf32>
    %2095 = arith.addf %2093, %2094 : vector<8x128xf32>
    %2096 = arith.mulf %2095, %2082 : vector<8x128xf32>
    %2097 = arith.mulf %2072, %2072 : vector<8x128xf32>
    %cst_611 = arith.constant 0.000000e+00 : f32
    %2098 = vector.broadcast %cst_611 : f32 to vector<8x128xf32>
    %2099 = arith.subf %2098, %2097 : vector<8x128xf32>
    %2100 = math.exp %2099 : vector<8x128xf32>
    %2101 = arith.mulf %2096, %2100 : vector<8x128xf32>
    %cst_612 = arith.constant 0.000000e+00 : f32
    %2102 = vector.broadcast %cst_612 : f32 to vector<8x128xf32>
    %2103 = arith.cmpf oge, %2072, %2102 : vector<8x128xf32>
    %cst_613 = arith.constant 1.000000e+00 : f32
    %2104 = vector.broadcast %cst_613 : f32 to vector<8x128xf32>
    %2105 = arith.subf %2104, %2101 : vector<8x128xf32>
    %2106 = arith.select %2103, %2105, %2101 : vector<8x128xi1>, vector<8x128xf32>
    %2107 = arith.addf %2069, %2106 : vector<8x128xf32>
    %2108 = vector.extract_strided_slice %16 {offsets = [55, 0], sizes = [1, 128], strides = [1, 1]} : vector<64x128xf32> to vector<1x128xf32>
    %2109 = vector.broadcast %2108 : vector<1x128xf32> to vector<8x128xf32>
    %2110 = arith.subf %13, %2109 : vector<8x128xf32>
    %2111 = math.absf %2110 : vector<8x128xf32>
    %cst_614 = arith.constant 0.327591091 : f32
    %2112 = vector.broadcast %cst_614 : f32 to vector<8x128xf32>
    %2113 = arith.mulf %2112, %2111 : vector<8x128xf32>
    %cst_615 = arith.constant 1.000000e+00 : f32
    %2114 = vector.broadcast %cst_615 : f32 to vector<8x128xf32>
    %2115 = arith.addf %2114, %2113 : vector<8x128xf32>
    %2116 = tpu.reciprocal %2115 {approx = true} : vector<8x128xf32> -> vector<8x128xf32>
    %2117 = arith.mulf %2115, %2116 : vector<8x128xf32>
    %cst_616 = arith.constant 2.000000e+00 : f32
    %2118 = vector.broadcast %cst_616 : f32 to vector<8x128xf32>
    %2119 = arith.subf %2118, %2117 : vector<8x128xf32>
    %2120 = arith.mulf %2116, %2119 : vector<8x128xf32>
    %cst_617 = arith.constant 0.53070271 : f32
    %2121 = vector.broadcast %cst_617 : f32 to vector<8x128xf32>
    %2122 = arith.mulf %2121, %2120 : vector<8x128xf32>
    %cst_618 = arith.constant -0.72657603 : f32
    %2123 = vector.broadcast %cst_618 : f32 to vector<8x128xf32>
    %2124 = arith.addf %2122, %2123 : vector<8x128xf32>
    %2125 = arith.mulf %2124, %2120 : vector<8x128xf32>
    %cst_619 = arith.constant 0.710706889 : f32
    %2126 = vector.broadcast %cst_619 : f32 to vector<8x128xf32>
    %2127 = arith.addf %2125, %2126 : vector<8x128xf32>
    %2128 = arith.mulf %2127, %2120 : vector<8x128xf32>
    %cst_620 = arith.constant -0.142248362 : f32
    %2129 = vector.broadcast %cst_620 : f32 to vector<8x128xf32>
    %2130 = arith.addf %2128, %2129 : vector<8x128xf32>
    %2131 = arith.mulf %2130, %2120 : vector<8x128xf32>
    %cst_621 = arith.constant 0.127414793 : f32
    %2132 = vector.broadcast %cst_621 : f32 to vector<8x128xf32>
    %2133 = arith.addf %2131, %2132 : vector<8x128xf32>
    %2134 = arith.mulf %2133, %2120 : vector<8x128xf32>
    %2135 = arith.mulf %2110, %2110 : vector<8x128xf32>
    %cst_622 = arith.constant 0.000000e+00 : f32
    %2136 = vector.broadcast %cst_622 : f32 to vector<8x128xf32>
    %2137 = arith.subf %2136, %2135 : vector<8x128xf32>
    %2138 = math.exp %2137 : vector<8x128xf32>
    %2139 = arith.mulf %2134, %2138 : vector<8x128xf32>
    %cst_623 = arith.constant 0.000000e+00 : f32
    %2140 = vector.broadcast %cst_623 : f32 to vector<8x128xf32>
    %2141 = arith.cmpf oge, %2110, %2140 : vector<8x128xf32>
    %cst_624 = arith.constant 1.000000e+00 : f32
    %2142 = vector.broadcast %cst_624 : f32 to vector<8x128xf32>
    %2143 = arith.subf %2142, %2139 : vector<8x128xf32>
    %2144 = arith.select %2141, %2143, %2139 : vector<8x128xi1>, vector<8x128xf32>
    %2145 = arith.addf %2107, %2144 : vector<8x128xf32>
    %2146 = vector.extract_strided_slice %16 {offsets = [56, 0], sizes = [1, 128], strides = [1, 1]} : vector<64x128xf32> to vector<1x128xf32>
    %2147 = vector.broadcast %2146 : vector<1x128xf32> to vector<8x128xf32>
    %2148 = arith.subf %13, %2147 : vector<8x128xf32>
    %2149 = math.absf %2148 : vector<8x128xf32>
    %cst_625 = arith.constant 0.327591091 : f32
    %2150 = vector.broadcast %cst_625 : f32 to vector<8x128xf32>
    %2151 = arith.mulf %2150, %2149 : vector<8x128xf32>
    %cst_626 = arith.constant 1.000000e+00 : f32
    %2152 = vector.broadcast %cst_626 : f32 to vector<8x128xf32>
    %2153 = arith.addf %2152, %2151 : vector<8x128xf32>
    %2154 = tpu.reciprocal %2153 {approx = true} : vector<8x128xf32> -> vector<8x128xf32>
    %2155 = arith.mulf %2153, %2154 : vector<8x128xf32>
    %cst_627 = arith.constant 2.000000e+00 : f32
    %2156 = vector.broadcast %cst_627 : f32 to vector<8x128xf32>
    %2157 = arith.subf %2156, %2155 : vector<8x128xf32>
    %2158 = arith.mulf %2154, %2157 : vector<8x128xf32>
    %cst_628 = arith.constant 0.53070271 : f32
    %2159 = vector.broadcast %cst_628 : f32 to vector<8x128xf32>
    %2160 = arith.mulf %2159, %2158 : vector<8x128xf32>
    %cst_629 = arith.constant -0.72657603 : f32
    %2161 = vector.broadcast %cst_629 : f32 to vector<8x128xf32>
    %2162 = arith.addf %2160, %2161 : vector<8x128xf32>
    %2163 = arith.mulf %2162, %2158 : vector<8x128xf32>
    %cst_630 = arith.constant 0.710706889 : f32
    %2164 = vector.broadcast %cst_630 : f32 to vector<8x128xf32>
    %2165 = arith.addf %2163, %2164 : vector<8x128xf32>
    %2166 = arith.mulf %2165, %2158 : vector<8x128xf32>
    %cst_631 = arith.constant -0.142248362 : f32
    %2167 = vector.broadcast %cst_631 : f32 to vector<8x128xf32>
    %2168 = arith.addf %2166, %2167 : vector<8x128xf32>
    %2169 = arith.mulf %2168, %2158 : vector<8x128xf32>
    %cst_632 = arith.constant 0.127414793 : f32
    %2170 = vector.broadcast %cst_632 : f32 to vector<8x128xf32>
    %2171 = arith.addf %2169, %2170 : vector<8x128xf32>
    %2172 = arith.mulf %2171, %2158 : vector<8x128xf32>
    %2173 = arith.mulf %2148, %2148 : vector<8x128xf32>
    %cst_633 = arith.constant 0.000000e+00 : f32
    %2174 = vector.broadcast %cst_633 : f32 to vector<8x128xf32>
    %2175 = arith.subf %2174, %2173 : vector<8x128xf32>
    %2176 = math.exp %2175 : vector<8x128xf32>
    %2177 = arith.mulf %2172, %2176 : vector<8x128xf32>
    %cst_634 = arith.constant 0.000000e+00 : f32
    %2178 = vector.broadcast %cst_634 : f32 to vector<8x128xf32>
    %2179 = arith.cmpf oge, %2148, %2178 : vector<8x128xf32>
    %cst_635 = arith.constant 1.000000e+00 : f32
    %2180 = vector.broadcast %cst_635 : f32 to vector<8x128xf32>
    %2181 = arith.subf %2180, %2177 : vector<8x128xf32>
    %2182 = arith.select %2179, %2181, %2177 : vector<8x128xi1>, vector<8x128xf32>
    %2183 = arith.addf %2145, %2182 : vector<8x128xf32>
    %2184 = vector.extract_strided_slice %16 {offsets = [57, 0], sizes = [1, 128], strides = [1, 1]} : vector<64x128xf32> to vector<1x128xf32>
    %2185 = vector.broadcast %2184 : vector<1x128xf32> to vector<8x128xf32>
    %2186 = arith.subf %13, %2185 : vector<8x128xf32>
    %2187 = math.absf %2186 : vector<8x128xf32>
    %cst_636 = arith.constant 0.327591091 : f32
    %2188 = vector.broadcast %cst_636 : f32 to vector<8x128xf32>
    %2189 = arith.mulf %2188, %2187 : vector<8x128xf32>
    %cst_637 = arith.constant 1.000000e+00 : f32
    %2190 = vector.broadcast %cst_637 : f32 to vector<8x128xf32>
    %2191 = arith.addf %2190, %2189 : vector<8x128xf32>
    %2192 = tpu.reciprocal %2191 {approx = true} : vector<8x128xf32> -> vector<8x128xf32>
    %2193 = arith.mulf %2191, %2192 : vector<8x128xf32>
    %cst_638 = arith.constant 2.000000e+00 : f32
    %2194 = vector.broadcast %cst_638 : f32 to vector<8x128xf32>
    %2195 = arith.subf %2194, %2193 : vector<8x128xf32>
    %2196 = arith.mulf %2192, %2195 : vector<8x128xf32>
    %cst_639 = arith.constant 0.53070271 : f32
    %2197 = vector.broadcast %cst_639 : f32 to vector<8x128xf32>
    %2198 = arith.mulf %2197, %2196 : vector<8x128xf32>
    %cst_640 = arith.constant -0.72657603 : f32
    %2199 = vector.broadcast %cst_640 : f32 to vector<8x128xf32>
    %2200 = arith.addf %2198, %2199 : vector<8x128xf32>
    %2201 = arith.mulf %2200, %2196 : vector<8x128xf32>
    %cst_641 = arith.constant 0.710706889 : f32
    %2202 = vector.broadcast %cst_641 : f32 to vector<8x128xf32>
    %2203 = arith.addf %2201, %2202 : vector<8x128xf32>
    %2204 = arith.mulf %2203, %2196 : vector<8x128xf32>
    %cst_642 = arith.constant -0.142248362 : f32
    %2205 = vector.broadcast %cst_642 : f32 to vector<8x128xf32>
    %2206 = arith.addf %2204, %2205 : vector<8x128xf32>
    %2207 = arith.mulf %2206, %2196 : vector<8x128xf32>
    %cst_643 = arith.constant 0.127414793 : f32
    %2208 = vector.broadcast %cst_643 : f32 to vector<8x128xf32>
    %2209 = arith.addf %2207, %2208 : vector<8x128xf32>
    %2210 = arith.mulf %2209, %2196 : vector<8x128xf32>
    %2211 = arith.mulf %2186, %2186 : vector<8x128xf32>
    %cst_644 = arith.constant 0.000000e+00 : f32
    %2212 = vector.broadcast %cst_644 : f32 to vector<8x128xf32>
    %2213 = arith.subf %2212, %2211 : vector<8x128xf32>
    %2214 = math.exp %2213 : vector<8x128xf32>
    %2215 = arith.mulf %2210, %2214 : vector<8x128xf32>
    %cst_645 = arith.constant 0.000000e+00 : f32
    %2216 = vector.broadcast %cst_645 : f32 to vector<8x128xf32>
    %2217 = arith.cmpf oge, %2186, %2216 : vector<8x128xf32>
    %cst_646 = arith.constant 1.000000e+00 : f32
    %2218 = vector.broadcast %cst_646 : f32 to vector<8x128xf32>
    %2219 = arith.subf %2218, %2215 : vector<8x128xf32>
    %2220 = arith.select %2217, %2219, %2215 : vector<8x128xi1>, vector<8x128xf32>
    %2221 = arith.addf %2183, %2220 : vector<8x128xf32>
    %2222 = vector.extract_strided_slice %16 {offsets = [58, 0], sizes = [1, 128], strides = [1, 1]} : vector<64x128xf32> to vector<1x128xf32>
    %2223 = vector.broadcast %2222 : vector<1x128xf32> to vector<8x128xf32>
    %2224 = arith.subf %13, %2223 : vector<8x128xf32>
    %2225 = math.absf %2224 : vector<8x128xf32>
    %cst_647 = arith.constant 0.327591091 : f32
    %2226 = vector.broadcast %cst_647 : f32 to vector<8x128xf32>
    %2227 = arith.mulf %2226, %2225 : vector<8x128xf32>
    %cst_648 = arith.constant 1.000000e+00 : f32
    %2228 = vector.broadcast %cst_648 : f32 to vector<8x128xf32>
    %2229 = arith.addf %2228, %2227 : vector<8x128xf32>
    %2230 = tpu.reciprocal %2229 {approx = true} : vector<8x128xf32> -> vector<8x128xf32>
    %2231 = arith.mulf %2229, %2230 : vector<8x128xf32>
    %cst_649 = arith.constant 2.000000e+00 : f32
    %2232 = vector.broadcast %cst_649 : f32 to vector<8x128xf32>
    %2233 = arith.subf %2232, %2231 : vector<8x128xf32>
    %2234 = arith.mulf %2230, %2233 : vector<8x128xf32>
    %cst_650 = arith.constant 0.53070271 : f32
    %2235 = vector.broadcast %cst_650 : f32 to vector<8x128xf32>
    %2236 = arith.mulf %2235, %2234 : vector<8x128xf32>
    %cst_651 = arith.constant -0.72657603 : f32
    %2237 = vector.broadcast %cst_651 : f32 to vector<8x128xf32>
    %2238 = arith.addf %2236, %2237 : vector<8x128xf32>
    %2239 = arith.mulf %2238, %2234 : vector<8x128xf32>
    %cst_652 = arith.constant 0.710706889 : f32
    %2240 = vector.broadcast %cst_652 : f32 to vector<8x128xf32>
    %2241 = arith.addf %2239, %2240 : vector<8x128xf32>
    %2242 = arith.mulf %2241, %2234 : vector<8x128xf32>
    %cst_653 = arith.constant -0.142248362 : f32
    %2243 = vector.broadcast %cst_653 : f32 to vector<8x128xf32>
    %2244 = arith.addf %2242, %2243 : vector<8x128xf32>
    %2245 = arith.mulf %2244, %2234 : vector<8x128xf32>
    %cst_654 = arith.constant 0.127414793 : f32
    %2246 = vector.broadcast %cst_654 : f32 to vector<8x128xf32>
    %2247 = arith.addf %2245, %2246 : vector<8x128xf32>
    %2248 = arith.mulf %2247, %2234 : vector<8x128xf32>
    %2249 = arith.mulf %2224, %2224 : vector<8x128xf32>
    %cst_655 = arith.constant 0.000000e+00 : f32
    %2250 = vector.broadcast %cst_655 : f32 to vector<8x128xf32>
    %2251 = arith.subf %2250, %2249 : vector<8x128xf32>
    %2252 = math.exp %2251 : vector<8x128xf32>
    %2253 = arith.mulf %2248, %2252 : vector<8x128xf32>
    %cst_656 = arith.constant 0.000000e+00 : f32
    %2254 = vector.broadcast %cst_656 : f32 to vector<8x128xf32>
    %2255 = arith.cmpf oge, %2224, %2254 : vector<8x128xf32>
    %cst_657 = arith.constant 1.000000e+00 : f32
    %2256 = vector.broadcast %cst_657 : f32 to vector<8x128xf32>
    %2257 = arith.subf %2256, %2253 : vector<8x128xf32>
    %2258 = arith.select %2255, %2257, %2253 : vector<8x128xi1>, vector<8x128xf32>
    %2259 = arith.addf %2221, %2258 : vector<8x128xf32>
    %2260 = vector.extract_strided_slice %16 {offsets = [59, 0], sizes = [1, 128], strides = [1, 1]} : vector<64x128xf32> to vector<1x128xf32>
    %2261 = vector.broadcast %2260 : vector<1x128xf32> to vector<8x128xf32>
    %2262 = arith.subf %13, %2261 : vector<8x128xf32>
    %2263 = math.absf %2262 : vector<8x128xf32>
    %cst_658 = arith.constant 0.327591091 : f32
    %2264 = vector.broadcast %cst_658 : f32 to vector<8x128xf32>
    %2265 = arith.mulf %2264, %2263 : vector<8x128xf32>
    %cst_659 = arith.constant 1.000000e+00 : f32
    %2266 = vector.broadcast %cst_659 : f32 to vector<8x128xf32>
    %2267 = arith.addf %2266, %2265 : vector<8x128xf32>
    %2268 = tpu.reciprocal %2267 {approx = true} : vector<8x128xf32> -> vector<8x128xf32>
    %2269 = arith.mulf %2267, %2268 : vector<8x128xf32>
    %cst_660 = arith.constant 2.000000e+00 : f32
    %2270 = vector.broadcast %cst_660 : f32 to vector<8x128xf32>
    %2271 = arith.subf %2270, %2269 : vector<8x128xf32>
    %2272 = arith.mulf %2268, %2271 : vector<8x128xf32>
    %cst_661 = arith.constant 0.53070271 : f32
    %2273 = vector.broadcast %cst_661 : f32 to vector<8x128xf32>
    %2274 = arith.mulf %2273, %2272 : vector<8x128xf32>
    %cst_662 = arith.constant -0.72657603 : f32
    %2275 = vector.broadcast %cst_662 : f32 to vector<8x128xf32>
    %2276 = arith.addf %2274, %2275 : vector<8x128xf32>
    %2277 = arith.mulf %2276, %2272 : vector<8x128xf32>
    %cst_663 = arith.constant 0.710706889 : f32
    %2278 = vector.broadcast %cst_663 : f32 to vector<8x128xf32>
    %2279 = arith.addf %2277, %2278 : vector<8x128xf32>
    %2280 = arith.mulf %2279, %2272 : vector<8x128xf32>
    %cst_664 = arith.constant -0.142248362 : f32
    %2281 = vector.broadcast %cst_664 : f32 to vector<8x128xf32>
    %2282 = arith.addf %2280, %2281 : vector<8x128xf32>
    %2283 = arith.mulf %2282, %2272 : vector<8x128xf32>
    %cst_665 = arith.constant 0.127414793 : f32
    %2284 = vector.broadcast %cst_665 : f32 to vector<8x128xf32>
    %2285 = arith.addf %2283, %2284 : vector<8x128xf32>
    %2286 = arith.mulf %2285, %2272 : vector<8x128xf32>
    %2287 = arith.mulf %2262, %2262 : vector<8x128xf32>
    %cst_666 = arith.constant 0.000000e+00 : f32
    %2288 = vector.broadcast %cst_666 : f32 to vector<8x128xf32>
    %2289 = arith.subf %2288, %2287 : vector<8x128xf32>
    %2290 = math.exp %2289 : vector<8x128xf32>
    %2291 = arith.mulf %2286, %2290 : vector<8x128xf32>
    %cst_667 = arith.constant 0.000000e+00 : f32
    %2292 = vector.broadcast %cst_667 : f32 to vector<8x128xf32>
    %2293 = arith.cmpf oge, %2262, %2292 : vector<8x128xf32>
    %cst_668 = arith.constant 1.000000e+00 : f32
    %2294 = vector.broadcast %cst_668 : f32 to vector<8x128xf32>
    %2295 = arith.subf %2294, %2291 : vector<8x128xf32>
    %2296 = arith.select %2293, %2295, %2291 : vector<8x128xi1>, vector<8x128xf32>
    %2297 = arith.addf %2259, %2296 : vector<8x128xf32>
    %2298 = vector.extract_strided_slice %16 {offsets = [60, 0], sizes = [1, 128], strides = [1, 1]} : vector<64x128xf32> to vector<1x128xf32>
    %2299 = vector.broadcast %2298 : vector<1x128xf32> to vector<8x128xf32>
    %2300 = arith.subf %13, %2299 : vector<8x128xf32>
    %2301 = math.absf %2300 : vector<8x128xf32>
    %cst_669 = arith.constant 0.327591091 : f32
    %2302 = vector.broadcast %cst_669 : f32 to vector<8x128xf32>
    %2303 = arith.mulf %2302, %2301 : vector<8x128xf32>
    %cst_670 = arith.constant 1.000000e+00 : f32
    %2304 = vector.broadcast %cst_670 : f32 to vector<8x128xf32>
    %2305 = arith.addf %2304, %2303 : vector<8x128xf32>
    %2306 = tpu.reciprocal %2305 {approx = true} : vector<8x128xf32> -> vector<8x128xf32>
    %2307 = arith.mulf %2305, %2306 : vector<8x128xf32>
    %cst_671 = arith.constant 2.000000e+00 : f32
    %2308 = vector.broadcast %cst_671 : f32 to vector<8x128xf32>
    %2309 = arith.subf %2308, %2307 : vector<8x128xf32>
    %2310 = arith.mulf %2306, %2309 : vector<8x128xf32>
    %cst_672 = arith.constant 0.53070271 : f32
    %2311 = vector.broadcast %cst_672 : f32 to vector<8x128xf32>
    %2312 = arith.mulf %2311, %2310 : vector<8x128xf32>
    %cst_673 = arith.constant -0.72657603 : f32
    %2313 = vector.broadcast %cst_673 : f32 to vector<8x128xf32>
    %2314 = arith.addf %2312, %2313 : vector<8x128xf32>
    %2315 = arith.mulf %2314, %2310 : vector<8x128xf32>
    %cst_674 = arith.constant 0.710706889 : f32
    %2316 = vector.broadcast %cst_674 : f32 to vector<8x128xf32>
    %2317 = arith.addf %2315, %2316 : vector<8x128xf32>
    %2318 = arith.mulf %2317, %2310 : vector<8x128xf32>
    %cst_675 = arith.constant -0.142248362 : f32
    %2319 = vector.broadcast %cst_675 : f32 to vector<8x128xf32>
    %2320 = arith.addf %2318, %2319 : vector<8x128xf32>
    %2321 = arith.mulf %2320, %2310 : vector<8x128xf32>
    %cst_676 = arith.constant 0.127414793 : f32
    %2322 = vector.broadcast %cst_676 : f32 to vector<8x128xf32>
    %2323 = arith.addf %2321, %2322 : vector<8x128xf32>
    %2324 = arith.mulf %2323, %2310 : vector<8x128xf32>
    %2325 = arith.mulf %2300, %2300 : vector<8x128xf32>
    %cst_677 = arith.constant 0.000000e+00 : f32
    %2326 = vector.broadcast %cst_677 : f32 to vector<8x128xf32>
    %2327 = arith.subf %2326, %2325 : vector<8x128xf32>
    %2328 = math.exp %2327 : vector<8x128xf32>
    %2329 = arith.mulf %2324, %2328 : vector<8x128xf32>
    %cst_678 = arith.constant 0.000000e+00 : f32
    %2330 = vector.broadcast %cst_678 : f32 to vector<8x128xf32>
    %2331 = arith.cmpf oge, %2300, %2330 : vector<8x128xf32>
    %cst_679 = arith.constant 1.000000e+00 : f32
    %2332 = vector.broadcast %cst_679 : f32 to vector<8x128xf32>
    %2333 = arith.subf %2332, %2329 : vector<8x128xf32>
    %2334 = arith.select %2331, %2333, %2329 : vector<8x128xi1>, vector<8x128xf32>
    %2335 = arith.addf %2297, %2334 : vector<8x128xf32>
    %2336 = vector.extract_strided_slice %16 {offsets = [61, 0], sizes = [1, 128], strides = [1, 1]} : vector<64x128xf32> to vector<1x128xf32>
    %2337 = vector.broadcast %2336 : vector<1x128xf32> to vector<8x128xf32>
    %2338 = arith.subf %13, %2337 : vector<8x128xf32>
    %2339 = math.absf %2338 : vector<8x128xf32>
    %cst_680 = arith.constant 0.327591091 : f32
    %2340 = vector.broadcast %cst_680 : f32 to vector<8x128xf32>
    %2341 = arith.mulf %2340, %2339 : vector<8x128xf32>
    %cst_681 = arith.constant 1.000000e+00 : f32
    %2342 = vector.broadcast %cst_681 : f32 to vector<8x128xf32>
    %2343 = arith.addf %2342, %2341 : vector<8x128xf32>
    %2344 = tpu.reciprocal %2343 {approx = true} : vector<8x128xf32> -> vector<8x128xf32>
    %2345 = arith.mulf %2343, %2344 : vector<8x128xf32>
    %cst_682 = arith.constant 2.000000e+00 : f32
    %2346 = vector.broadcast %cst_682 : f32 to vector<8x128xf32>
    %2347 = arith.subf %2346, %2345 : vector<8x128xf32>
    %2348 = arith.mulf %2344, %2347 : vector<8x128xf32>
    %cst_683 = arith.constant 0.53070271 : f32
    %2349 = vector.broadcast %cst_683 : f32 to vector<8x128xf32>
    %2350 = arith.mulf %2349, %2348 : vector<8x128xf32>
    %cst_684 = arith.constant -0.72657603 : f32
    %2351 = vector.broadcast %cst_684 : f32 to vector<8x128xf32>
    %2352 = arith.addf %2350, %2351 : vector<8x128xf32>
    %2353 = arith.mulf %2352, %2348 : vector<8x128xf32>
    %cst_685 = arith.constant 0.710706889 : f32
    %2354 = vector.broadcast %cst_685 : f32 to vector<8x128xf32>
    %2355 = arith.addf %2353, %2354 : vector<8x128xf32>
    %2356 = arith.mulf %2355, %2348 : vector<8x128xf32>
    %cst_686 = arith.constant -0.142248362 : f32
    %2357 = vector.broadcast %cst_686 : f32 to vector<8x128xf32>
    %2358 = arith.addf %2356, %2357 : vector<8x128xf32>
    %2359 = arith.mulf %2358, %2348 : vector<8x128xf32>
    %cst_687 = arith.constant 0.127414793 : f32
    %2360 = vector.broadcast %cst_687 : f32 to vector<8x128xf32>
    %2361 = arith.addf %2359, %2360 : vector<8x128xf32>
    %2362 = arith.mulf %2361, %2348 : vector<8x128xf32>
    %2363 = arith.mulf %2338, %2338 : vector<8x128xf32>
    %cst_688 = arith.constant 0.000000e+00 : f32
    %2364 = vector.broadcast %cst_688 : f32 to vector<8x128xf32>
    %2365 = arith.subf %2364, %2363 : vector<8x128xf32>
    %2366 = math.exp %2365 : vector<8x128xf32>
    %2367 = arith.mulf %2362, %2366 : vector<8x128xf32>
    %cst_689 = arith.constant 0.000000e+00 : f32
    %2368 = vector.broadcast %cst_689 : f32 to vector<8x128xf32>
    %2369 = arith.cmpf oge, %2338, %2368 : vector<8x128xf32>
    %cst_690 = arith.constant 1.000000e+00 : f32
    %2370 = vector.broadcast %cst_690 : f32 to vector<8x128xf32>
    %2371 = arith.subf %2370, %2367 : vector<8x128xf32>
    %2372 = arith.select %2369, %2371, %2367 : vector<8x128xi1>, vector<8x128xf32>
    %2373 = arith.addf %2335, %2372 : vector<8x128xf32>
    %2374 = vector.extract_strided_slice %16 {offsets = [62, 0], sizes = [1, 128], strides = [1, 1]} : vector<64x128xf32> to vector<1x128xf32>
    %2375 = vector.broadcast %2374 : vector<1x128xf32> to vector<8x128xf32>
    %2376 = arith.subf %13, %2375 : vector<8x128xf32>
    %2377 = math.absf %2376 : vector<8x128xf32>
    %cst_691 = arith.constant 0.327591091 : f32
    %2378 = vector.broadcast %cst_691 : f32 to vector<8x128xf32>
    %2379 = arith.mulf %2378, %2377 : vector<8x128xf32>
    %cst_692 = arith.constant 1.000000e+00 : f32
    %2380 = vector.broadcast %cst_692 : f32 to vector<8x128xf32>
    %2381 = arith.addf %2380, %2379 : vector<8x128xf32>
    %2382 = tpu.reciprocal %2381 {approx = true} : vector<8x128xf32> -> vector<8x128xf32>
    %2383 = arith.mulf %2381, %2382 : vector<8x128xf32>
    %cst_693 = arith.constant 2.000000e+00 : f32
    %2384 = vector.broadcast %cst_693 : f32 to vector<8x128xf32>
    %2385 = arith.subf %2384, %2383 : vector<8x128xf32>
    %2386 = arith.mulf %2382, %2385 : vector<8x128xf32>
    %cst_694 = arith.constant 0.53070271 : f32
    %2387 = vector.broadcast %cst_694 : f32 to vector<8x128xf32>
    %2388 = arith.mulf %2387, %2386 : vector<8x128xf32>
    %cst_695 = arith.constant -0.72657603 : f32
    %2389 = vector.broadcast %cst_695 : f32 to vector<8x128xf32>
    %2390 = arith.addf %2388, %2389 : vector<8x128xf32>
    %2391 = arith.mulf %2390, %2386 : vector<8x128xf32>
    %cst_696 = arith.constant 0.710706889 : f32
    %2392 = vector.broadcast %cst_696 : f32 to vector<8x128xf32>
    %2393 = arith.addf %2391, %2392 : vector<8x128xf32>
    %2394 = arith.mulf %2393, %2386 : vector<8x128xf32>
    %cst_697 = arith.constant -0.142248362 : f32
    %2395 = vector.broadcast %cst_697 : f32 to vector<8x128xf32>
    %2396 = arith.addf %2394, %2395 : vector<8x128xf32>
    %2397 = arith.mulf %2396, %2386 : vector<8x128xf32>
    %cst_698 = arith.constant 0.127414793 : f32
    %2398 = vector.broadcast %cst_698 : f32 to vector<8x128xf32>
    %2399 = arith.addf %2397, %2398 : vector<8x128xf32>
    %2400 = arith.mulf %2399, %2386 : vector<8x128xf32>
    %2401 = arith.mulf %2376, %2376 : vector<8x128xf32>
    %cst_699 = arith.constant 0.000000e+00 : f32
    %2402 = vector.broadcast %cst_699 : f32 to vector<8x128xf32>
    %2403 = arith.subf %2402, %2401 : vector<8x128xf32>
    %2404 = math.exp %2403 : vector<8x128xf32>
    %2405 = arith.mulf %2400, %2404 : vector<8x128xf32>
    %cst_700 = arith.constant 0.000000e+00 : f32
    %2406 = vector.broadcast %cst_700 : f32 to vector<8x128xf32>
    %2407 = arith.cmpf oge, %2376, %2406 : vector<8x128xf32>
    %cst_701 = arith.constant 1.000000e+00 : f32
    %2408 = vector.broadcast %cst_701 : f32 to vector<8x128xf32>
    %2409 = arith.subf %2408, %2405 : vector<8x128xf32>
    %2410 = arith.select %2407, %2409, %2405 : vector<8x128xi1>, vector<8x128xf32>
    %2411 = arith.addf %2373, %2410 : vector<8x128xf32>
    %2412 = vector.extract_strided_slice %16 {offsets = [63, 0], sizes = [1, 128], strides = [1, 1]} : vector<64x128xf32> to vector<1x128xf32>
    %2413 = vector.broadcast %2412 : vector<1x128xf32> to vector<8x128xf32>
    %2414 = arith.subf %13, %2413 : vector<8x128xf32>
    %2415 = math.absf %2414 : vector<8x128xf32>
    %cst_702 = arith.constant 0.327591091 : f32
    %2416 = vector.broadcast %cst_702 : f32 to vector<8x128xf32>
    %2417 = arith.mulf %2416, %2415 : vector<8x128xf32>
    %cst_703 = arith.constant 1.000000e+00 : f32
    %2418 = vector.broadcast %cst_703 : f32 to vector<8x128xf32>
    %2419 = arith.addf %2418, %2417 : vector<8x128xf32>
    %2420 = tpu.reciprocal %2419 {approx = true} : vector<8x128xf32> -> vector<8x128xf32>
    %2421 = arith.mulf %2419, %2420 : vector<8x128xf32>
    %cst_704 = arith.constant 2.000000e+00 : f32
    %2422 = vector.broadcast %cst_704 : f32 to vector<8x128xf32>
    %2423 = arith.subf %2422, %2421 : vector<8x128xf32>
    %2424 = arith.mulf %2420, %2423 : vector<8x128xf32>
    %cst_705 = arith.constant 0.53070271 : f32
    %2425 = vector.broadcast %cst_705 : f32 to vector<8x128xf32>
    %2426 = arith.mulf %2425, %2424 : vector<8x128xf32>
    %cst_706 = arith.constant -0.72657603 : f32
    %2427 = vector.broadcast %cst_706 : f32 to vector<8x128xf32>
    %2428 = arith.addf %2426, %2427 : vector<8x128xf32>
    %2429 = arith.mulf %2428, %2424 : vector<8x128xf32>
    %cst_707 = arith.constant 0.710706889 : f32
    %2430 = vector.broadcast %cst_707 : f32 to vector<8x128xf32>
    %2431 = arith.addf %2429, %2430 : vector<8x128xf32>
    %2432 = arith.mulf %2431, %2424 : vector<8x128xf32>
    %cst_708 = arith.constant -0.142248362 : f32
    %2433 = vector.broadcast %cst_708 : f32 to vector<8x128xf32>
    %2434 = arith.addf %2432, %2433 : vector<8x128xf32>
    %2435 = arith.mulf %2434, %2424 : vector<8x128xf32>
    %cst_709 = arith.constant 0.127414793 : f32
    %2436 = vector.broadcast %cst_709 : f32 to vector<8x128xf32>
    %2437 = arith.addf %2435, %2436 : vector<8x128xf32>
    %2438 = arith.mulf %2437, %2424 : vector<8x128xf32>
    %2439 = arith.mulf %2414, %2414 : vector<8x128xf32>
    %cst_710 = arith.constant 0.000000e+00 : f32
    %2440 = vector.broadcast %cst_710 : f32 to vector<8x128xf32>
    %2441 = arith.subf %2440, %2439 : vector<8x128xf32>
    %2442 = math.exp %2441 : vector<8x128xf32>
    %2443 = arith.mulf %2438, %2442 : vector<8x128xf32>
    %cst_711 = arith.constant 0.000000e+00 : f32
    %2444 = vector.broadcast %cst_711 : f32 to vector<8x128xf32>
    %2445 = arith.cmpf oge, %2414, %2444 : vector<8x128xf32>
    %cst_712 = arith.constant 1.000000e+00 : f32
    %2446 = vector.broadcast %cst_712 : f32 to vector<8x128xf32>
    %2447 = arith.subf %2446, %2443 : vector<8x128xf32>
    %2448 = arith.select %2445, %2447, %2443 : vector<8x128xi1>, vector<8x128xf32>
    %2449 = arith.addf %2411, %2448 : vector<8x128xf32>
    %c0_713 = arith.constant 0 : index
    %c0_714 = arith.constant 0 : index
    %2450 = vector.load %arg5[%c0_713, %c0_714] : memref<8x128xf32, #tpu.memory_space<vmem>>, vector<8x128xf32>
    %2451 = arith.addf %2450, %2449 : vector<8x128xf32>
    %c0_715 = arith.constant 0 : index
    %c0_716 = arith.constant 0 : index
    %2452 = vector.load %arg5[%c0_715, %c0_716] : memref<8x128xf32, #tpu.memory_space<vmem>>, vector<8x128xf32>
    tpu.vector_store %arg5[%c0_715, %c0_716], %2451 {strides = array<i32>} : memref<8x128xf32, #tpu.memory_space<vmem>>, vector<8x128xf32>,
    %c0_i32_717 = arith.constant 0 : i32
    %2453 = arith.cmpi eq, %arg1, %c0_i32_717 : i32
    %2454 = arith.extui %2453 : i1 to i32
    %c0_i32_718 = arith.constant 0 : i32
    %2455 = arith.cmpi ne, %2454, %c0_i32_718 : i32
    scf.if %2455 {
      %c0_719 = arith.constant 0 : index
      %c0_720 = arith.constant 0 : index
      %2456 = vector.load %arg5[%c0_719, %c0_720] : memref<8x128xf32, #tpu.memory_space<vmem>>, vector<8x128xf32>
      %cst_721 = arith.constant 1.562500e-02 : f32
      %2457 = vector.broadcast %cst_721 : f32 to vector<8x128xf32>
      %2458 = arith.mulf %2456, %2457 : vector<8x128xf32>
      %c0_722 = arith.constant 0 : index
      %c0_723 = arith.constant 0 : index
      %2459 = vector.load %arg5[%c0_722, %c0_723] : memref<8x128xf32, #tpu.memory_space<vmem>>, vector<8x128xf32>
      tpu.vector_store %arg5[%c0_722, %c0_723], %2458 {strides = array<i32>} : memref<8x128xf32, #tpu.memory_space<vmem>>, vector<8x128xf32>,
    } else {
    }
    return
  }
  func.func @transform_0(%arg0: i32, %arg1: i32) -> (i32, i32) {
    %c0_i32 = arith.constant 0 : i32
    %c0_i32_0 = arith.constant 0 : i32
    return %c0_i32, %arg0 : i32, i32
  }
  func.func @transform_1(%arg0: i32, %arg1: i32) -> (i32, i32) {
    %c0_i32 = arith.constant 0 : i32
    return %arg1, %arg0 : i32, i32
  }
  func.func @transform_2(%arg0: i32, %arg1: i32) -> (i32, i32) {
    %c0_i32 = arith.constant 0 : i32
    %c0_i32_0 = arith.constant 0 : i32
    return %c0_i32, %arg0 : i32, i32
  }
  func.func @transform_3(%arg0: i32, %arg1: i32) -> (i32, i32) {
    %c0_i32 = arith.constant 0 : i32
    %c0_i32_0 = arith.constant 0 : i32
    return %c0_i32, %arg0 : i32, i32
  }
}

</mosaic_0001>

<llo_original>
// kernel: tpu_custom_call.1
$region0: #{tpu_custom_call.1}
  #allocation0 [shape = 'u32[]', space=smem, size = 0x4, offset = 0x4, fixed_abs, tag = 'smem constant byte address 0x4 - core index']
  #allocation1 [shape = 'u32[144,128]{1,0:T(1,128)}', space=vmem, size = 0x12000, scoped, tag = 'internal scratch']
  %s0 = inlined_call_operand.hbm [shape: f32[8,128], index: 0, kind: input, shape index: {}]
  %s1 = inlined_call_operand.hbm [shape: f32[64,128], index: 1, kind: input, shape index: {}]
  %s2 = inlined_call_operand.vmem [shape: f32[1,128], index: 2, kind: input, shape index: {}]
  %s3 = inlined_call_operand.hbm [shape: f32[8,128], index: 3, kind: output, shape index: {}]
  %s4 = sld [smem:[#allocation0]]
  $region38: #{tpu_custom_call.1} parent=0
    _
  %s6 = ssub.s32 1, %s4
  %s7 = scalar_select 0, %s6, %s4
  $region1: #{tpu_custom_call.1} parent=0
    #allocation2 [shape = 'u8[4096]{0}', space=vmem, size = 0x1000, scoped, tag = 'input window, operand 0, single buffered']
    #allocation3 [shape = 's32[1]{0}', space=sflag, size = 0x4, scoped, tag = 'scoped memory for tpu_custom_call.1']
    #allocation4 [shape = 's32[1]{0}', space=sflag, size = 0x4, scoped, tag = 'scoped memory for tpu_custom_call.1']
    #allocation5 [shape = 'u8[32768]{0}', space=vmem, size = 0x8000, scoped, tag = 'input window, operand 1, single buffered']
    #allocation6 [shape = 's32[1]{0}', space=sflag, size = 0x4, scoped, tag = 'scoped memory for tpu_custom_call.1']
    #allocation7 [shape = 'u8[4096]{0}', space=vmem, size = 0x1000, scoped, tag = 'output window, operand 0, single buffered']
    %8 = vsyncpa [#allocation3], 0
    %9 = vsyncpa [#allocation6], 0
    %10 = vsyncpa [#allocation4], 0
    // Predicated region
    $region2: #{tpu_custom_call.1} parent=1 // pred_check
      _
    $region3: #{tpu_custom_call.1} parent=1 // pred_check_branch
      %12 = sbr.rel (0) target = $region5
    $region4: #{tpu_custom_call.1} parent=1 // pred_region
      %s14 = ssub.s32 128, 128
      %15 = vsyncadd [#allocation3], %s14
      %s17 = sshll.u32 [#allocation2], 4
      %s18 = int_to_ptr.vmem [resolvable:$true] %s17
      %20 = dma.hbm_to_vmem [thread:$0]  %s0, 128, %s18, [#allocation3]
    $region5: #{tpu_custom_call.1} parent=1 // pred_fallthru
      _
    // Predicated region
    $region6: #{tpu_custom_call.1} parent=1 // pred_check
      _
    $region7: #{tpu_custom_call.1} parent=1 // pred_check_branch
      %22 = sbr.rel (0) target = $region9
    $region8: #{tpu_custom_call.1} parent=1 // pred_region
      %s24 = ssub.s32 1024, 1024
      %25 = vsyncadd [#allocation6], %s24
      %s26 = sshll.u32 [#allocation5], 4
      %s27 = int_to_ptr.vmem [resolvable:$true] %s26
      %32 = dma.hbm_to_vmem [thread:$0]  %s1, 1024, %s27, [#allocation6], 128, 128, 8
    $region9: #{tpu_custom_call.1} parent=1 // pred_fallthru
      _
    // Predicated region
    $region10: #{tpu_custom_call.1} parent=1 // pred_check
      _
    $region11: #{tpu_custom_call.1} parent=1 // pred_check_branch
      %34 = sbr.rel (0) target = $region13
    $region12: #{tpu_custom_call.1} parent=1 // pred_region
      _
    $region13: #{tpu_custom_call.1} parent=1 // pred_fallthru
      _
    // Predicated region
    $region14: #{tpu_custom_call.1} parent=1 // pred_check
      _
    $region15: #{tpu_custom_call.1} parent=1 // pred_check_branch
      %36 = sbr.rel (0) target = $region17
    $region16: #{tpu_custom_call.1} parent=1 // pred_region
      %37 = dma.done [#allocation3], 128
    $region17: #{tpu_custom_call.1} parent=1 // pred_fallthru
      _
    // Predicated region
    $region18: #{tpu_custom_call.1} parent=1 // pred_check
      _
    $region19: #{tpu_custom_call.1} parent=1 // pred_check_branch
      %39 = sbr.rel (0) target = $region21
    $region20: #{tpu_custom_call.1} parent=1 // pred_region
      %40 = dma.done [#allocation6], 1024
    $region21: #{tpu_custom_call.1} parent=1 // pred_fallthru
      _
    %p41 = scmp.eq.s32.totalorder 0, 0
    // Predicated region
    $region22: #{tpu_custom_call.1} parent=1 // pred_check
      %p42 = pneg %p41
    $region23: #{tpu_custom_call.1} parent=1 // pred_check_branch
      %44 = sbr.rel (%p42) target = $region25
    $region24: #{tpu_custom_call.1} parent=1 // pred_region
      %45 = vst [vmem:[#allocation7] sm:$0xff] 0.0
    $region25: #{tpu_custom_call.1} parent=1 // pred_fallthru
      _
    %v46 = vld [vmem:[%s2] sm:$0x1]
    %v47 = vsub.f32 0.0, %v46
    %v48 = vmul.f32 %v47, 1.442695
    %v49 = vpow.pop %v48
    %v50 = vadd.f32 %v49, 1.0
    %v51 = vmul.f32 %v50, 0.70710677
    %v52 = vld [vmem:[#allocation2] sm:$0xff]
    %v54 = vlaneseq
    %v55 = vshrl.u32 %v54, 7
    %v56 = vsub.s32 0, %v55
    %v57 = vrot.slane %v51, %v56
    %v59 = vmul.f32 %v52, %v57
    %v60 = vld [vmem:[#allocation5] sm:$0xff]
    %v61 = vld [vmem:[#allocation5 + $0x8] sm:$0xff]
    %v62 = vld [vmem:[#allocation5 + $0x10] sm:$0xff]
    %v63 = vld [vmem:[#allocation5 + $0x18] sm:$0xff]
    %v64 = vld [vmem:[#allocation5 + $0x20] sm:$0xff]
    %v65 = vld [vmem:[#allocation5 + $0x28] sm:$0xff]
    %v66 = vld [vmem:[#allocation5 + $0x30] sm:$0xff]
    %v67 = vld [vmem:[#allocation5 + $0x38] sm:$0xff]
    %v68 = vmul.f32 %v60, %v57
    %v69 = vmul.f32 %v61, %v57
    %v70 = vmul.f32 %v62, %v57
    %v71 = vmul.f32 %v63, %v57
    %v72 = vmul.f32 %v64, %v57
    %v73 = vmul.f32 %v65, %v57
    %v74 = vmul.f32 %v66, %v57
    %v75 = vmul.f32 %v67, %v57
    %v76 = vlaneseq
    %v77 = vshrl.u32 %v76, 7
    %v78 = vsub.s32 0, %v77
    %v79 = vrot.slane %v68, %v78
    %v80 = vsub.f32 %v59, %v79
    %v81 = vand.u32 2147483647, %v80
    %v82 = vmul.f32 %v81, 0.3275911
    %v83 = vadd.f32 %v82, 1.0
    %v84 = vrcp.pop %v83
    %v85 = vmul.f32 %v83, %v84
    %v86 = vsub.f32 2.0, %v85
    %v87 = vmul.f32 %v84, %v86
    %v88 = vmul.f32 %v87, 0.5307027
    %v89 = vadd.f32 %v88, -0.72657603
    %v90 = vmul.f32 %v89, %v87
    %v91 = vadd.f32 %v90, 0.7107069
    %v92 = vmul.f32 %v91, %v87
    %v93 = vadd.f32 %v92, -0.14224836
    %v94 = vmul.f32 %v93, %v87
    %v95 = vadd.f32 %v94, 0.1274148
    %v96 = vmul.f32 %v95, %v87
    %v97 = vmul.f32 %v80, %v80
    %v98 = vsub.f32 0.0, %v97
    %v99 = vmul.f32 %v98, 1.442695
    %v100 = vpow.pop %v99
    %v101 = vmul.f32 %v96, %v100
    %vm102 = vcmp.ge.f32.partialorder %v80, 0.0
    %v103 = vsub.f32 1.0, %v101
    %v104 = vsel %vm102, %v103, %v101
    %v105 = vadd.f32 %v104, 0.0
    %v106 = vlaneseq
    %v107 = vshrl.u32 %v106, 7
    %v108 = vsub.s32 1, %v107
    %v109 = vrot.slane %v68, %v108
    %v110 = vsub.f32 %v59, %v109
    %v111 = vand.u32 2147483647, %v110
    %v112 = vmul.f32 %v111, 0.3275911
    %v113 = vadd.f32 %v112, 1.0
    %v114 = vrcp.pop %v113
    %v115 = vmul.f32 %v113, %v114
    %v116 = vsub.f32 2.0, %v115
    %v117 = vmul.f32 %v114, %v116
    %v118 = vmul.f32 %v117, 0.5307027
    %v119 = vadd.f32 %v118, -0.72657603
    %v120 = vmul.f32 %v119, %v117
    %v121 = vadd.f32 %v120, 0.7107069
    %v122 = vmul.f32 %v121, %v117
    %v123 = vadd.f32 %v122, -0.14224836
    %v124 = vmul.f32 %v123, %v117
    %v125 = vadd.f32 %v124, 0.1274148
    %v126 = vmul.f32 %v125, %v117
    %v127 = vmul.f32 %v110, %v110
    %v128 = vsub.f32 0.0, %v127
    %v129 = vmul.f32 %v128, 1.442695
    %v130 = vpow.pop %v129
    %v131 = vmul.f32 %v126, %v130
    %vm132 = vcmp.ge.f32.partialorder %v110, 0.0
    %v133 = vsub.f32 1.0, %v131
    %v134 = vsel %vm132, %v133, %v131
    %v135 = vadd.f32 %v105, %v134
    %v136 = vlaneseq
    %v137 = vshrl.u32 %v136, 7
    %v138 = vsub.s32 2, %v137
    %v139 = vrot.slane %v68, %v138
    %v140 = vsub.f32 %v59, %v139
    %v141 = vand.u32 2147483647, %v140
    %v142 = vmul.f32 %v141, 0.3275911
    %v143 = vadd.f32 %v142, 1.0
    %v144 = vrcp.pop %v143
    %v145 = vmul.f32 %v143, %v144
    %v146 = vsub.f32 2.0, %v145
    %v147 = vmul.f32 %v144, %v146
    %v148 = vmul.f32 %v147, 0.5307027
    %v149 = vadd.f32 %v148, -0.72657603
    %v150 = vmul.f32 %v149, %v147
    %v151 = vadd.f32 %v150, 0.7107069
    %v152 = vmul.f32 %v151, %v147
    %v153 = vadd.f32 %v152, -0.14224836
    %v154 = vmul.f32 %v153, %v147
    %v155 = vadd.f32 %v154, 0.1274148
    %v156 = vmul.f32 %v155, %v147
    %v157 = vmul.f32 %v140, %v140
    %v158 = vsub.f32 0.0, %v157
    %v159 = vmul.f32 %v158, 1.442695
    %v160 = vpow.pop %v159
    %v161 = vmul.f32 %v156, %v160
    %vm162 = vcmp.ge.f32.partialorder %v140, 0.0
    %v163 = vsub.f32 1.0, %v161
    %v164 = vsel %vm162, %v163, %v161
    %v165 = vadd.f32 %v135, %v164
    %v166 = vlaneseq
    %v167 = vshrl.u32 %v166, 7
    %v168 = vsub.s32 3, %v167
    %v169 = vrot.slane %v68, %v168
    %v170 = vsub.f32 %v59, %v169
    %v171 = vand.u32 2147483647, %v170
    %v172 = vmul.f32 %v171, 0.3275911
    %v173 = vadd.f32 %v172, 1.0
    %v174 = vrcp.pop %v173
    %v175 = vmul.f32 %v173, %v174
    %v176 = vsub.f32 2.0, %v175
    %v177 = vmul.f32 %v174, %v176
    %v178 = vmul.f32 %v177, 0.5307027
    %v179 = vadd.f32 %v178, -0.72657603
    %v180 = vmul.f32 %v179, %v177
    %v181 = vadd.f32 %v180, 0.7107069
    %v182 = vmul.f32 %v181, %v177
    %v183 = vadd.f32 %v182, -0.14224836
    %v184 = vmul.f32 %v183, %v177
    %v185 = vadd.f32 %v184, 0.1274148
    %v186 = vmul.f32 %v185, %v177
    %v187 = vmul.f32 %v170, %v170
    %v188 = vsub.f32 0.0, %v187
    %v189 = vmul.f32 %v188, 1.442695
    %v190 = vpow.pop %v189
    %v191 = vmul.f32 %v186, %v190
    %vm192 = vcmp.ge.f32.partialorder %v170, 0.0
    %v193 = vsub.f32 1.0, %v191
    %v194 = vsel %vm192, %v193, %v191
    %v195 = vadd.f32 %v165, %v194
    %v196 = vlaneseq
    %v197 = vshrl.u32 %v196, 7
    %v198 = vsub.s32 4, %v197
    %v199 = vrot.slane %v68, %v198
    %v200 = vsub.f32 %v59, %v199
    %v201 = vand.u32 2147483647, %v200
    %v202 = vmul.f32 %v201, 0.3275911
    %v203 = vadd.f32 %v202, 1.0
    %v204 = vrcp.pop %v203
    %v205 = vmul.f32 %v203, %v204
    %v206 = vsub.f32 2.0, %v205
    %v207 = vmul.f32 %v204, %v206
    %v208 = vmul.f32 %v207, 0.5307027
    %v209 = vadd.f32 %v208, -0.72657603
    %v210 = vmul.f32 %v209, %v207
    %v211 = vadd.f32 %v210, 0.7107069
    %v212 = vmul.f32 %v211, %v207
    %v213 = vadd.f32 %v212, -0.14224836
    %v214 = vmul.f32 %v213, %v207
    %v215 = vadd.f32 %v214, 0.1274148
    %v216 = vmul.f32 %v215, %v207
    %v217 = vmul.f32 %v200, %v200
    %v218 = vsub.f32 0.0, %v217
    %v219 = vmul.f32 %v218, 1.442695
    %v220 = vpow.pop %v219
    %v221 = vmul.f32 %v216, %v220
    %vm222 = vcmp.ge.f32.partialorder %v200, 0.0
    %v223 = vsub.f32 1.0, %v221
    %v224 = vsel %vm222, %v223, %v221
    %v225 = vadd.f32 %v195, %v224
    %v226 = vlaneseq
    %v227 = vshrl.u32 %v226, 7
    %v228 = vsub.s32 5, %v227
    %v229 = vrot.slane %v68, %v228
    %v230 = vsub.f32 %v59, %v229
    %v231 = vand.u32 2147483647, %v230
    %v232 = vmul.f32 %v231, 0.3275911
    %v233 = vadd.f32 %v232, 1.0
    %v234 = vrcp.pop %v233
    %v235 = vmul.f32 %v233, %v234
    %v236 = vsub.f32 2.0, %v235
    %v237 = vmul.f32 %v234, %v236
    %v238 = vmul.f32 %v237, 0.5307027
    %v239 = vadd.f32 %v238, -0.72657603
    %v240 = vmul.f32 %v239, %v237
    %v241 = vadd.f32 %v240, 0.7107069
    %v242 = vmul.f32 %v241, %v237
    %v243 = vadd.f32 %v242, -0.14224836
    %v244 = vmul.f32 %v243, %v237
    %v245 = vadd.f32 %v244, 0.1274148
    %v246 = vmul.f32 %v245, %v237
    %v247 = vmul.f32 %v230, %v230
    %v248 = vsub.f32 0.0, %v247
    %v249 = vmul.f32 %v248, 1.442695
    %v250 = vpow.pop %v249
    %v251 = vmul.f32 %v246, %v250
    %vm252 = vcmp.ge.f32.partialorder %v230, 0.0
    %v253 = vsub.f32 1.0, %v251
    %v254 = vsel %vm252, %v253, %v251
    %v255 = vadd.f32 %v225, %v254
    %v256 = vlaneseq
    %v257 = vshrl.u32 %v256, 7
    %v258 = vsub.s32 6, %v257
    %v259 = vrot.slane %v68, %v258
    %v260 = vsub.f32 %v59, %v259
    %v261 = vand.u32 2147483647, %v260
    %v262 = vmul.f32 %v261, 0.3275911
    %v263 = vadd.f32 %v262, 1.0
    %v264 = vrcp.pop %v263
    %v265 = vmul.f32 %v263, %v264
    %v266 = vsub.f32 2.0, %v265
    %v267 = vmul.f32 %v264, %v266
    %v268 = vmul.f32 %v267, 0.5307027
    %v269 = vadd.f32 %v268, -0.72657603
    %v270 = vmul.f32 %v269, %v267
    %v271 = vadd.f32 %v270, 0.7107069
    %v272 = vmul.f32 %v271, %v267
    %v273 = vadd.f32 %v272, -0.14224836
    %v274 = vmul.f32 %v273, %v267
    %v275 = vadd.f32 %v274, 0.1274148
    %v276 = vmul.f32 %v275, %v267
    %v277 = vmul.f32 %v260, %v260
    %v278 = vsub.f32 0.0, %v277
    %v279 = vmul.f32 %v278, 1.442695
    %v280 = vpow.pop %v279
    %v281 = vmul.f32 %v276, %v280
    %vm282 = vcmp.ge.f32.partialorder %v260, 0.0
    %v283 = vsub.f32 1.0, %v281
    %v284 = vsel %vm282, %v283, %v281
    %v285 = vadd.f32 %v255, %v284
    %v286 = vlaneseq
    %v287 = vshrl.u32 %v286, 7
    %v288 = vsub.s32 7, %v287
    %v289 = vrot.slane %v68, %v288
    %v290 = vsub.f32 %v59, %v289
    %v291 = vand.u32 2147483647, %v290
    %v292 = vmul.f32 %v291, 0.3275911
    %v293 = vadd.f32 %v292, 1.0
    %v294 = vrcp.pop %v293
    %v295 = vmul.f32 %v293, %v294
    %v296 = vsub.f32 2.0, %v295
    %v297 = vmul.f32 %v294, %v296
    %v298 = vmul.f32 %v297, 0.5307027
    %v299 = vadd.f32 %v298, -0.72657603
    %v300 = vmul.f32 %v299, %v297
    %v301 = vadd.f32 %v300, 0.7107069
    %v302 = vmul.f32 %v301, %v297
    %v303 = vadd.f32 %v302, -0.14224836
    %v304 = vmul.f32 %v303, %v297
    %v305 = vadd.f32 %v304, 0.1274148
    %v306 = vmul.f32 %v305, %v297
    %v307 = vmul.f32 %v290, %v290
    %v308 = vsub.f32 0.0, %v307
    %v309 = vmul.f32 %v308, 1.442695
    %v310 = vpow.pop %v309
    %v311 = vmul.f32 %v306, %v310
    %vm312 = vcmp.ge.f32.partialorder %v290, 0.0
    %v313 = vsub.f32 1.0, %v311
    %v314 = vsel %vm312, %v313, %v311
    %v315 = vadd.f32 %v285, %v314
    %v316 = vlaneseq
    %v317 = vshrl.u32 %v316, 7
    %v318 = vsub.s32 0, %v317
    %v319 = vrot.slane %v69, %v318
    %v320 = vsub.f32 %v59, %v319
    %v321 = vand.u32 2147483647, %v320
    %v322 = vmul.f32 %v321, 0.3275911
    %v323 = vadd.f32 %v322, 1.0
    %v324 = vrcp.pop %v323
    %v325 = vmul.f32 %v323, %v324
    %v326 = vsub.f32 2.0, %v325
    %v327 = vmul.f32 %v324, %v326
    %v328 = vmul.f32 %v327, 0.5307027
    %v329 = vadd.f32 %v328, -0.72657603
    %v330 = vmul.f32 %v329, %v327
    %v331 = vadd.f32 %v330, 0.7107069
    %v332 = vmul.f32 %v331, %v327
    %v333 = vadd.f32 %v332, -0.14224836
    %v334 = vmul.f32 %v333, %v327
    %v335 = vadd.f32 %v334, 0.1274148
    %v336 = vmul.f32 %v335, %v327
    %v337 = vmul.f32 %v320, %v320
    %v338 = vsub.f32 0.0, %v337
    %v339 = vmul.f32 %v338, 1.442695
    %v340 = vpow.pop %v339
    %v341 = vmul.f32 %v336, %v340
    %vm342 = vcmp.ge.f32.partialorder %v320, 0.0
    %v343 = vsub.f32 1.0, %v341
    %v344 = vsel %vm342, %v343, %v341
    %v345 = vadd.f32 %v315, %v344
    %v346 = vlaneseq
    %v347 = vshrl.u32 %v346, 7
    %v348 = vsub.s32 1, %v347
    %v349 = vrot.slane %v69, %v348
    %v350 = vsub.f32 %v59, %v349
    %v351 = vand.u32 2147483647, %v350
    %v352 = vmul.f32 %v351, 0.3275911
    %v353 = vadd.f32 %v352, 1.0
    %v354 = vrcp.pop %v353
    %v355 = vmul.f32 %v353, %v354
    %v356 = vsub.f32 2.0, %v355
    %v357 = vmul.f32 %v354, %v356
    %v358 = vmul.f32 %v357, 0.5307027
    %v359 = vadd.f32 %v358, -0.72657603
    %v360 = vmul.f32 %v359, %v357
    %v361 = vadd.f32 %v360, 0.7107069
    %v362 = vmul.f32 %v361, %v357
    %v363 = vadd.f32 %v362, -0.14224836
    %v364 = vmul.f32 %v363, %v357
    %v365 = vadd.f32 %v364, 0.1274148
    %v366 = vmul.f32 %v365, %v357
    %v367 = vmul.f32 %v350, %v350
    %v368 = vsub.f32 0.0, %v367
    %v369 = vmul.f32 %v368, 1.442695
    %v370 = vpow.pop %v369
    %v371 = vmul.f32 %v366, %v370
    %vm372 = vcmp.ge.f32.partialorder %v350, 0.0
    %v373 = vsub.f32 1.0, %v371
    %v374 = vsel %vm372, %v373, %v371
    %v375 = vadd.f32 %v345, %v374
    %v376 = vlaneseq
    %v377 = vshrl.u32 %v376, 7
    %v378 = vsub.s32 2, %v377
    %v379 = vrot.slane %v69, %v378
    %v380 = vsub.f32 %v59, %v379
    %v381 = vand.u32 2147483647, %v380
    %v382 = vmul.f32 %v381, 0.3275911
    %v383 = vadd.f32 %v382, 1.0
    %v384 = vrcp.pop %v383
    %v385 = vmul.f32 %v383, %v384
    %v386 = vsub.f32 2.0, %v385
    %v387 = vmul.f32 %v384, %v386
    %v388 = vmul.f32 %v387, 0.5307027
    %v389 = vadd.f32 %v388, -0.72657603
    %v390 = vmul.f32 %v389, %v387
    %v391 = vadd.f32 %v390, 0.7107069
    %v392 = vmul.f32 %v391, %v387
    %v393 = vadd.f32 %v392, -0.14224836
    %v394 = vmul.f32 %v393, %v387
    %v395 = vadd.f32 %v394, 0.1274148
    %v396 = vmul.f32 %v395, %v387
    %v397 = vmul.f32 %v380, %v380
    %v398 = vsub.f32 0.0, %v397
    %v399 = vmul.f32 %v398, 1.442695
    %v400 = vpow.pop %v399
    %v401 = vmul.f32 %v396, %v400
    %vm402 = vcmp.ge.f32.partialorder %v380, 0.0
    %v403 = vsub.f32 1.0, %v401
    %v404 = vsel %vm402, %v403, %v401
    %v405 = vadd.f32 %v375, %v404
    %v406 = vlaneseq
    %v407 = vshrl.u32 %v406, 7
    %v408 = vsub.s32 3, %v407
    %v409 = vrot.slane %v69, %v408
    %v410 = vsub.f32 %v59, %v409
    %v411 = vand.u32 2147483647, %v410
    %v412 = vmul.f32 %v411, 0.3275911
    %v413 = vadd.f32 %v412, 1.0
    %v414 = vrcp.pop %v413
    %v415 = vmul.f32 %v413, %v414
    %v416 = vsub.f32 2.0, %v415
    %v417 = vmul.f32 %v414, %v416
    %v418 = vmul.f32 %v417, 0.5307027
    %v419 = vadd.f32 %v418, -0.72657603
    %v420 = vmul.f32 %v419, %v417
    %v421 = vadd.f32 %v420, 0.7107069
    %v422 = vmul.f32 %v421, %v417
    %v423 = vadd.f32 %v422, -0.14224836
    %v424 = vmul.f32 %v423, %v417
    %v425 = vadd.f32 %v424, 0.1274148
    %v426 = vmul.f32 %v425, %v417
    %v427 = vmul.f32 %v410, %v410
    %v428 = vsub.f32 0.0, %v427
    %v429 = vmul.f32 %v428, 1.442695
    %v430 = vpow.pop %v429
    %v431 = vmul.f32 %v426, %v430
    %vm432 = vcmp.ge.f32.partialorder %v410, 0.0
    %v433 = vsub.f32 1.0, %v431
    %v434 = vsel %vm432, %v433, %v431
    %v435 = vadd.f32 %v405, %v434
    %v436 = vlaneseq
    %v437 = vshrl.u32 %v436, 7
    %v438 = vsub.s32 4, %v437
    %v439 = vrot.slane %v69, %v438
    %v440 = vsub.f32 %v59, %v439
    %v441 = vand.u32 2147483647, %v440
    %v442 = vmul.f32 %v441, 0.3275911
    %v443 = vadd.f32 %v442, 1.0
    %v444 = vrcp.pop %v443
    %v445 = vmul.f32 %v443, %v444
    %v446 = vsub.f32 2.0, %v445
    %v447 = vmul.f32 %v444, %v446
    %v448 = vmul.f32 %v447, 0.5307027
    %v449 = vadd.f32 %v448, -0.72657603
    %v450 = vmul.f32 %v449, %v447
    %v451 = vadd.f32 %v450, 0.7107069
    %v452 = vmul.f32 %v451, %v447
    %v453 = vadd.f32 %v452, -0.14224836
    %v454 = vmul.f32 %v453, %v447
    %v455 = vadd.f32 %v454, 0.1274148
    %v456 = vmul.f32 %v455, %v447
    %v457 = vmul.f32 %v440, %v440
    %v458 = vsub.f32 0.0, %v457
    %v459 = vmul.f32 %v458, 1.442695
    %v460 = vpow.pop %v459
    %v461 = vmul.f32 %v456, %v460
    %vm462 = vcmp.ge.f32.partialorder %v440, 0.0
    %v463 = vsub.f32 1.0, %v461
    %v464 = vsel %vm462, %v463, %v461
    %v465 = vadd.f32 %v435, %v464
    %v466 = vlaneseq
    %v467 = vshrl.u32 %v466, 7
    %v468 = vsub.s32 5, %v467
    %v469 = vrot.slane %v69, %v468
    %v470 = vsub.f32 %v59, %v469
    %v471 = vand.u32 2147483647, %v470
    %v472 = vmul.f32 %v471, 0.3275911
    %v473 = vadd.f32 %v472, 1.0
    %v474 = vrcp.pop %v473
    %v475 = vmul.f32 %v473, %v474
    %v476 = vsub.f32 2.0, %v475
    %v477 = vmul.f32 %v474, %v476
    %v478 = vmul.f32 %v477, 0.5307027
    %v479 = vadd.f32 %v478, -0.72657603
    %v480 = vmul.f32 %v479, %v477
    %v481 = vadd.f32 %v480, 0.7107069
    %v482 = vmul.f32 %v481, %v477
    %v483 = vadd.f32 %v482, -0.14224836
    %v484 = vmul.f32 %v483, %v477
    %v485 = vadd.f32 %v484, 0.1274148
    %v486 = vmul.f32 %v485, %v477
    %v487 = vmul.f32 %v470, %v470
    %v488 = vsub.f32 0.0, %v487
    %v489 = vmul.f32 %v488, 1.442695
    %v490 = vpow.pop %v489
    %v491 = vmul.f32 %v486, %v490
    %vm492 = vcmp.ge.f32.partialorder %v470, 0.0
    %v493 = vsub.f32 1.0, %v491
    %v494 = vsel %vm492, %v493, %v491
    %v495 = vadd.f32 %v465, %v494
    %v496 = vlaneseq
    %v497 = vshrl.u32 %v496, 7
    %v498 = vsub.s32 6, %v497
    %v499 = vrot.slane %v69, %v498
    %v500 = vsub.f32 %v59, %v499
    %v501 = vand.u32 2147483647, %v500
    %v502 = vmul.f32 %v501, 0.3275911
    %v503 = vadd.f32 %v502, 1.0
    %v504 = vrcp.pop %v503
    %v505 = vmul.f32 %v503, %v504
    %v506 = vsub.f32 2.0, %v505
    %v507 = vmul.f32 %v504, %v506
    %v508 = vmul.f32 %v507, 0.5307027
    %v509 = vadd.f32 %v508, -0.72657603
    %v510 = vmul.f32 %v509, %v507
    %v511 = vadd.f32 %v510, 0.7107069
    %v512 = vmul.f32 %v511, %v507
    %v513 = vadd.f32 %v512, -0.14224836
    %v514 = vmul.f32 %v513, %v507
    %v515 = vadd.f32 %v514, 0.1274148
    %v516 = vmul.f32 %v515, %v507
    %v517 = vmul.f32 %v500, %v500
    %v518 = vsub.f32 0.0, %v517
    %v519 = vmul.f32 %v518, 1.442695
    %v520 = vpow.pop %v519
    %v521 = vmul.f32 %v516, %v520
    %vm522 = vcmp.ge.f32.partialorder %v500, 0.0
    %v523 = vsub.f32 1.0, %v521
    %v524 = vsel %vm522, %v523, %v521
    %v525 = vadd.f32 %v495, %v524
    %v526 = vlaneseq
    %v527 = vshrl.u32 %v526, 7
    %v528 = vsub.s32 7, %v527
    %v529 = vrot.slane %v69, %v528
    %v530 = vsub.f32 %v59, %v529
    %v531 = vand.u32 2147483647, %v530
    %v532 = vmul.f32 %v531, 0.3275911
    %v533 = vadd.f32 %v532, 1.0
    %v534 = vrcp.pop %v533
    %v535 = vmul.f32 %v533, %v534
    %v536 = vsub.f32 2.0, %v535
    %v537 = vmul.f32 %v534, %v536
    %v538 = vmul.f32 %v537, 0.5307027
    %v539 = vadd.f32 %v538, -0.72657603
    %v540 = vmul.f32 %v539, %v537
    %v541 = vadd.f32 %v540, 0.7107069
    %v542 = vmul.f32 %v541, %v537
    %v543 = vadd.f32 %v542, -0.14224836
    %v544 = vmul.f32 %v543, %v537
    %v545 = vadd.f32 %v544, 0.1274148
    %v546 = vmul.f32 %v545, %v537
    %v547 = vmul.f32 %v530, %v530
    %v548 = vsub.f32 0.0, %v547
    %v549 = vmul.f32 %v548, 1.442695
    %v550 = vpow.pop %v549
    %v551 = vmul.f32 %v546, %v550
    %vm552 = vcmp.ge.f32.partialorder %v530, 0.0
    %v553 = vsub.f32 1.0, %v551
    %v554 = vsel %vm552, %v553, %v551
    %v555 = vadd.f32 %v525, %v554
    %v556 = vlaneseq
    %v557 = vshrl.u32 %v556, 7
    %v558 = vsub.s32 0, %v557
    %v559 = vrot.slane %v70, %v558
    %v560 = vsub.f32 %v59, %v559
    %v561 = vand.u32 2147483647, %v560
    %v562 = vmul.f32 %v561, 0.3275911
    %v563 = vadd.f32 %v562, 1.0
    %v564 = vrcp.pop %v563
    %v565 = vmul.f32 %v563, %v564
    %v566 = vsub.f32 2.0, %v565
    %v567 = vmul.f32 %v564, %v566
    %v568 = vmul.f32 %v567, 0.5307027
    %v569 = vadd.f32 %v568, -0.72657603
    %v570 = vmul.f32 %v569, %v567
    %v571 = vadd.f32 %v570, 0.7107069
    %v572 = vmul.f32 %v571, %v567
    %v573 = vadd.f32 %v572, -0.14224836
    %v574 = vmul.f32 %v573, %v567
    %v575 = vadd.f32 %v574, 0.1274148
    %v576 = vmul.f32 %v575, %v567
    %v577 = vmul.f32 %v560, %v560
    %v578 = vsub.f32 0.0, %v577
    %v579 = vmul.f32 %v578, 1.442695
    %v580 = vpow.pop %v579
    %v581 = vmul.f32 %v576, %v580
    %vm582 = vcmp.ge.f32.partialorder %v560, 0.0
    %v583 = vsub.f32 1.0, %v581
    %v584 = vsel %vm582, %v583, %v581
    %v585 = vadd.f32 %v555, %v584
    %v586 = vlaneseq
    %v587 = vshrl.u32 %v586, 7
    %v588 = vsub.s32 1, %v587
    %v589 = vrot.slane %v70, %v588
    %v590 = vsub.f32 %v59, %v589
    %v591 = vand.u32 2147483647, %v590
    %v592 = vmul.f32 %v591, 0.3275911
    %v593 = vadd.f32 %v592, 1.0
    %v594 = vrcp.pop %v593
    %v595 = vmul.f32 %v593, %v594
    %v596 = vsub.f32 2.0, %v595
    %v597 = vmul.f32 %v594, %v596
    %v598 = vmul.f32 %v597, 0.5307027
    %v599 = vadd.f32 %v598, -0.72657603
    %v600 = vmul.f32 %v599, %v597
    %v601 = vadd.f32 %v600, 0.7107069
    %v602 = vmul.f32 %v601, %v597
    %v603 = vadd.f32 %v602, -0.14224836
    %v604 = vmul.f32 %v603, %v597
    %v605 = vadd.f32 %v604, 0.1274148
    %v606 = vmul.f32 %v605, %v597
    %v607 = vmul.f32 %v590, %v590
    %v608 = vsub.f32 0.0, %v607
    %v609 = vmul.f32 %v608, 1.442695
    %v610 = vpow.pop %v609
    %v611 = vmul.f32 %v606, %v610
    %vm612 = vcmp.ge.f32.partialorder %v590, 0.0
    %v613 = vsub.f32 1.0, %v611
    %v614 = vsel %vm612, %v613, %v611
    %v615 = vadd.f32 %v585, %v614
    %v616 = vlaneseq
    %v617 = vshrl.u32 %v616, 7
    %v618 = vsub.s32 2, %v617
    %v619 = vrot.slane %v70, %v618
    %v620 = vsub.f32 %v59, %v619
    %v621 = vand.u32 2147483647, %v620
    %v622 = vmul.f32 %v621, 0.3275911
    %v623 = vadd.f32 %v622, 1.0
    %v624 = vrcp.pop %v623
    %v625 = vmul.f32 %v623, %v624
    %v626 = vsub.f32 2.0, %v625
    %v627 = vmul.f32 %v624, %v626
    %v628 = vmul.f32 %v627, 0.5307027
    %v629 = vadd.f32 %v628, -0.72657603
    %v630 = vmul.f32 %v629, %v627
    %v631 = vadd.f32 %v630, 0.7107069
    %v632 = vmul.f32 %v631, %v627
    %v633 = vadd.f32 %v632, -0.14224836
    %v634 = vmul.f32 %v633, %v627
    %v635 = vadd.f32 %v634, 0.1274148
    %v636 = vmul.f32 %v635, %v627
    %v637 = vmul.f32 %v620, %v620
    %v638 = vsub.f32 0.0, %v637
    %v639 = vmul.f32 %v638, 1.442695
    %v640 = vpow.pop %v639
    %v641 = vmul.f32 %v636, %v640
    %vm642 = vcmp.ge.f32.partialorder %v620, 0.0
    %v643 = vsub.f32 1.0, %v641
    %v644 = vsel %vm642, %v643, %v641
    %v645 = vadd.f32 %v615, %v644
    %v646 = vlaneseq
    %v647 = vshrl.u32 %v646, 7
    %v648 = vsub.s32 3, %v647
    %v649 = vrot.slane %v70, %v648
    %v650 = vsub.f32 %v59, %v649
    %v651 = vand.u32 2147483647, %v650
    %v652 = vmul.f32 %v651, 0.3275911
    %v653 = vadd.f32 %v652, 1.0
    %v654 = vrcp.pop %v653
    %v655 = vmul.f32 %v653, %v654
    %v656 = vsub.f32 2.0, %v655
    %v657 = vmul.f32 %v654, %v656
    %v658 = vmul.f32 %v657, 0.5307027
    %v659 = vadd.f32 %v658, -0.72657603
    %v660 = vmul.f32 %v659, %v657
    %v661 = vadd.f32 %v660, 0.7107069
    %v662 = vmul.f32 %v661, %v657
    %v663 = vadd.f32 %v662, -0.14224836
    %v664 = vmul.f32 %v663, %v657
    %v665 = vadd.f32 %v664, 0.1274148
    %v666 = vmul.f32 %v665, %v657
    %v667 = vmul.f32 %v650, %v650
    %v668 = vsub.f32 0.0, %v667
    %v669 = vmul.f32 %v668, 1.442695
    %v670 = vpow.pop %v669
    %v671 = vmul.f32 %v666, %v670
    %vm672 = vcmp.ge.f32.partialorder %v650, 0.0
    %v673 = vsub.f32 1.0, %v671
    %v674 = vsel %vm672, %v673, %v671
    %v675 = vadd.f32 %v645, %v674
    %v676 = vlaneseq
    %v677 = vshrl.u32 %v676, 7
    %v678 = vsub.s32 4, %v677
    %v679 = vrot.slane %v70, %v678
    %v680 = vsub.f32 %v59, %v679
    %v681 = vand.u32 2147483647, %v680
    %v682 = vmul.f32 %v681, 0.3275911
    %v683 = vadd.f32 %v682, 1.0
    %v684 = vrcp.pop %v683
    %v685 = vmul.f32 %v683, %v684
    %v686 = vsub.f32 2.0, %v685
    %v687 = vmul.f32 %v684, %v686
    %v688 = vmul.f32 %v687, 0.5307027
    %v689 = vadd.f32 %v688, -0.72657603
    %v690 = vmul.f32 %v689, %v687
    %v691 = vadd.f32 %v690, 0.7107069
    %v692 = vmul.f32 %v691, %v687
    %v693 = vadd.f32 %v692, -0.14224836
    %v694 = vmul.f32 %v693, %v687
    %v695 = vadd.f32 %v694, 0.1274148
    %v696 = vmul.f32 %v695, %v687
    %v697 = vmul.f32 %v680, %v680
    %v698 = vsub.f32 0.0, %v697
    %v699 = vmul.f32 %v698, 1.442695
    %v700 = vpow.pop %v699
    %v701 = vmul.f32 %v696, %v700
    %vm702 = vcmp.ge.f32.partialorder %v680, 0.0
    %v703 = vsub.f32 1.0, %v701
    %v704 = vsel %vm702, %v703, %v701
    %v705 = vadd.f32 %v675, %v704
    %v706 = vlaneseq
    %v707 = vshrl.u32 %v706, 7
    %v708 = vsub.s32 5, %v707
    %v709 = vrot.slane %v70, %v708
    %v710 = vsub.f32 %v59, %v709
    %v711 = vand.u32 2147483647, %v710
    %v712 = vmul.f32 %v711, 0.3275911
    %v713 = vadd.f32 %v712, 1.0
    %v714 = vrcp.pop %v713
    %v715 = vmul.f32 %v713, %v714
    %v716 = vsub.f32 2.0, %v715
    %v717 = vmul.f32 %v714, %v716
    %v718 = vmul.f32 %v717, 0.5307027
    %v719 = vadd.f32 %v718, -0.72657603
    %v720 = vmul.f32 %v719, %v717
    %v721 = vadd.f32 %v720, 0.7107069
    %v722 = vmul.f32 %v721, %v717
    %v723 = vadd.f32 %v722, -0.14224836
    %v724 = vmul.f32 %v723, %v717
    %v725 = vadd.f32 %v724, 0.1274148
    %v726 = vmul.f32 %v725, %v717
    %v727 = vmul.f32 %v710, %v710
    %v728 = vsub.f32 0.0, %v727
    %v729 = vmul.f32 %v728, 1.442695
    %v730 = vpow.pop %v729
    %v731 = vmul.f32 %v726, %v730
    %vm732 = vcmp.ge.f32.partialorder %v710, 0.0
    %v733 = vsub.f32 1.0, %v731
    %v734 = vsel %vm732, %v733, %v731
    %v735 = vadd.f32 %v705, %v734
    %v736 = vlaneseq
    %v737 = vshrl.u32 %v736, 7
    %v738 = vsub.s32 6, %v737
    %v739 = vrot.slane %v70, %v738
    %v740 = vsub.f32 %v59, %v739
    %v741 = vand.u32 2147483647, %v740
    %v742 = vmul.f32 %v741, 0.3275911
    %v743 = vadd.f32 %v742, 1.0
    %v744 = vrcp.pop %v743
    %v745 = vmul.f32 %v743, %v744
    %v746 = vsub.f32 2.0, %v745
    %v747 = vmul.f32 %v744, %v746
    %v748 = vmul.f32 %v747, 0.5307027
    %v749 = vadd.f32 %v748, -0.72657603
    %v750 = vmul.f32 %v749, %v747
    %v751 = vadd.f32 %v750, 0.7107069
    %v752 = vmul.f32 %v751, %v747
    %v753 = vadd.f32 %v752, -0.14224836
    %v754 = vmul.f32 %v753, %v747
    %v755 = vadd.f32 %v754, 0.1274148
    %v756 = vmul.f32 %v755, %v747
    %v757 = vmul.f32 %v740, %v740
    %v758 = vsub.f32 0.0, %v757
    %v759 = vmul.f32 %v758, 1.442695
    %v760 = vpow.pop %v759
    %v761 = vmul.f32 %v756, %v760
    %vm762 = vcmp.ge.f32.partialorder %v740, 0.0
    %v763 = vsub.f32 1.0, %v761
    %v764 = vsel %vm762, %v763, %v761
    %v765 = vadd.f32 %v735, %v764
    %v766 = vlaneseq
    %v767 = vshrl.u32 %v766, 7
    %v768 = vsub.s32 7, %v767
    %v769 = vrot.slane %v70, %v768
    %v770 = vsub.f32 %v59, %v769
    %v771 = vand.u32 2147483647, %v770
    %v772 = vmul.f32 %v771, 0.3275911
    %v773 = vadd.f32 %v772, 1.0
    %v774 = vrcp.pop %v773
    %v775 = vmul.f32 %v773, %v774
    %v776 = vsub.f32 2.0, %v775
    %v777 = vmul.f32 %v774, %v776
    %v778 = vmul.f32 %v777, 0.5307027
    %v779 = vadd.f32 %v778, -0.72657603
    %v780 = vmul.f32 %v779, %v777
    %v781 = vadd.f32 %v780, 0.7107069
    %v782 = vmul.f32 %v781, %v777
    %v783 = vadd.f32 %v782, -0.14224836
    %v784 = vmul.f32 %v783, %v777
    %v785 = vadd.f32 %v784, 0.1274148
    %v786 = vmul.f32 %v785, %v777
    %v787 = vmul.f32 %v770, %v770
    %v788 = vsub.f32 0.0, %v787
    %v789 = vmul.f32 %v788, 1.442695
    %v790 = vpow.pop %v789
    %v791 = vmul.f32 %v786, %v790
    %vm792 = vcmp.ge.f32.partialorder %v770, 0.0
    %v793 = vsub.f32 1.0, %v791
    %v794 = vsel %vm792, %v793, %v791
    %v795 = vadd.f32 %v765, %v794
    %v796 = vlaneseq
    %v797 = vshrl.u32 %v796, 7
    %v798 = vsub.s32 0, %v797
    %v799 = vrot.slane %v71, %v798
    %v800 = vsub.f32 %v59, %v799
    %v801 = vand.u32 2147483647, %v800
    %v802 = vmul.f32 %v801, 0.3275911
    %v803 = vadd.f32 %v802, 1.0
    %v804 = vrcp.pop %v803
    %v805 = vmul.f32 %v803, %v804
    %v806 = vsub.f32 2.0, %v805
    %v807 = vmul.f32 %v804, %v806
    %v808 = vmul.f32 %v807, 0.5307027
    %v809 = vadd.f32 %v808, -0.72657603
    %v810 = vmul.f32 %v809, %v807
    %v811 = vadd.f32 %v810, 0.7107069
    %v812 = vmul.f32 %v811, %v807
    %v813 = vadd.f32 %v812, -0.14224836
    %v814 = vmul.f32 %v813, %v807
    %v815 = vadd.f32 %v814, 0.1274148
    %v816 = vmul.f32 %v815, %v807
    %v817 = vmul.f32 %v800, %v800
    %v818 = vsub.f32 0.0, %v817
    %v819 = vmul.f32 %v818, 1.442695
    %v820 = vpow.pop %v819
    %v821 = vmul.f32 %v816, %v820
    %vm822 = vcmp.ge.f32.partialorder %v800, 0.0
    %v823 = vsub.f32 1.0, %v821
    %v824 = vsel %vm822, %v823, %v821
    %v825 = vadd.f32 %v795, %v824
    %v826 = vlaneseq
    %v827 = vshrl.u32 %v826, 7
    %v828 = vsub.s32 1, %v827
    %v829 = vrot.slane %v71, %v828
    %v830 = vsub.f32 %v59, %v829
    %v831 = vand.u32 2147483647, %v830
    %v832 = vmul.f32 %v831, 0.3275911
    %v833 = vadd.f32 %v832, 1.0
    %v834 = vrcp.pop %v833
    %v835 = vmul.f32 %v833, %v834
    %v836 = vsub.f32 2.0, %v835
    %v837 = vmul.f32 %v834, %v836
    %v838 = vmul.f32 %v837, 0.5307027
    %v839 = vadd.f32 %v838, -0.72657603
    %v840 = vmul.f32 %v839, %v837
    %v841 = vadd.f32 %v840, 0.7107069
    %v842 = vmul.f32 %v841, %v837
    %v843 = vadd.f32 %v842, -0.14224836
    %v844 = vmul.f32 %v843, %v837
    %v845 = vadd.f32 %v844, 0.1274148
    %v846 = vmul.f32 %v845, %v837
    %v847 = vmul.f32 %v830, %v830
    %v848 = vsub.f32 0.0, %v847
    %v849 = vmul.f32 %v848, 1.442695
    %v850 = vpow.pop %v849
    %v851 = vmul.f32 %v846, %v850
    %vm852 = vcmp.ge.f32.partialorder %v830, 0.0
    %v853 = vsub.f32 1.0, %v851
    %v854 = vsel %vm852, %v853, %v851
    %v855 = vadd.f32 %v825, %v854
    %v856 = vlaneseq
    %v857 = vshrl.u32 %v856, 7
    %v858 = vsub.s32 2, %v857
    %v859 = vrot.slane %v71, %v858
    %v860 = vsub.f32 %v59, %v859
    %v861 = vand.u32 2147483647, %v860
    %v862 = vmul.f32 %v861, 0.3275911
    %v863 = vadd.f32 %v862, 1.0
    %v864 = vrcp.pop %v863
    %v865 = vmul.f32 %v863, %v864
    %v866 = vsub.f32 2.0, %v865
    %v867 = vmul.f32 %v864, %v866
    %v868 = vmul.f32 %v867, 0.5307027
    %v869 = vadd.f32 %v868, -0.72657603
    %v870 = vmul.f32 %v869, %v867
    %v871 = vadd.f32 %v870, 0.7107069
    %v872 = vmul.f32 %v871, %v867
    %v873 = vadd.f32 %v872, -0.14224836
    %v874 = vmul.f32 %v873, %v867
    %v875 = vadd.f32 %v874, 0.1274148
    %v876 = vmul.f32 %v875, %v867
    %v877 = vmul.f32 %v860, %v860
    %v878 = vsub.f32 0.0, %v877
    %v879 = vmul.f32 %v878, 1.442695
    %v880 = vpow.pop %v879
    %v881 = vmul.f32 %v876, %v880
    %vm882 = vcmp.ge.f32.partialorder %v860, 0.0
    %v883 = vsub.f32 1.0, %v881
    %v884 = vsel %vm882, %v883, %v881
    %v885 = vadd.f32 %v855, %v884
    %v886 = vlaneseq
    %v887 = vshrl.u32 %v886, 7
    %v888 = vsub.s32 3, %v887
    %v889 = vrot.slane %v71, %v888
    %v890 = vsub.f32 %v59, %v889
    %v891 = vand.u32 2147483647, %v890
    %v892 = vmul.f32 %v891, 0.3275911
    %v893 = vadd.f32 %v892, 1.0
    %v894 = vrcp.pop %v893
    %v895 = vmul.f32 %v893, %v894
    %v896 = vsub.f32 2.0, %v895
    %v897 = vmul.f32 %v894, %v896
    %v898 = vmul.f32 %v897, 0.5307027
    %v899 = vadd.f32 %v898, -0.72657603
    %v900 = vmul.f32 %v899, %v897
    %v901 = vadd.f32 %v900, 0.7107069
    %v902 = vmul.f32 %v901, %v897
    %v903 = vadd.f32 %v902, -0.14224836
    %v904 = vmul.f32 %v903, %v897
    %v905 = vadd.f32 %v904, 0.1274148
    %v906 = vmul.f32 %v905, %v897
    %v907 = vmul.f32 %v890, %v890
    %v908 = vsub.f32 0.0, %v907
    %v909 = vmul.f32 %v908, 1.442695
    %v910 = vpow.pop %v909
    %v911 = vmul.f32 %v906, %v910
    %vm912 = vcmp.ge.f32.partialorder %v890, 0.0
    %v913 = vsub.f32 1.0, %v911
    %v914 = vsel %vm912, %v913, %v911
    %v915 = vadd.f32 %v885, %v914
    %v916 = vlaneseq
    %v917 = vshrl.u32 %v916, 7
    %v918 = vsub.s32 4, %v917
    %v919 = vrot.slane %v71, %v918
    %v920 = vsub.f32 %v59, %v919
    %v921 = vand.u32 2147483647, %v920
    %v922 = vmul.f32 %v921, 0.3275911
    %v923 = vadd.f32 %v922, 1.0
    %v924 = vrcp.pop %v923
    %v925 = vmul.f32 %v923, %v924
    %v926 = vsub.f32 2.0, %v925
    %v927 = vmul.f32 %v924, %v926
    %v928 = vmul.f32 %v927, 0.5307027
    %v929 = vadd.f32 %v928, -0.72657603
    %v930 = vmul.f32 %v929, %v927
    %v931 = vadd.f32 %v930, 0.7107069
    %v932 = vmul.f32 %v931, %v927
    %v933 = vadd.f32 %v932, -0.14224836
    %v934 = vmul.f32 %v933, %v927
    %v935 = vadd.f32 %v934, 0.1274148
    %v936 = vmul.f32 %v935, %v927
    %v937 = vmul.f32 %v920, %v920
    %v938 = vsub.f32 0.0, %v937
    %v939 = vmul.f32 %v938, 1.442695
    %v940 = vpow.pop %v939
    %v941 = vmul.f32 %v936, %v940
    %vm942 = vcmp.ge.f32.partialorder %v920, 0.0
    %v943 = vsub.f32 1.0, %v941
    %v944 = vsel %vm942, %v943, %v941
    %v945 = vadd.f32 %v915, %v944
    %v946 = vlaneseq
    %v947 = vshrl.u32 %v946, 7
    %v948 = vsub.s32 5, %v947
    %v949 = vrot.slane %v71, %v948
    %v950 = vsub.f32 %v59, %v949
    %v951 = vand.u32 2147483647, %v950
    %v952 = vmul.f32 %v951, 0.3275911
    %v953 = vadd.f32 %v952, 1.0
    %v954 = vrcp.pop %v953
    %v955 = vmul.f32 %v953, %v954
    %v956 = vsub.f32 2.0, %v955
    %v957 = vmul.f32 %v954, %v956
    %v958 = vmul.f32 %v957, 0.5307027
    %v959 = vadd.f32 %v958, -0.72657603
    %v960 = vmul.f32 %v959, %v957
    %v961 = vadd.f32 %v960, 0.7107069
    %v962 = vmul.f32 %v961, %v957
    %v963 = vadd.f32 %v962, -0.14224836
    %v964 = vmul.f32 %v963, %v957
    %v965 = vadd.f32 %v964, 0.1274148
    %v966 = vmul.f32 %v965, %v957
    %v967 = vmul.f32 %v950, %v950
    %v968 = vsub.f32 0.0, %v967
    %v969 = vmul.f32 %v968, 1.442695
    %v970 = vpow.pop %v969
    %v971 = vmul.f32 %v966, %v970
    %vm972 = vcmp.ge.f32.partialorder %v950, 0.0
    %v973 = vsub.f32 1.0, %v971
    %v974 = vsel %vm972, %v973, %v971
    %v975 = vadd.f32 %v945, %v974
    %v976 = vlaneseq
    %v977 = vshrl.u32 %v976, 7
    %v978 = vsub.s32 6, %v977
    %v979 = vrot.slane %v71, %v978
    %v980 = vsub.f32 %v59, %v979
    %v981 = vand.u32 2147483647, %v980
    %v982 = vmul.f32 %v981, 0.3275911
    %v983 = vadd.f32 %v982, 1.0
    %v984 = vrcp.pop %v983
    %v985 = vmul.f32 %v983, %v984
    %v986 = vsub.f32 2.0, %v985
    %v987 = vmul.f32 %v984, %v986
    %v988 = vmul.f32 %v987, 0.5307027
    %v989 = vadd.f32 %v988, -0.72657603
    %v990 = vmul.f32 %v989, %v987
    %v991 = vadd.f32 %v990, 0.7107069
    %v992 = vmul.f32 %v991, %v987
    %v993 = vadd.f32 %v992, -0.14224836
    %v994 = vmul.f32 %v993, %v987
    %v995 = vadd.f32 %v994, 0.1274148
    %v996 = vmul.f32 %v995, %v987
    %v997 = vmul.f32 %v980, %v980
    %v998 = vsub.f32 0.0, %v997
    %v999 = vmul.f32 %v998, 1.442695
    %v1000 = vpow.pop %v999
    %v1001 = vmul.f32 %v996, %v1000
    %vm1002 = vcmp.ge.f32.partialorder %v980, 0.0
    %v1003 = vsub.f32 1.0, %v1001
    %v1004 = vsel %vm1002, %v1003, %v1001
    %v1005 = vadd.f32 %v975, %v1004
    %v1006 = vlaneseq
    %v1007 = vshrl.u32 %v1006, 7
    %v1008 = vsub.s32 7, %v1007
    %v1009 = vrot.slane %v71, %v1008
    %v1010 = vsub.f32 %v59, %v1009
    %v1011 = vand.u32 2147483647, %v1010
    %v1012 = vmul.f32 %v1011, 0.3275911
    %v1013 = vadd.f32 %v1012, 1.0
    %v1014 = vrcp.pop %v1013
    %v1015 = vmul.f32 %v1013, %v1014
    %v1016 = vsub.f32 2.0, %v1015
    %v1017 = vmul.f32 %v1014, %v1016
    %v1018 = vmul.f32 %v1017, 0.5307027
    %v1019 = vadd.f32 %v1018, -0.72657603
    %v1020 = vmul.f32 %v1019, %v1017
    %v1021 = vadd.f32 %v1020, 0.7107069
    %v1022 = vmul.f32 %v1021, %v1017
    %v1023 = vadd.f32 %v1022, -0.14224836
    %v1024 = vmul.f32 %v1023, %v1017
    %v1025 = vadd.f32 %v1024, 0.1274148
    %v1026 = vmul.f32 %v1025, %v1017
    %v1027 = vmul.f32 %v1010, %v1010
    %v1028 = vsub.f32 0.0, %v1027
    %v1029 = vmul.f32 %v1028, 1.442695
    %v1030 = vpow.pop %v1029
    %v1031 = vmul.f32 %v1026, %v1030
    %vm1032 = vcmp.ge.f32.partialorder %v1010, 0.0
    %v1033 = vsub.f32 1.0, %v1031
    %v1034 = vsel %vm1032, %v1033, %v1031
    %v1035 = vadd.f32 %v1005, %v1034
    %v1036 = vlaneseq
    %v1037 = vshrl.u32 %v1036, 7
    %v1038 = vsub.s32 0, %v1037
    %v1039 = vrot.slane %v72, %v1038
    %v1040 = vsub.f32 %v59, %v1039
    %v1041 = vand.u32 2147483647, %v1040
    %v1042 = vmul.f32 %v1041, 0.3275911
    %v1043 = vadd.f32 %v1042, 1.0
    %v1044 = vrcp.pop %v1043
    %v1045 = vmul.f32 %v1043, %v1044
    %v1046 = vsub.f32 2.0, %v1045
    %v1047 = vmul.f32 %v1044, %v1046
    %v1048 = vmul.f32 %v1047, 0.5307027
    %v1049 = vadd.f32 %v1048, -0.72657603
    %v1050 = vmul.f32 %v1049, %v1047
    %v1051 = vadd.f32 %v1050, 0.7107069
    %v1052 = vmul.f32 %v1051, %v1047
    %v1053 = vadd.f32 %v1052, -0.14224836
    %v1054 = vmul.f32 %v1053, %v1047
    %v1055 = vadd.f32 %v1054, 0.1274148
    %v1056 = vmul.f32 %v1055, %v1047
    %v1057 = vmul.f32 %v1040, %v1040
    %v1058 = vsub.f32 0.0, %v1057
    %v1059 = vmul.f32 %v1058, 1.442695
    %v1060 = vpow.pop %v1059
    %v1061 = vmul.f32 %v1056, %v1060
    %vm1062 = vcmp.ge.f32.partialorder %v1040, 0.0
    %v1063 = vsub.f32 1.0, %v1061
    %v1064 = vsel %vm1062, %v1063, %v1061
    %v1065 = vadd.f32 %v1035, %v1064
    %v1066 = vlaneseq
    %v1067 = vshrl.u32 %v1066, 7
    %v1068 = vsub.s32 1, %v1067
    %v1069 = vrot.slane %v72, %v1068
    %v1070 = vsub.f32 %v59, %v1069
    %v1071 = vand.u32 2147483647, %v1070
    %v1072 = vmul.f32 %v1071, 0.3275911
    %v1073 = vadd.f32 %v1072, 1.0
    %v1074 = vrcp.pop %v1073
    %v1075 = vmul.f32 %v1073, %v1074
    %v1076 = vsub.f32 2.0, %v1075
    %v1077 = vmul.f32 %v1074, %v1076
    %v1078 = vmul.f32 %v1077, 0.5307027
    %v1079 = vadd.f32 %v1078, -0.72657603
    %v1080 = vmul.f32 %v1079, %v1077
    %v1081 = vadd.f32 %v1080, 0.7107069
    %v1082 = vmul.f32 %v1081, %v1077
    %v1083 = vadd.f32 %v1082, -0.14224836
    %v1084 = vmul.f32 %v1083, %v1077
    %v1085 = vadd.f32 %v1084, 0.1274148
    %v1086 = vmul.f32 %v1085, %v1077
    %v1087 = vmul.f32 %v1070, %v1070
    %v1088 = vsub.f32 0.0, %v1087
    %v1089 = vmul.f32 %v1088, 1.442695
    %v1090 = vpow.pop %v1089
    %v1091 = vmul.f32 %v1086, %v1090
    %vm1092 = vcmp.ge.f32.partialorder %v1070, 0.0
    %v1093 = vsub.f32 1.0, %v1091
    %v1094 = vsel %vm1092, %v1093, %v1091
    %v1095 = vadd.f32 %v1065, %v1094
    %v1096 = vlaneseq
    %v1097 = vshrl.u32 %v1096, 7
    %v1098 = vsub.s32 2, %v1097
    %v1099 = vrot.slane %v72, %v1098
    %v1100 = vsub.f32 %v59, %v1099
    %v1101 = vand.u32 2147483647, %v1100
    %v1102 = vmul.f32 %v1101, 0.3275911
    %v1103 = vadd.f32 %v1102, 1.0
    %v1104 = vrcp.pop %v1103
    %v1105 = vmul.f32 %v1103, %v1104
    %v1106 = vsub.f32 2.0, %v1105
    %v1107 = vmul.f32 %v1104, %v1106
    %v1108 = vmul.f32 %v1107, 0.5307027
    %v1109 = vadd.f32 %v1108, -0.72657603
    %v1110 = vmul.f32 %v1109, %v1107
    %v1111 = vadd.f32 %v1110, 0.7107069
    %v1112 = vmul.f32 %v1111, %v1107
    %v1113 = vadd.f32 %v1112, -0.14224836
    %v1114 = vmul.f32 %v1113, %v1107
    %v1115 = vadd.f32 %v1114, 0.1274148
    %v1116 = vmul.f32 %v1115, %v1107
    %v1117 = vmul.f32 %v1100, %v1100
    %v1118 = vsub.f32 0.0, %v1117
    %v1119 = vmul.f32 %v1118, 1.442695
    %v1120 = vpow.pop %v1119
    %v1121 = vmul.f32 %v1116, %v1120
    %vm1122 = vcmp.ge.f32.partialorder %v1100, 0.0
    %v1123 = vsub.f32 1.0, %v1121
    %v1124 = vsel %vm1122, %v1123, %v1121
    %v1125 = vadd.f32 %v1095, %v1124
    %v1126 = vlaneseq
    %v1127 = vshrl.u32 %v1126, 7
    %v1128 = vsub.s32 3, %v1127
    %v1129 = vrot.slane %v72, %v1128
    %v1130 = vsub.f32 %v59, %v1129
    %v1131 = vand.u32 2147483647, %v1130
    %v1132 = vmul.f32 %v1131, 0.3275911
    %v1133 = vadd.f32 %v1132, 1.0
    %v1134 = vrcp.pop %v1133
    %v1135 = vmul.f32 %v1133, %v1134
    %v1136 = vsub.f32 2.0, %v1135
    %v1137 = vmul.f32 %v1134, %v1136
    %v1138 = vmul.f32 %v1137, 0.5307027
    %v1139 = vadd.f32 %v1138, -0.72657603
    %v1140 = vmul.f32 %v1139, %v1137
    %v1141 = vadd.f32 %v1140, 0.7107069
    %v1142 = vmul.f32 %v1141, %v1137
    %v1143 = vadd.f32 %v1142, -0.14224836
    %v1144 = vmul.f32 %v1143, %v1137
    %v1145 = vadd.f32 %v1144, 0.1274148
    %v1146 = vmul.f32 %v1145, %v1137
    %v1147 = vmul.f32 %v1130, %v1130
    %v1148 = vsub.f32 0.0, %v1147
    %v1149 = vmul.f32 %v1148, 1.442695
    %v1150 = vpow.pop %v1149
    %v1151 = vmul.f32 %v1146, %v1150
    %vm1152 = vcmp.ge.f32.partialorder %v1130, 0.0
    %v1153 = vsub.f32 1.0, %v1151
    %v1154 = vsel %vm1152, %v1153, %v1151
    %v1155 = vadd.f32 %v1125, %v1154
    %v1156 = vlaneseq
    %v1157 = vshrl.u32 %v1156, 7
    %v1158 = vsub.s32 4, %v1157
    %v1159 = vrot.slane %v72, %v1158
    %v1160 = vsub.f32 %v59, %v1159
    %v1161 = vand.u32 2147483647, %v1160
    %v1162 = vmul.f32 %v1161, 0.3275911
    %v1163 = vadd.f32 %v1162, 1.0
    %v1164 = vrcp.pop %v1163
    %v1165 = vmul.f32 %v1163, %v1164
    %v1166 = vsub.f32 2.0, %v1165
    %v1167 = vmul.f32 %v1164, %v1166
    %v1168 = vmul.f32 %v1167, 0.5307027
    %v1169 = vadd.f32 %v1168, -0.72657603
    %v1170 = vmul.f32 %v1169, %v1167
    %v1171 = vadd.f32 %v1170, 0.7107069
    %v1172 = vmul.f32 %v1171, %v1167
    %v1173 = vadd.f32 %v1172, -0.14224836
    %v1174 = vmul.f32 %v1173, %v1167
    %v1175 = vadd.f32 %v1174, 0.1274148
    %v1176 = vmul.f32 %v1175, %v1167
    %v1177 = vmul.f32 %v1160, %v1160
    %v1178 = vsub.f32 0.0, %v1177
    %v1179 = vmul.f32 %v1178, 1.442695
    %v1180 = vpow.pop %v1179
    %v1181 = vmul.f32 %v1176, %v1180
    %vm1182 = vcmp.ge.f32.partialorder %v1160, 0.0
    %v1183 = vsub.f32 1.0, %v1181
    %v1184 = vsel %vm1182, %v1183, %v1181
    %v1185 = vadd.f32 %v1155, %v1184
    %v1186 = vlaneseq
    %v1187 = vshrl.u32 %v1186, 7
    %v1188 = vsub.s32 5, %v1187
    %v1189 = vrot.slane %v72, %v1188
    %v1190 = vsub.f32 %v59, %v1189
    %v1191 = vand.u32 2147483647, %v1190
    %v1192 = vmul.f32 %v1191, 0.3275911
    %v1193 = vadd.f32 %v1192, 1.0
    %v1194 = vrcp.pop %v1193
    %v1195 = vmul.f32 %v1193, %v1194
    %v1196 = vsub.f32 2.0, %v1195
    %v1197 = vmul.f32 %v1194, %v1196
    %v1198 = vmul.f32 %v1197, 0.5307027
    %v1199 = vadd.f32 %v1198, -0.72657603
    %v1200 = vmul.f32 %v1199, %v1197
    %v1201 = vadd.f32 %v1200, 0.7107069
    %v1202 = vmul.f32 %v1201, %v1197
    %v1203 = vadd.f32 %v1202, -0.14224836
    %v1204 = vmul.f32 %v1203, %v1197
    %v1205 = vadd.f32 %v1204, 0.1274148
    %v1206 = vmul.f32 %v1205, %v1197
    %v1207 = vmul.f32 %v1190, %v1190
    %v1208 = vsub.f32 0.0, %v1207
    %v1209 = vmul.f32 %v1208, 1.442695
    %v1210 = vpow.pop %v1209
    %v1211 = vmul.f32 %v1206, %v1210
    %vm1212 = vcmp.ge.f32.partialorder %v1190, 0.0
    %v1213 = vsub.f32 1.0, %v1211
    %v1214 = vsel %vm1212, %v1213, %v1211
    %v1215 = vadd.f32 %v1185, %v1214
    %v1216 = vlaneseq
    %v1217 = vshrl.u32 %v1216, 7
    %v1218 = vsub.s32 6, %v1217
    %v1219 = vrot.slane %v72, %v1218
    %v1220 = vsub.f32 %v59, %v1219
    %v1221 = vand.u32 2147483647, %v1220
    %v1222 = vmul.f32 %v1221, 0.3275911
    %v1223 = vadd.f32 %v1222, 1.0
    %v1224 = vrcp.pop %v1223
    %v1225 = vmul.f32 %v1223, %v1224
    %v1226 = vsub.f32 2.0, %v1225
    %v1227 = vmul.f32 %v1224, %v1226
    %v1228 = vmul.f32 %v1227, 0.5307027
    %v1229 = vadd.f32 %v1228, -0.72657603
    %v1230 = vmul.f32 %v1229, %v1227
    %v1231 = vadd.f32 %v1230, 0.7107069
    %v1232 = vmul.f32 %v1231, %v1227
    %v1233 = vadd.f32 %v1232, -0.14224836
    %v1234 = vmul.f32 %v1233, %v1227
    %v1235 = vadd.f32 %v1234, 0.1274148
    %v1236 = vmul.f32 %v1235, %v1227
    %v1237 = vmul.f32 %v1220, %v1220
    %v1238 = vsub.f32 0.0, %v1237
    %v1239 = vmul.f32 %v1238, 1.442695
    %v1240 = vpow.pop %v1239
    %v1241 = vmul.f32 %v1236, %v1240
    %vm1242 = vcmp.ge.f32.partialorder %v1220, 0.0
    %v1243 = vsub.f32 1.0, %v1241
    %v1244 = vsel %vm1242, %v1243, %v1241
    %v1245 = vadd.f32 %v1215, %v1244
    %v1246 = vlaneseq
    %v1247 = vshrl.u32 %v1246, 7
    %v1248 = vsub.s32 7, %v1247
    %v1249 = vrot.slane %v72, %v1248
    %v1250 = vsub.f32 %v59, %v1249
    %v1251 = vand.u32 2147483647, %v1250
    %v1252 = vmul.f32 %v1251, 0.3275911
    %v1253 = vadd.f32 %v1252, 1.0
    %v1254 = vrcp.pop %v1253
    %v1255 = vmul.f32 %v1253, %v1254
    %v1256 = vsub.f32 2.0, %v1255
    %v1257 = vmul.f32 %v1254, %v1256
    %v1258 = vmul.f32 %v1257, 0.5307027
    %v1259 = vadd.f32 %v1258, -0.72657603
    %v1260 = vmul.f32 %v1259, %v1257
    %v1261 = vadd.f32 %v1260, 0.7107069
    %v1262 = vmul.f32 %v1261, %v1257
    %v1263 = vadd.f32 %v1262, -0.14224836
    %v1264 = vmul.f32 %v1263, %v1257
    %v1265 = vadd.f32 %v1264, 0.1274148
    %v1266 = vmul.f32 %v1265, %v1257
    %v1267 = vmul.f32 %v1250, %v1250
    %v1268 = vsub.f32 0.0, %v1267
    %v1269 = vmul.f32 %v1268, 1.442695
    %v1270 = vpow.pop %v1269
    %v1271 = vmul.f32 %v1266, %v1270
    %vm1272 = vcmp.ge.f32.partialorder %v1250, 0.0
    %v1273 = vsub.f32 1.0, %v1271
    %v1274 = vsel %vm1272, %v1273, %v1271
    %v1275 = vadd.f32 %v1245, %v1274
    %v1276 = vlaneseq
    %v1277 = vshrl.u32 %v1276, 7
    %v1278 = vsub.s32 0, %v1277
    %v1279 = vrot.slane %v73, %v1278
    %v1280 = vsub.f32 %v59, %v1279
    %v1281 = vand.u32 2147483647, %v1280
    %v1282 = vmul.f32 %v1281, 0.3275911
    %v1283 = vadd.f32 %v1282, 1.0
    %v1284 = vrcp.pop %v1283
    %v1285 = vmul.f32 %v1283, %v1284
    %v1286 = vsub.f32 2.0, %v1285
    %v1287 = vmul.f32 %v1284, %v1286
    %v1288 = vmul.f32 %v1287, 0.5307027
    %v1289 = vadd.f32 %v1288, -0.72657603
    %v1290 = vmul.f32 %v1289, %v1287
    %v1291 = vadd.f32 %v1290, 0.7107069
    %v1292 = vmul.f32 %v1291, %v1287
    %v1293 = vadd.f32 %v1292, -0.14224836
    %v1294 = vmul.f32 %v1293, %v1287
    %v1295 = vadd.f32 %v1294, 0.1274148
    %v1296 = vmul.f32 %v1295, %v1287
    %v1297 = vmul.f32 %v1280, %v1280
    %v1298 = vsub.f32 0.0, %v1297
    %v1299 = vmul.f32 %v1298, 1.442695
    %v1300 = vpow.pop %v1299
    %v1301 = vmul.f32 %v1296, %v1300
    %vm1302 = vcmp.ge.f32.partialorder %v1280, 0.0
    %v1303 = vsub.f32 1.0, %v1301
    %v1304 = vsel %vm1302, %v1303, %v1301
    %v1305 = vadd.f32 %v1275, %v1304
    %v1306 = vlaneseq
    %v1307 = vshrl.u32 %v1306, 7
    %v1308 = vsub.s32 1, %v1307
    %v1309 = vrot.slane %v73, %v1308
    %v1310 = vsub.f32 %v59, %v1309
    %v1311 = vand.u32 2147483647, %v1310
    %v1312 = vmul.f32 %v1311, 0.3275911
    %v1313 = vadd.f32 %v1312, 1.0
    %v1314 = vrcp.pop %v1313
    %v1315 = vmul.f32 %v1313, %v1314
    %v1316 = vsub.f32 2.0, %v1315
    %v1317 = vmul.f32 %v1314, %v1316
    %v1318 = vmul.f32 %v1317, 0.5307027
    %v1319 = vadd.f32 %v1318, -0.72657603
    %v1320 = vmul.f32 %v1319, %v1317
    %v1321 = vadd.f32 %v1320, 0.7107069
    %v1322 = vmul.f32 %v1321, %v1317
    %v1323 = vadd.f32 %v1322, -0.14224836
    %v1324 = vmul.f32 %v1323, %v1317
    %v1325 = vadd.f32 %v1324, 0.1274148
    %v1326 = vmul.f32 %v1325, %v1317
    %v1327 = vmul.f32 %v1310, %v1310
    %v1328 = vsub.f32 0.0, %v1327
    %v1329 = vmul.f32 %v1328, 1.442695
    %v1330 = vpow.pop %v1329
    %v1331 = vmul.f32 %v1326, %v1330
    %vm1332 = vcmp.ge.f32.partialorder %v1310, 0.0
    %v1333 = vsub.f32 1.0, %v1331
    %v1334 = vsel %vm1332, %v1333, %v1331
    %v1335 = vadd.f32 %v1305, %v1334
    %v1336 = vlaneseq
    %v1337 = vshrl.u32 %v1336, 7
    %v1338 = vsub.s32 2, %v1337
    %v1339 = vrot.slane %v73, %v1338
    %v1340 = vsub.f32 %v59, %v1339
    %v1341 = vand.u32 2147483647, %v1340
    %v1342 = vmul.f32 %v1341, 0.3275911
    %v1343 = vadd.f32 %v1342, 1.0
    %v1344 = vrcp.pop %v1343
    %v1345 = vmul.f32 %v1343, %v1344
    %v1346 = vsub.f32 2.0, %v1345
    %v1347 = vmul.f32 %v1344, %v1346
    %v1348 = vmul.f32 %v1347, 0.5307027
    %v1349 = vadd.f32 %v1348, -0.72657603
    %v1350 = vmul.f32 %v1349, %v1347
    %v1351 = vadd.f32 %v1350, 0.7107069
    %v1352 = vmul.f32 %v1351, %v1347
    %v1353 = vadd.f32 %v1352, -0.14224836
    %v1354 = vmul.f32 %v1353, %v1347
    %v1355 = vadd.f32 %v1354, 0.1274148
    %v1356 = vmul.f32 %v1355, %v1347
    %v1357 = vmul.f32 %v1340, %v1340
    %v1358 = vsub.f32 0.0, %v1357
    %v1359 = vmul.f32 %v1358, 1.442695
    %v1360 = vpow.pop %v1359
    %v1361 = vmul.f32 %v1356, %v1360
    %vm1362 = vcmp.ge.f32.partialorder %v1340, 0.0
    %v1363 = vsub.f32 1.0, %v1361
    %v1364 = vsel %vm1362, %v1363, %v1361
    %v1365 = vadd.f32 %v1335, %v1364
    %v1366 = vlaneseq
    %v1367 = vshrl.u32 %v1366, 7
    %v1368 = vsub.s32 3, %v1367
    %v1369 = vrot.slane %v73, %v1368
    %v1370 = vsub.f32 %v59, %v1369
    %v1371 = vand.u32 2147483647, %v1370
    %v1372 = vmul.f32 %v1371, 0.3275911
    %v1373 = vadd.f32 %v1372, 1.0
    %v1374 = vrcp.pop %v1373
    %v1375 = vmul.f32 %v1373, %v1374
    %v1376 = vsub.f32 2.0, %v1375
    %v1377 = vmul.f32 %v1374, %v1376
    %v1378 = vmul.f32 %v1377, 0.5307027
    %v1379 = vadd.f32 %v1378, -0.72657603
    %v1380 = vmul.f32 %v1379, %v1377
    %v1381 = vadd.f32 %v1380, 0.7107069
    %v1382 = vmul.f32 %v1381, %v1377
    %v1383 = vadd.f32 %v1382, -0.14224836
    %v1384 = vmul.f32 %v1383, %v1377
    %v1385 = vadd.f32 %v1384, 0.1274148
    %v1386 = vmul.f32 %v1385, %v1377
    %v1387 = vmul.f32 %v1370, %v1370
    %v1388 = vsub.f32 0.0, %v1387
    %v1389 = vmul.f32 %v1388, 1.442695
    %v1390 = vpow.pop %v1389
    %v1391 = vmul.f32 %v1386, %v1390
    %vm1392 = vcmp.ge.f32.partialorder %v1370, 0.0
    %v1393 = vsub.f32 1.0, %v1391
    %v1394 = vsel %vm1392, %v1393, %v1391
    %v1395 = vadd.f32 %v1365, %v1394
    %v1396 = vlaneseq
    %v1397 = vshrl.u32 %v1396, 7
    %v1398 = vsub.s32 4, %v1397
    %v1399 = vrot.slane %v73, %v1398
    %v1400 = vsub.f32 %v59, %v1399
    %v1401 = vand.u32 2147483647, %v1400
    %v1402 = vmul.f32 %v1401, 0.3275911
    %v1403 = vadd.f32 %v1402, 1.0
    %v1404 = vrcp.pop %v1403
    %v1405 = vmul.f32 %v1403, %v1404
    %v1406 = vsub.f32 2.0, %v1405
    %v1407 = vmul.f32 %v1404, %v1406
    %v1408 = vmul.f32 %v1407, 0.5307027
    %v1409 = vadd.f32 %v1408, -0.72657603
    %v1410 = vmul.f32 %v1409, %v1407
    %v1411 = vadd.f32 %v1410, 0.7107069
    %v1412 = vmul.f32 %v1411, %v1407
    %v1413 = vadd.f32 %v1412, -0.14224836
    %v1414 = vmul.f32 %v1413, %v1407
    %v1415 = vadd.f32 %v1414, 0.1274148
    %v1416 = vmul.f32 %v1415, %v1407
    %v1417 = vmul.f32 %v1400, %v1400
    %v1418 = vsub.f32 0.0, %v1417
    %v1419 = vmul.f32 %v1418, 1.442695
    %v1420 = vpow.pop %v1419
    %v1421 = vmul.f32 %v1416, %v1420
    %vm1422 = vcmp.ge.f32.partialorder %v1400, 0.0
    %v1423 = vsub.f32 1.0, %v1421
    %v1424 = vsel %vm1422, %v1423, %v1421
    %v1425 = vadd.f32 %v1395, %v1424
    %v1426 = vlaneseq
    %v1427 = vshrl.u32 %v1426, 7
    %v1428 = vsub.s32 5, %v1427
    %v1429 = vrot.slane %v73, %v1428
    %v1430 = vsub.f32 %v59, %v1429
    %v1431 = vand.u32 2147483647, %v1430
    %v1432 = vmul.f32 %v1431, 0.3275911
    %v1433 = vadd.f32 %v1432, 1.0
    %v1434 = vrcp.pop %v1433
    %v1435 = vmul.f32 %v1433, %v1434
    %v1436 = vsub.f32 2.0, %v1435
    %v1437 = vmul.f32 %v1434, %v1436
    %v1438 = vmul.f32 %v1437, 0.5307027
    %v1439 = vadd.f32 %v1438, -0.72657603
    %v1440 = vmul.f32 %v1439, %v1437
    %v1441 = vadd.f32 %v1440, 0.7107069
    %v1442 = vmul.f32 %v1441, %v1437
    %v1443 = vadd.f32 %v1442, -0.14224836
    %v1444 = vmul.f32 %v1443, %v1437
    %v1445 = vadd.f32 %v1444, 0.1274148
    %v1446 = vmul.f32 %v1445, %v1437
    %v1447 = vmul.f32 %v1430, %v1430
    %v1448 = vsub.f32 0.0, %v1447
    %v1449 = vmul.f32 %v1448, 1.442695
    %v1450 = vpow.pop %v1449
    %v1451 = vmul.f32 %v1446, %v1450
    %vm1452 = vcmp.ge.f32.partialorder %v1430, 0.0
    %v1453 = vsub.f32 1.0, %v1451
    %v1454 = vsel %vm1452, %v1453, %v1451
    %v1455 = vadd.f32 %v1425, %v1454
    %v1456 = vlaneseq
    %v1457 = vshrl.u32 %v1456, 7
    %v1458 = vsub.s32 6, %v1457
    %v1459 = vrot.slane %v73, %v1458
    %v1460 = vsub.f32 %v59, %v1459
    %v1461 = vand.u32 2147483647, %v1460
    %v1462 = vmul.f32 %v1461, 0.3275911
    %v1463 = vadd.f32 %v1462, 1.0
    %v1464 = vrcp.pop %v1463
    %v1465 = vmul.f32 %v1463, %v1464
    %v1466 = vsub.f32 2.0, %v1465
    %v1467 = vmul.f32 %v1464, %v1466
    %v1468 = vmul.f32 %v1467, 0.5307027
    %v1469 = vadd.f32 %v1468, -0.72657603
    %v1470 = vmul.f32 %v1469, %v1467
    %v1471 = vadd.f32 %v1470, 0.7107069
    %v1472 = vmul.f32 %v1471, %v1467
    %v1473 = vadd.f32 %v1472, -0.14224836
    %v1474 = vmul.f32 %v1473, %v1467
    %v1475 = vadd.f32 %v1474, 0.1274148
    %v1476 = vmul.f32 %v1475, %v1467
    %v1477 = vmul.f32 %v1460, %v1460
    %v1478 = vsub.f32 0.0, %v1477
    %v1479 = vmul.f32 %v1478, 1.442695
    %v1480 = vpow.pop %v1479
    %v1481 = vmul.f32 %v1476, %v1480
    %vm1482 = vcmp.ge.f32.partialorder %v1460, 0.0
    %v1483 = vsub.f32 1.0, %v1481
    %v1484 = vsel %vm1482, %v1483, %v1481
    %v1485 = vadd.f32 %v1455, %v1484
    %v1486 = vlaneseq
    %v1487 = vshrl.u32 %v1486, 7
    %v1488 = vsub.s32 7, %v1487
    %v1489 = vrot.slane %v73, %v1488
    %v1490 = vsub.f32 %v59, %v1489
    %v1491 = vand.u32 2147483647, %v1490
    %v1492 = vmul.f32 %v1491, 0.3275911
    %v1493 = vadd.f32 %v1492, 1.0
    %v1494 = vrcp.pop %v1493
    %v1495 = vmul.f32 %v1493, %v1494
    %v1496 = vsub.f32 2.0, %v1495
    %v1497 = vmul.f32 %v1494, %v1496
    %v1498 = vmul.f32 %v1497, 0.5307027
    %v1499 = vadd.f32 %v1498, -0.72657603
    %v1500 = vmul.f32 %v1499, %v1497
    %v1501 = vadd.f32 %v1500, 0.7107069
    %v1502 = vmul.f32 %v1501, %v1497
    %v1503 = vadd.f32 %v1502, -0.14224836
    %v1504 = vmul.f32 %v1503, %v1497
    %v1505 = vadd.f32 %v1504, 0.1274148
    %v1506 = vmul.f32 %v1505, %v1497
    %v1507 = vmul.f32 %v1490, %v1490
    %v1508 = vsub.f32 0.0, %v1507
    %v1509 = vmul.f32 %v1508, 1.442695
    %v1510 = vpow.pop %v1509
    %v1511 = vmul.f32 %v1506, %v1510
    %vm1512 = vcmp.ge.f32.partialorder %v1490, 0.0
    %v1513 = vsub.f32 1.0, %v1511
    %v1514 = vsel %vm1512, %v1513, %v1511
    %v1515 = vadd.f32 %v1485, %v1514
    %v1516 = vlaneseq
    %v1517 = vshrl.u32 %v1516, 7
    %v1518 = vsub.s32 0, %v1517
    %v1519 = vrot.slane %v74, %v1518
    %v1520 = vsub.f32 %v59, %v1519
    %v1521 = vand.u32 2147483647, %v1520
    %v1522 = vmul.f32 %v1521, 0.3275911
    %v1523 = vadd.f32 %v1522, 1.0
    %v1524 = vrcp.pop %v1523
    %v1525 = vmul.f32 %v1523, %v1524
    %v1526 = vsub.f32 2.0, %v1525
    %v1527 = vmul.f32 %v1524, %v1526
    %v1528 = vmul.f32 %v1527, 0.5307027
    %v1529 = vadd.f32 %v1528, -0.72657603
    %v1530 = vmul.f32 %v1529, %v1527
    %v1531 = vadd.f32 %v1530, 0.7107069
    %v1532 = vmul.f32 %v1531, %v1527
    %v1533 = vadd.f32 %v1532, -0.14224836
    %v1534 = vmul.f32 %v1533, %v1527
    %v1535 = vadd.f32 %v1534, 0.1274148
    %v1536 = vmul.f32 %v1535, %v1527
    %v1537 = vmul.f32 %v1520, %v1520
    %v1538 = vsub.f32 0.0, %v1537
    %v1539 = vmul.f32 %v1538, 1.442695
    %v1540 = vpow.pop %v1539
    %v1541 = vmul.f32 %v1536, %v1540
    %vm1542 = vcmp.ge.f32.partialorder %v1520, 0.0
    %v1543 = vsub.f32 1.0, %v1541
    %v1544 = vsel %vm1542, %v1543, %v1541
    %v1545 = vadd.f32 %v1515, %v1544
    %v1546 = vlaneseq
    %v1547 = vshrl.u32 %v1546, 7
    %v1548 = vsub.s32 1, %v1547
    %v1549 = vrot.slane %v74, %v1548
    %v1550 = vsub.f32 %v59, %v1549
    %v1551 = vand.u32 2147483647, %v1550
    %v1552 = vmul.f32 %v1551, 0.3275911
    %v1553 = vadd.f32 %v1552, 1.0
    %v1554 = vrcp.pop %v1553
    %v1555 = vmul.f32 %v1553, %v1554
    %v1556 = vsub.f32 2.0, %v1555
    %v1557 = vmul.f32 %v1554, %v1556
    %v1558 = vmul.f32 %v1557, 0.5307027
    %v1559 = vadd.f32 %v1558, -0.72657603
    %v1560 = vmul.f32 %v1559, %v1557
    %v1561 = vadd.f32 %v1560, 0.7107069
    %v1562 = vmul.f32 %v1561, %v1557
    %v1563 = vadd.f32 %v1562, -0.14224836
    %v1564 = vmul.f32 %v1563, %v1557
    %v1565 = vadd.f32 %v1564, 0.1274148
    %v1566 = vmul.f32 %v1565, %v1557
    %v1567 = vmul.f32 %v1550, %v1550
    %v1568 = vsub.f32 0.0, %v1567
    %v1569 = vmul.f32 %v1568, 1.442695
    %v1570 = vpow.pop %v1569
    %v1571 = vmul.f32 %v1566, %v1570
    %vm1572 = vcmp.ge.f32.partialorder %v1550, 0.0
    %v1573 = vsub.f32 1.0, %v1571
    %v1574 = vsel %vm1572, %v1573, %v1571
    %v1575 = vadd.f32 %v1545, %v1574
    %v1576 = vlaneseq
    %v1577 = vshrl.u32 %v1576, 7
    %v1578 = vsub.s32 2, %v1577
    %v1579 = vrot.slane %v74, %v1578
    %v1580 = vsub.f32 %v59, %v1579
    %v1581 = vand.u32 2147483647, %v1580
    %v1582 = vmul.f32 %v1581, 0.3275911
    %v1583 = vadd.f32 %v1582, 1.0
    %v1584 = vrcp.pop %v1583
    %v1585 = vmul.f32 %v1583, %v1584
    %v1586 = vsub.f32 2.0, %v1585
    %v1587 = vmul.f32 %v1584, %v1586
    %v1588 = vmul.f32 %v1587, 0.5307027
    %v1589 = vadd.f32 %v1588, -0.72657603
    %v1590 = vmul.f32 %v1589, %v1587
    %v1591 = vadd.f32 %v1590, 0.7107069
    %v1592 = vmul.f32 %v1591, %v1587
    %v1593 = vadd.f32 %v1592, -0.14224836
    %v1594 = vmul.f32 %v1593, %v1587
    %v1595 = vadd.f32 %v1594, 0.1274148
    %v1596 = vmul.f32 %v1595, %v1587
    %v1597 = vmul.f32 %v1580, %v1580
    %v1598 = vsub.f32 0.0, %v1597
    %v1599 = vmul.f32 %v1598, 1.442695
    %v1600 = vpow.pop %v1599
    %v1601 = vmul.f32 %v1596, %v1600
    %vm1602 = vcmp.ge.f32.partialorder %v1580, 0.0
    %v1603 = vsub.f32 1.0, %v1601
    %v1604 = vsel %vm1602, %v1603, %v1601
    %v1605 = vadd.f32 %v1575, %v1604
    %v1606 = vlaneseq
    %v1607 = vshrl.u32 %v1606, 7
    %v1608 = vsub.s32 3, %v1607
    %v1609 = vrot.slane %v74, %v1608
    %v1610 = vsub.f32 %v59, %v1609
    %v1611 = vand.u32 2147483647, %v1610
    %v1612 = vmul.f32 %v1611, 0.3275911
    %v1613 = vadd.f32 %v1612, 1.0
    %v1614 = vrcp.pop %v1613
    %v1615 = vmul.f32 %v1613, %v1614
    %v1616 = vsub.f32 2.0, %v1615
    %v1617 = vmul.f32 %v1614, %v1616
    %v1618 = vmul.f32 %v1617, 0.5307027
    %v1619 = vadd.f32 %v1618, -0.72657603
    %v1620 = vmul.f32 %v1619, %v1617
    %v1621 = vadd.f32 %v1620, 0.7107069
    %v1622 = vmul.f32 %v1621, %v1617
    %v1623 = vadd.f32 %v1622, -0.14224836
    %v1624 = vmul.f32 %v1623, %v1617
    %v1625 = vadd.f32 %v1624, 0.1274148
    %v1626 = vmul.f32 %v1625, %v1617
    %v1627 = vmul.f32 %v1610, %v1610
    %v1628 = vsub.f32 0.0, %v1627
    %v1629 = vmul.f32 %v1628, 1.442695
    %v1630 = vpow.pop %v1629
    %v1631 = vmul.f32 %v1626, %v1630
    %vm1632 = vcmp.ge.f32.partialorder %v1610, 0.0
    %v1633 = vsub.f32 1.0, %v1631
    %v1634 = vsel %vm1632, %v1633, %v1631
    %v1635 = vadd.f32 %v1605, %v1634
    %v1636 = vlaneseq
    %v1637 = vshrl.u32 %v1636, 7
    %v1638 = vsub.s32 4, %v1637
    %v1639 = vrot.slane %v74, %v1638
    %v1640 = vsub.f32 %v59, %v1639
    %v1641 = vand.u32 2147483647, %v1640
    %v1642 = vmul.f32 %v1641, 0.3275911
    %v1643 = vadd.f32 %v1642, 1.0
    %v1644 = vrcp.pop %v1643
    %v1645 = vmul.f32 %v1643, %v1644
    %v1646 = vsub.f32 2.0, %v1645
    %v1647 = vmul.f32 %v1644, %v1646
    %v1648 = vmul.f32 %v1647, 0.5307027
    %v1649 = vadd.f32 %v1648, -0.72657603
    %v1650 = vmul.f32 %v1649, %v1647
    %v1651 = vadd.f32 %v1650, 0.7107069
    %v1652 = vmul.f32 %v1651, %v1647
    %v1653 = vadd.f32 %v1652, -0.14224836
    %v1654 = vmul.f32 %v1653, %v1647
    %v1655 = vadd.f32 %v1654, 0.1274148
    %v1656 = vmul.f32 %v1655, %v1647
    %v1657 = vmul.f32 %v1640, %v1640
    %v1658 = vsub.f32 0.0, %v1657
    %v1659 = vmul.f32 %v1658, 1.442695
    %v1660 = vpow.pop %v1659
    %v1661 = vmul.f32 %v1656, %v1660
    %vm1662 = vcmp.ge.f32.partialorder %v1640, 0.0
    %v1663 = vsub.f32 1.0, %v1661
    %v1664 = vsel %vm1662, %v1663, %v1661
    %v1665 = vadd.f32 %v1635, %v1664
    %v1666 = vlaneseq
    %v1667 = vshrl.u32 %v1666, 7
    %v1668 = vsub.s32 5, %v1667
    %v1669 = vrot.slane %v74, %v1668
    %v1670 = vsub.f32 %v59, %v1669
    %v1671 = vand.u32 2147483647, %v1670
    %v1672 = vmul.f32 %v1671, 0.3275911
    %v1673 = vadd.f32 %v1672, 1.0
    %v1674 = vrcp.pop %v1673
    %v1675 = vmul.f32 %v1673, %v1674
    %v1676 = vsub.f32 2.0, %v1675
    %v1677 = vmul.f32 %v1674, %v1676
    %v1678 = vmul.f32 %v1677, 0.5307027
    %v1679 = vadd.f32 %v1678, -0.72657603
    %v1680 = vmul.f32 %v1679, %v1677
    %v1681 = vadd.f32 %v1680, 0.7107069
    %v1682 = vmul.f32 %v1681, %v1677
    %v1683 = vadd.f32 %v1682, -0.14224836
    %v1684 = vmul.f32 %v1683, %v1677
    %v1685 = vadd.f32 %v1684, 0.1274148
    %v1686 = vmul.f32 %v1685, %v1677
    %v1687 = vmul.f32 %v1670, %v1670
    %v1688 = vsub.f32 0.0, %v1687
    %v1689 = vmul.f32 %v1688, 1.442695
    %v1690 = vpow.pop %v1689
    %v1691 = vmul.f32 %v1686, %v1690
    %vm1692 = vcmp.ge.f32.partialorder %v1670, 0.0
    %v1693 = vsub.f32 1.0, %v1691
    %v1694 = vsel %vm1692, %v1693, %v1691
    %v1695 = vadd.f32 %v1665, %v1694
    %v1696 = vlaneseq
    %v1697 = vshrl.u32 %v1696, 7
    %v1698 = vsub.s32 6, %v1697
    %v1699 = vrot.slane %v74, %v1698
    %v1700 = vsub.f32 %v59, %v1699
    %v1701 = vand.u32 2147483647, %v1700
    %v1702 = vmul.f32 %v1701, 0.3275911
    %v1703 = vadd.f32 %v1702, 1.0
    %v1704 = vrcp.pop %v1703
    %v1705 = vmul.f32 %v1703, %v1704
    %v1706 = vsub.f32 2.0, %v1705
    %v1707 = vmul.f32 %v1704, %v1706
    %v1708 = vmul.f32 %v1707, 0.5307027
    %v1709 = vadd.f32 %v1708, -0.72657603
    %v1710 = vmul.f32 %v1709, %v1707
    %v1711 = vadd.f32 %v1710, 0.7107069
    %v1712 = vmul.f32 %v1711, %v1707
    %v1713 = vadd.f32 %v1712, -0.14224836
    %v1714 = vmul.f32 %v1713, %v1707
    %v1715 = vadd.f32 %v1714, 0.1274148
    %v1716 = vmul.f32 %v1715, %v1707
    %v1717 = vmul.f32 %v1700, %v1700
    %v1718 = vsub.f32 0.0, %v1717
    %v1719 = vmul.f32 %v1718, 1.442695
    %v1720 = vpow.pop %v1719
    %v1721 = vmul.f32 %v1716, %v1720
    %vm1722 = vcmp.ge.f32.partialorder %v1700, 0.0
    %v1723 = vsub.f32 1.0, %v1721
    %v1724 = vsel %vm1722, %v1723, %v1721
    %v1725 = vadd.f32 %v1695, %v1724
    %v1726 = vlaneseq
    %v1727 = vshrl.u32 %v1726, 7
    %v1728 = vsub.s32 7, %v1727
    %v1729 = vrot.slane %v74, %v1728
    %v1730 = vsub.f32 %v59, %v1729
    %v1731 = vand.u32 2147483647, %v1730
    %v1732 = vmul.f32 %v1731, 0.3275911
    %v1733 = vadd.f32 %v1732, 1.0
    %v1734 = vrcp.pop %v1733
    %v1735 = vmul.f32 %v1733, %v1734
    %v1736 = vsub.f32 2.0, %v1735
    %v1737 = vmul.f32 %v1734, %v1736
    %v1738 = vmul.f32 %v1737, 0.5307027
    %v1739 = vadd.f32 %v1738, -0.72657603
    %v1740 = vmul.f32 %v1739, %v1737
    %v1741 = vadd.f32 %v1740, 0.7107069
    %v1742 = vmul.f32 %v1741, %v1737
    %v1743 = vadd.f32 %v1742, -0.14224836
    %v1744 = vmul.f32 %v1743, %v1737
    %v1745 = vadd.f32 %v1744, 0.1274148
    %v1746 = vmul.f32 %v1745, %v1737
    %v1747 = vmul.f32 %v1730, %v1730
    %v1748 = vsub.f32 0.0, %v1747
    %v1749 = vmul.f32 %v1748, 1.442695
    %v1750 = vpow.pop %v1749
    %v1751 = vmul.f32 %v1746, %v1750
    %vm1752 = vcmp.ge.f32.partialorder %v1730, 0.0
    %v1753 = vsub.f32 1.0, %v1751
    %v1754 = vsel %vm1752, %v1753, %v1751
    %v1755 = vadd.f32 %v1725, %v1754
    %v1756 = vlaneseq
    %v1757 = vshrl.u32 %v1756, 7
    %v1758 = vsub.s32 0, %v1757
    %v1759 = vrot.slane %v75, %v1758
    %v1760 = vsub.f32 %v59, %v1759
    %v1761 = vand.u32 2147483647, %v1760
    %v1762 = vmul.f32 %v1761, 0.3275911
    %v1763 = vadd.f32 %v1762, 1.0
    %v1764 = vrcp.pop %v1763
    %v1765 = vmul.f32 %v1763, %v1764
    %v1766 = vsub.f32 2.0, %v1765
    %v1767 = vmul.f32 %v1764, %v1766
    %v1768 = vmul.f32 %v1767, 0.5307027
    %v1769 = vadd.f32 %v1768, -0.72657603
    %v1770 = vmul.f32 %v1769, %v1767
    %v1771 = vadd.f32 %v1770, 0.7107069
    %v1772 = vmul.f32 %v1771, %v1767
    %v1773 = vadd.f32 %v1772, -0.14224836
    %v1774 = vmul.f32 %v1773, %v1767
    %v1775 = vadd.f32 %v1774, 0.1274148
    %v1776 = vmul.f32 %v1775, %v1767
    %v1777 = vmul.f32 %v1760, %v1760
    %v1778 = vsub.f32 0.0, %v1777
    %v1779 = vmul.f32 %v1778, 1.442695
    %v1780 = vpow.pop %v1779
    %v1781 = vmul.f32 %v1776, %v1780
    %vm1782 = vcmp.ge.f32.partialorder %v1760, 0.0
    %v1783 = vsub.f32 1.0, %v1781
    %v1784 = vsel %vm1782, %v1783, %v1781
    %v1785 = vadd.f32 %v1755, %v1784
    %v1786 = vlaneseq
    %v1787 = vshrl.u32 %v1786, 7
    %v1788 = vsub.s32 1, %v1787
    %v1789 = vrot.slane %v75, %v1788
    %v1790 = vsub.f32 %v59, %v1789
    %v1791 = vand.u32 2147483647, %v1790
    %v1792 = vmul.f32 %v1791, 0.3275911
    %v1793 = vadd.f32 %v1792, 1.0
    %v1794 = vrcp.pop %v1793
    %v1795 = vmul.f32 %v1793, %v1794
    %v1796 = vsub.f32 2.0, %v1795
    %v1797 = vmul.f32 %v1794, %v1796
    %v1798 = vmul.f32 %v1797, 0.5307027
    %v1799 = vadd.f32 %v1798, -0.72657603
    %v1800 = vmul.f32 %v1799, %v1797
    %v1801 = vadd.f32 %v1800, 0.7107069
    %v1802 = vmul.f32 %v1801, %v1797
    %v1803 = vadd.f32 %v1802, -0.14224836
    %v1804 = vmul.f32 %v1803, %v1797
    %v1805 = vadd.f32 %v1804, 0.1274148
    %v1806 = vmul.f32 %v1805, %v1797
    %v1807 = vmul.f32 %v1790, %v1790
    %v1808 = vsub.f32 0.0, %v1807
    %v1809 = vmul.f32 %v1808, 1.442695
    %v1810 = vpow.pop %v1809
    %v1811 = vmul.f32 %v1806, %v1810
    %vm1812 = vcmp.ge.f32.partialorder %v1790, 0.0
    %v1813 = vsub.f32 1.0, %v1811
    %v1814 = vsel %vm1812, %v1813, %v1811
    %v1815 = vadd.f32 %v1785, %v1814
    %v1816 = vlaneseq
    %v1817 = vshrl.u32 %v1816, 7
    %v1818 = vsub.s32 2, %v1817
    %v1819 = vrot.slane %v75, %v1818
    %v1820 = vsub.f32 %v59, %v1819
    %v1821 = vand.u32 2147483647, %v1820
    %v1822 = vmul.f32 %v1821, 0.3275911
    %v1823 = vadd.f32 %v1822, 1.0
    %v1824 = vrcp.pop %v1823
    %v1825 = vmul.f32 %v1823, %v1824
    %v1826 = vsub.f32 2.0, %v1825
    %v1827 = vmul.f32 %v1824, %v1826
    %v1828 = vmul.f32 %v1827, 0.5307027
    %v1829 = vadd.f32 %v1828, -0.72657603
    %v1830 = vmul.f32 %v1829, %v1827
    %v1831 = vadd.f32 %v1830, 0.7107069
    %v1832 = vmul.f32 %v1831, %v1827
    %v1833 = vadd.f32 %v1832, -0.14224836
    %v1834 = vmul.f32 %v1833, %v1827
    %v1835 = vadd.f32 %v1834, 0.1274148
    %v1836 = vmul.f32 %v1835, %v1827
    %v1837 = vmul.f32 %v1820, %v1820
    %v1838 = vsub.f32 0.0, %v1837
    %v1839 = vmul.f32 %v1838, 1.442695
    %v1840 = vpow.pop %v1839
    %v1841 = vmul.f32 %v1836, %v1840
    %vm1842 = vcmp.ge.f32.partialorder %v1820, 0.0
    %v1843 = vsub.f32 1.0, %v1841
    %v1844 = vsel %vm1842, %v1843, %v1841
    %v1845 = vadd.f32 %v1815, %v1844
    %v1846 = vlaneseq
    %v1847 = vshrl.u32 %v1846, 7
    %v1848 = vsub.s32 3, %v1847
    %v1849 = vrot.slane %v75, %v1848
    %v1850 = vsub.f32 %v59, %v1849
    %v1851 = vand.u32 2147483647, %v1850
    %v1852 = vmul.f32 %v1851, 0.3275911
    %v1853 = vadd.f32 %v1852, 1.0
    %v1854 = vrcp.pop %v1853
    %v1855 = vmul.f32 %v1853, %v1854
    %v1856 = vsub.f32 2.0, %v1855
    %v1857 = vmul.f32 %v1854, %v1856
    %v1858 = vmul.f32 %v1857, 0.5307027
    %v1859 = vadd.f32 %v1858, -0.72657603
    %v1860 = vmul.f32 %v1859, %v1857
    %v1861 = vadd.f32 %v1860, 0.7107069
    %v1862 = vmul.f32 %v1861, %v1857
    %v1863 = vadd.f32 %v1862, -0.14224836
    %v1864 = vmul.f32 %v1863, %v1857
    %v1865 = vadd.f32 %v1864, 0.1274148
    %v1866 = vmul.f32 %v1865, %v1857
    %v1867 = vmul.f32 %v1850, %v1850
    %v1868 = vsub.f32 0.0, %v1867
    %v1869 = vmul.f32 %v1868, 1.442695
    %v1870 = vpow.pop %v1869
    %v1871 = vmul.f32 %v1866, %v1870
    %vm1872 = vcmp.ge.f32.partialorder %v1850, 0.0
    %v1873 = vsub.f32 1.0, %v1871
    %v1874 = vsel %vm1872, %v1873, %v1871
    %v1875 = vadd.f32 %v1845, %v1874
    %v1876 = vlaneseq
    %v1877 = vshrl.u32 %v1876, 7
    %v1878 = vsub.s32 4, %v1877
    %v1879 = vrot.slane %v75, %v1878
    %v1880 = vsub.f32 %v59, %v1879
    %v1881 = vand.u32 2147483647, %v1880
    %v1882 = vmul.f32 %v1881, 0.3275911
    %v1883 = vadd.f32 %v1882, 1.0
    %v1884 = vrcp.pop %v1883
    %v1885 = vmul.f32 %v1883, %v1884
    %v1886 = vsub.f32 2.0, %v1885
    %v1887 = vmul.f32 %v1884, %v1886
    %v1888 = vmul.f32 %v1887, 0.5307027
    %v1889 = vadd.f32 %v1888, -0.72657603
    %v1890 = vmul.f32 %v1889, %v1887
    %v1891 = vadd.f32 %v1890, 0.7107069
    %v1892 = vmul.f32 %v1891, %v1887
    %v1893 = vadd.f32 %v1892, -0.14224836
    %v1894 = vmul.f32 %v1893, %v1887
    %v1895 = vadd.f32 %v1894, 0.1274148
    %v1896 = vmul.f32 %v1895, %v1887
    %v1897 = vmul.f32 %v1880, %v1880
    %v1898 = vsub.f32 0.0, %v1897
    %v1899 = vmul.f32 %v1898, 1.442695
    %v1900 = vpow.pop %v1899
    %v1901 = vmul.f32 %v1896, %v1900
    %vm1902 = vcmp.ge.f32.partialorder %v1880, 0.0
    %v1903 = vsub.f32 1.0, %v1901
    %v1904 = vsel %vm1902, %v1903, %v1901
    %v1905 = vadd.f32 %v1875, %v1904
    %v1906 = vlaneseq
    %v1907 = vshrl.u32 %v1906, 7
    %v1908 = vsub.s32 5, %v1907
    %v1909 = vrot.slane %v75, %v1908
    %v1910 = vsub.f32 %v59, %v1909
    %v1911 = vand.u32 2147483647, %v1910
    %v1912 = vmul.f32 %v1911, 0.3275911
    %v1913 = vadd.f32 %v1912, 1.0
    %v1914 = vrcp.pop %v1913
    %v1915 = vmul.f32 %v1913, %v1914
    %v1916 = vsub.f32 2.0, %v1915
    %v1917 = vmul.f32 %v1914, %v1916
    %v1918 = vmul.f32 %v1917, 0.5307027
    %v1919 = vadd.f32 %v1918, -0.72657603
    %v1920 = vmul.f32 %v1919, %v1917
    %v1921 = vadd.f32 %v1920, 0.7107069
    %v1922 = vmul.f32 %v1921, %v1917
    %v1923 = vadd.f32 %v1922, -0.14224836
    %v1924 = vmul.f32 %v1923, %v1917
    %v1925 = vadd.f32 %v1924, 0.1274148
    %v1926 = vmul.f32 %v1925, %v1917
    %v1927 = vmul.f32 %v1910, %v1910
    %v1928 = vsub.f32 0.0, %v1927
    %v1929 = vmul.f32 %v1928, 1.442695
    %v1930 = vpow.pop %v1929
    %v1931 = vmul.f32 %v1926, %v1930
    %vm1932 = vcmp.ge.f32.partialorder %v1910, 0.0
    %v1933 = vsub.f32 1.0, %v1931
    %v1934 = vsel %vm1932, %v1933, %v1931
    %v1935 = vadd.f32 %v1905, %v1934
    %v1936 = vlaneseq
    %v1937 = vshrl.u32 %v1936, 7
    %v1938 = vsub.s32 6, %v1937
    %v1939 = vrot.slane %v75, %v1938
    %v1940 = vsub.f32 %v59, %v1939
    %v1941 = vand.u32 2147483647, %v1940
    %v1942 = vmul.f32 %v1941, 0.3275911
    %v1943 = vadd.f32 %v1942, 1.0
    %v1944 = vrcp.pop %v1943
    %v1945 = vmul.f32 %v1943, %v1944
    %v1946 = vsub.f32 2.0, %v1945
    %v1947 = vmul.f32 %v1944, %v1946
    %v1948 = vmul.f32 %v1947, 0.5307027
    %v1949 = vadd.f32 %v1948, -0.72657603
    %v1950 = vmul.f32 %v1949, %v1947
    %v1951 = vadd.f32 %v1950, 0.7107069
    %v1952 = vmul.f32 %v1951, %v1947
    %v1953 = vadd.f32 %v1952, -0.14224836
    %v1954 = vmul.f32 %v1953, %v1947
    %v1955 = vadd.f32 %v1954, 0.1274148
    %v1956 = vmul.f32 %v1955, %v1947
    %v1957 = vmul.f32 %v1940, %v1940
    %v1958 = vsub.f32 0.0, %v1957
    %v1959 = vmul.f32 %v1958, 1.442695
    %v1960 = vpow.pop %v1959
    %v1961 = vmul.f32 %v1956, %v1960
    %vm1962 = vcmp.ge.f32.partialorder %v1940, 0.0
    %v1963 = vsub.f32 1.0, %v1961
    %v1964 = vsel %vm1962, %v1963, %v1961
    %v1965 = vadd.f32 %v1935, %v1964
    %v1966 = vlaneseq
    %v1967 = vshrl.u32 %v1966, 7
    %v1968 = vsub.s32 7, %v1967
    %v1969 = vrot.slane %v75, %v1968
    %v1970 = vsub.f32 %v59, %v1969
    %v1971 = vand.u32 2147483647, %v1970
    %v1972 = vmul.f32 %v1971, 0.3275911
    %v1973 = vadd.f32 %v1972, 1.0
    %v1974 = vrcp.pop %v1973
    %v1975 = vmul.f32 %v1973, %v1974
    %v1976 = vsub.f32 2.0, %v1975
    %v1977 = vmul.f32 %v1974, %v1976
    %v1978 = vmul.f32 %v1977, 0.5307027
    %v1979 = vadd.f32 %v1978, -0.72657603
    %v1980 = vmul.f32 %v1979, %v1977
    %v1981 = vadd.f32 %v1980, 0.7107069
    %v1982 = vmul.f32 %v1981, %v1977
    %v1983 = vadd.f32 %v1982, -0.14224836
    %v1984 = vmul.f32 %v1983, %v1977
    %v1985 = vadd.f32 %v1984, 0.1274148
    %v1986 = vmul.f32 %v1985, %v1977
    %v1987 = vmul.f32 %v1970, %v1970
    %v1988 = vsub.f32 0.0, %v1987
    %v1989 = vmul.f32 %v1988, 1.442695
    %v1990 = vpow.pop %v1989
    %v1991 = vmul.f32 %v1986, %v1990
    %vm1992 = vcmp.ge.f32.partialorder %v1970, 0.0
    %v1993 = vsub.f32 1.0, %v1991
    %v1994 = vsel %vm1992, %v1993, %v1991
    %v1995 = vadd.f32 %v1965, %v1994
    %v1996 = vld [vmem:[#allocation7] sm:$0xff]
    %v1997 = vadd.f32 %v1996, %v1995
    %1998 = vst [vmem:[#allocation7] sm:$0xff] %v1997
    // Predicated region
    $region26: #{tpu_custom_call.1} parent=1 // pred_check
      %p1999 = pneg %p41
    $region27: #{tpu_custom_call.1} parent=1 // pred_check_branch
      %2001 = sbr.rel (%p1999) target = $region29
    $region28: #{tpu_custom_call.1} parent=1 // pred_region
      %v2002 = vld [vmem:[#allocation7] sm:$0xff]
      %v2003 = vmul.f32 %v2002, 0.015625
      %2004 = vst [vmem:[#allocation7] sm:$0xff] %v2003
    $region29: #{tpu_custom_call.1} parent=1 // pred_fallthru
      _
    // Predicated region
    $region30: #{tpu_custom_call.1} parent=1 // pred_check
      _
    $region31: #{tpu_custom_call.1} parent=1 // pred_check_branch
      %2006 = sbr.rel (0) target = $region33
    $region32: #{tpu_custom_call.1} parent=1 // pred_region
      %s2008 = ssub.s32 128, 128
      %2009 = vsyncadd [#allocation4], %s2008
      %s2011 = sshll.u32 [#allocation7], 4
      %s2012 = int_to_ptr.vmem [resolvable:$true] %s2011
      %2014 = dma.vmem_to_hbm [thread:$0]  %s2012, 128, %s3, [#allocation4]
    $region33: #{tpu_custom_call.1} parent=1 // pred_fallthru
      _
    // Predicated region
    $region34: #{tpu_custom_call.1} parent=1 // pred_check
      _
    $region35: #{tpu_custom_call.1} parent=1 // pred_check_branch
      %2016 = sbr.rel (0) target = $region37
    $region36: #{tpu_custom_call.1} parent=1 // pred_region
      %2017 = dma.done [#allocation4], 128
    $region37: #{tpu_custom_call.1} parent=1 // pred_fallthru
      _
    %2018 = vsyncpa [#allocation3], 1
    %2019 = vsyncpa [#allocation6], 1
    %2020 = vsyncpa [#allocation4], 1

</llo_original>
